<compile_context>
chip_gen: v5e
topology: v5e:2x2
jax: 0.10.0
libtpu: 0.0.40
codegen_flags: <defaults>
</compile_context>

<pallas_src>
import jax
import jax.numpy as jnp
from jax.experimental import pallas as pl
from jax.experimental.pallas import tpu as pltpu


def _cond_proj_kernel(x_ref, y_ref, m_ref, w_ref, s_ref, b_ref, o_ref):
    # x_ref, y_ref, o_ref: (C, TS)   m_ref: (1, TS) int8
    # w_ref: (C, C)   s_ref, b_ref: (C, 1)
    conv = jnp.dot(w_ref[...], x_ref[...],
                   preferred_element_type=jnp.float32,
                   precision=jax.lax.Precision.HIGHEST)          # (C, TS)
    z = jnp.where(m_ref[...] != 0, conv, y_ref[...].astype(jnp.float32))
    o_ref[...] = jnp.maximum(z * s_ref[...] + b_ref[...], 0.0).astype(o_ref.dtype)


def _proj_kernel(x_ref, w_ref, b_ref, o_ref):
    # condition=False path: BN scale pre-folded into w, so just bias + relu.
    conv = jnp.dot(w_ref[...], x_ref[...],
                   preferred_element_type=jnp.float32,
                   precision=jax.lax.Precision.HIGHEST)
    o_ref[...] = jnp.maximum(conv + b_ref[...], 0.0).astype(o_ref.dtype)


def _vmem_limit_bytes():
    """Per-generation VMEM limit: half of physical, clamped to [32, 64] MiB."""
    try:
        cap = int(pltpu.get_tpu_info().vmem_capacity_bytes)
    except Exception:  # conservative default (v7x has 64 MiB physical)
        cap = 64 * 1024 * 1024
    return int(min(max(cap // 2, 32 * 1024 * 1024), 64 * 1024 * 1024))


def _pick_ts(dhw, c, batch, max_ts, vmem_budget_bytes):
    """Largest 128-multiple spatial tile that fits the VMEM budget (double
    buffered x + y + out f32 + int8 mask), capped at max_ts and at the padded
    DHW.  Ensures at least 2 total grid steps when possible (megacore)."""
    if dhw <= 128:
        return dhw                                # full-dim block, always legal
    dhw_pad = -(-dhw // 128) * 128
    per_lane = 2 * (3 * c * 4 + 1)                # 2 buffers * (x+y+out f32, mask i8)
    cap = max(128, (vmem_budget_bytes // per_lane) // 128 * 128)
    ts = min(max_ts, cap, dhw_pad)
    ts = max(128, (ts // 128) * 128)
    # give both TensorCores at least one grid step on v7x
    while batch * (-(-dhw // ts)) < 2 and ts > 128:
        ts = max(128, (ts // 2 // 128) * 128)
    return ts


def conditional_projection(x, y, mask, weight, gamma, beta, run_mean, run_var,
                           eps=1e-5, condition=True, max_ts=16384):
    """x, y: (B, C, D, H, W) float32; mask: (B, 1, D, H, W) bool.
    weight: (C, C) Conv3d 1x1x1 weight (out, in). Returns (B, C, D, H, W)."""
    B, C, D, H, W = x.shape
    DHW = D * H * W

    # NCDHW is already (B, C, DHW) row-major: reshape only, no transpose.
    x3 = x.reshape(B, C, DHW)

    # Fused eval-mode BN affine: out = z * scale + bias (per channel).
    invstd = 1.0 / jnp.sqrt(run_var.astype(jnp.float32) + eps)
    scale = (gamma.astype(jnp.float32) * invstd).reshape(C, 1)
    bias = (beta.astype(jnp.float32)
            - run_mean.astype(jnp.float32) * gamma.astype(jnp.float32) * invstd).reshape(C, 1)
    w = weight.astype(jnp.float32)  # (Cout, Cin); conv(x)[o, p] = sum_i w[o,i] x[i,p]

    vmem_limit = _vmem_limit_bytes()
    ts = _pick_ts(DHW, C, B, max_ts, int(vmem_limit * 0.6))
    n_tiles = -(-DHW // ts)                      # cdiv: last tile may be ragged
    grid = (B, n_tiles)

    cparams = pltpu.CompilerParams(
        dimension_semantics=("parallel", "parallel"),
        vmem_limit_bytes=vmem_limit,
    )

    data_spec = pl.BlockSpec((None, C, ts), lambda b, s: (b, 0, s))
    w_spec = pl.BlockSpec((C, C), lambda b, s: (0, 0))
    vec_spec = pl.BlockSpec((C, 1), lambda b, s: (0, 0))

    if condition:
        y3 = y.reshape(B, C, DHW)
        m3 = mask.reshape(B, 1, DHW).astype(jnp.int8)          # int8, not int32
        mask_spec = pl.BlockSpec((None, 1, ts), lambda b, s: (b, 0, s))
        out3 = pl.pallas_call(
            _cond_proj_kernel,
            out_shape=jax.ShapeDtypeStruct((B, C, DHW), x.dtype),
            grid_spec=pltpu.PrefetchScalarGridSpec(
                num_scalar_prefetch=0,
                grid=grid,
                in_specs=[data_spec, data_spec, mask_spec, w_spec, vec_spec, vec_spec],
                out_specs=data_spec,
            ),
            compiler_params=cparams,
        )(x3, y3, m3, w, scale, bias)
    else:
        w_scaled = scale * w                                    # fold BN scale into conv
        out3 = pl.pallas_call(
            _proj_kernel,
            out_shape=jax.ShapeDtypeStruct((B, C, DHW), x.dtype),
            grid_spec=pltpu.PrefetchScalarGridSpec(
                num_scalar_prefetch=0,
                grid=grid,
                in_specs=[data_spec, w_spec, vec_spec],
                out_specs=data_spec,
            ),
            compiler_params=cparams,
        )(x3, w_scaled, bias)

    return out3.reshape(B, C, D, H, W)


def _reference(x, y, mask, weight, gamma, beta, run_mean, run_var,
               eps=1e-5, condition=True):
    # pure-JAX reference of the same forward (eval-mode BN)
    conv = jnp.einsum('oc,bcdhw->bodhw', weight, x,
                      precision=jax.lax.Precision.HIGHEST)
    z = jnp.where(mask, conv, y) if condition else conv
    c = (None, slice(None), None, None, None)
    bn = (z - run_mean[c]) / jnp.sqrt(run_var[c] + eps) * gamma[c] + beta[c]
    return jnp.maximum(bn, 0.0)


def _run_case(B, C, D, H, W, key):
    kx, ky, km, kw = jax.random.split(key, 4)
    x = jax.random.normal(kx, (B, C, D, H, W), jnp.float32)
    y = jax.random.normal(ky, (B, C, D, H, W), jnp.float32)
    mask = jax.random.uniform(km, (B, 1, D, H, W)) > 0.5

    # nn.Conv3d(C, C, 1, bias=False) weight + BatchNorm3d(C) eval stats
    weight = jax.random.normal(kw, (C, C), jnp.float32) * 0.1
    gamma = jnp.linspace(0.5, 1.5, C, dtype=jnp.float32)
    beta = jnp.linspace(-0.1, 0.1, C, dtype=jnp.float32)
    run_mean = jnp.linspace(-0.2, 0.2, C, dtype=jnp.float32)
    run_var = jnp.linspace(0.8, 1.2, C, dtype=jnp.float32)

    # condition=True path
    out = conditional_projection(x, y, mask, weight, gamma, beta, run_mean, run_var,
                                 condition=True)
    out = jax.block_until_ready(out)
    ref = _reference(x, y, mask, weight, gamma, beta, run_mean, run_var, condition=True)
    assert out.shape == (B, C, D, H, W)
    assert jnp.allclose(out, ref, atol=1e-4, rtol=1e-4)

    # condition=False path (skips y / mask HBM traffic, scale folded into W)
    out_nc = conditional_projection(x, y, mask, weight, gamma, beta, run_mean, run_var,
                                    condition=False)
    out_nc = jax.block_until_ready(out_nc)
    ref_nc = _reference(x, y, mask, weight, gamma, beta, run_mean, run_var, condition=False)
    assert jnp.allclose(out_nc, ref_nc, atol=1e-4, rtol=1e-4)


if __name__ == "__main__":
    # TODO(synk): BatchNorm training-mode statistics update is not implemented
    # (kernel fuses eval-mode BN into a per-channel affine, as in inference).
    key = jax.random.PRNGKey(0)
    k1, k2 = jax.random.split(key)

    # nice shapes: DHW = 2048 (multiple of 128)
    _run_case(B=2, C=32, D=8, H=16, W=16, key=k1)

    # ragged shapes: DHW = 5*7*9 = 315 (exercises the cdiv grid / padded tile)
    _run_case(B=2, C=32, D=5, H=7, W=9, key=k2)

    print("KERNEL_OK")
</pallas_src>

<mosaic_0001>
module attributes {stable_mosaic.version = 11 : i64} {
  func.func @_cond_proj_kernel(%arg0: i32, %arg1: i32, %arg2: memref<1x32x2048xf32, #tpu.memory_space<vmem>>, %arg3: memref<1x32x2048xf32, #tpu.memory_space<vmem>>, %arg4: memref<1x1x2048xi8, #tpu.memory_space<vmem>>, %arg5: memref<32x32xf32, #tpu.memory_space<vmem>>, %arg6: memref<32x1xf32, #tpu.memory_space<vmem>>, %arg7: memref<32x1xf32, #tpu.memory_space<vmem>>, %arg8: memref<1x32x2048xf32, #tpu.memory_space<vmem>>) attributes {dimension_semantics = [#tpu.dimension_semantics<parallel>, #tpu.dimension_semantics<parallel>], iteration_bounds = array<i64: 2, 1>, scalar_prefetch = 0 : i64, scratch_operands = 0 : i64, tpu.core_type = #tpu.core_type<tc>, window_params = [{transform_indices = @transform_0, window_bounds = array<i64: 1, 32, 2048>}, {transform_indices = @transform_1, window_bounds = array<i64: 1, 32, 2048>}, {transform_indices = @transform_2, window_bounds = array<i64: 1, 1, 2048>}, {pipeline_mode = #tpu.pipeline_mode<synchronous>, transform_indices = @transform_3, window_bounds = array<i64: 32, 32>}, {pipeline_mode = #tpu.pipeline_mode<synchronous>, transform_indices = @transform_4, window_bounds = array<i64: 32, 1>}, {pipeline_mode = #tpu.pipeline_mode<synchronous>, transform_indices = @transform_5, window_bounds = array<i64: 32, 1>}, {transform_indices = @transform_6, window_bounds = array<i64: 1, 32, 2048>}]} {
    %c0 = arith.constant 0 : index
    %c0_0 = arith.constant 0 : index
    %0 = vector.load %arg5[%c0, %c0_0] : memref<32x32xf32, #tpu.memory_space<vmem>>, vector<32x32xf32>
    %c0_1 = arith.constant 0 : index
    %c0_2 = arith.constant 0 : index
    %c0_3 = arith.constant 0 : index
    %1 = vector.load %arg2[%c0_1, %c0_2, %c0_3] : memref<1x32x2048xf32, #tpu.memory_space<vmem>>, vector<1x32x2048xf32>
    %2 = vector.shape_cast %1 : vector<1x32x2048xf32> to vector<32x2048xf32>
    %cst = arith.constant dense<0.000000e+00> : vector<32x2048xf32>
    %3 = tpu.matmul %0, %2, %cst {dimension_numbers = #tpu.dot_dimension_numbers<[1], [0], [0], [1], [0, 0, 1, 1], [], []>, precision = #tpu.contract_precision<fp32>} : vector<32x32xf32>, vector<32x2048xf32>, vector<32x2048xf32> -> vector<32x2048xf32>
    %c0_4 = arith.constant 0 : index
    %c0_5 = arith.constant 0 : index
    %c0_6 = arith.constant 0 : index
    %4 = vector.load %arg4[%c0_4, %c0_5, %c0_6] : memref<1x1x2048xi8, #tpu.memory_space<vmem>>, vector<1x1x2048xi8>
    %5 = vector.shape_cast %4 : vector<1x1x2048xi8> to vector<1x2048xi8>
    %c0_i8 = arith.constant 0 : i8
    %6 = vector.broadcast %c0_i8 : i8 to vector<1x2048xi8>
    %7 = arith.cmpi ne, %5, %6 : vector<1x2048xi8>
    %c0_7 = arith.constant 0 : index
    %c0_8 = arith.constant 0 : index
    %c0_9 = arith.constant 0 : index
    %8 = vector.load %arg3[%c0_7, %c0_8, %c0_9] : memref<1x32x2048xf32, #tpu.memory_space<vmem>>, vector<1x32x2048xf32>
    %9 = vector.shape_cast %8 : vector<1x32x2048xf32> to vector<32x2048xf32>
    %10 = vector.shape_cast %7 : vector<1x2048xi1> to vector<1x2048xi1>
    %11 = vector.broadcast %10 : vector<1x2048xi1> to vector<32x2048xi1>
    %12 = arith.select %11, %3, %9 : vector<32x2048xi1>, vector<32x2048xf32>
    %c0_10 = arith.constant 0 : index
    %c0_11 = arith.constant 0 : index
    %13 = vector.load %arg6[%c0_10, %c0_11] : memref<32x1xf32, #tpu.memory_space<vmem>>, vector<32x1xf32>
    %14 = vector.broadcast %13 : vector<32x1xf32> to vector<32x2048xf32>
    %15 = arith.mulf %12, %14 : vector<32x2048xf32>
    %c0_12 = arith.constant 0 : index
    %c0_13 = arith.constant 0 : index
    %16 = vector.load %arg7[%c0_12, %c0_13] : memref<32x1xf32, #tpu.memory_space<vmem>>, vector<32x1xf32>
    %17 = vector.broadcast %16 : vector<32x1xf32> to vector<32x2048xf32>
    %18 = arith.addf %15, %17 : vector<32x2048xf32>
    %cst_14 = arith.constant 0.000000e+00 : f32
    %19 = vector.broadcast %cst_14 : f32 to vector<32x2048xf32>
    %20 = arith.maximumf %18, %19 : vector<32x2048xf32>
    %c0_15 = arith.constant 0 : index
    %c0_16 = arith.constant 0 : index
    %c0_17 = arith.constant 0 : index
    %21 = vector.load %arg8[%c0_15, %c0_16, %c0_17] : memref<1x32x2048xf32, #tpu.memory_space<vmem>>, vector<1x32x2048xf32>
    %22 = vector.shape_cast %21 : vector<1x32x2048xf32> to vector<32x2048xf32>
    %23 = vector.shape_cast %20 : vector<32x2048xf32> to vector<1x32x2048xf32>
    tpu.vector_store %arg8[%c0_15, %c0_16, %c0_17], %23 {strides = array<i32>} : memref<1x32x2048xf32, #tpu.memory_space<vmem>>, vector<1x32x2048xf32>,
    return
  }
  func.func @transform_0(%arg0: i32, %arg1: i32) -> (i32, i32, i32) {
    %c0_i32 = arith.constant 0 : i32
    %c0_i32_0 = arith.constant 0 : i32
    return %arg0, %c0_i32, %arg1 : i32, i32, i32
  }
  func.func @transform_1(%arg0: i32, %arg1: i32) -> (i32, i32, i32) {
    %c0_i32 = arith.constant 0 : i32
    %c0_i32_0 = arith.constant 0 : i32
    return %arg0, %c0_i32, %arg1 : i32, i32, i32
  }
  func.func @transform_2(%arg0: i32, %arg1: i32) -> (i32, i32, i32) {
    %c0_i32 = arith.constant 0 : i32
    %c0_i32_0 = arith.constant 0 : i32
    return %arg0, %c0_i32, %arg1 : i32, i32, i32
  }
  func.func @transform_3(%arg0: i32, %arg1: i32) -> (i32, i32) {
    %c0_i32 = arith.constant 0 : i32
    %c0_i32_0 = arith.constant 0 : i32
    %c0_i32_1 = arith.constant 0 : i32
    return %c0_i32, %c0_i32_0 : i32, i32
  }
  func.func @transform_4(%arg0: i32, %arg1: i32) -> (i32, i32) {
    %c0_i32 = arith.constant 0 : i32
    %c0_i32_0 = arith.constant 0 : i32
    %c0_i32_1 = arith.constant 0 : i32
    return %c0_i32, %c0_i32_0 : i32, i32
  }
  func.func @transform_5(%arg0: i32, %arg1: i32) -> (i32, i32) {
    %c0_i32 = arith.constant 0 : i32
    %c0_i32_0 = arith.constant 0 : i32
    %c0_i32_1 = arith.constant 0 : i32
    return %c0_i32, %c0_i32_0 : i32, i32
  }
  func.func @transform_6(%arg0: i32, %arg1: i32) -> (i32, i32, i32) {
    %c0_i32 = arith.constant 0 : i32
    %c0_i32_0 = arith.constant 0 : i32
    return %arg0, %c0_i32, %arg1 : i32, i32, i32
  }
}

</mosaic_0001>

<llo_original>
// kernel: tpu_custom_call.1
$region0: #{tpu_custom_call.1}
  #allocation0 [shape = 'u32[]', space=smem, size = 0x4, offset = 0x4, fixed_abs, tag = 'smem constant byte address 0x4 - core index']
  #allocation1 [shape = 'u32[72,128]{1,0:T(1,128)}', space=vmem, size = 0x9000, scoped, tag = 'internal scratch']
  %s0 = inlined_call_operand.hbm [shape: f32[2,32,2048], index: 0, kind: input, shape index: {}]
  %s1 = inlined_call_operand.hbm [shape: f32[2,32,2048], index: 1, kind: input, shape index: {}]
  %s2 = inlined_call_operand.vmem [shape: s8[2,1,2048], index: 2, kind: input, shape index: {}]
  %s3 = inlined_call_operand.vmem [shape: f32[32,32], index: 3, kind: input, shape index: {}]
  %s4 = inlined_call_operand.vmem [shape: f32[32,1], index: 4, kind: input, shape index: {}]
  %s5 = inlined_call_operand.vmem [shape: f32[32,1], index: 5, kind: input, shape index: {}]
  %s6 = inlined_call_operand.hbm [shape: f32[2,32,2048], index: 6, kind: output, shape index: {}]
  %s7 = sld [smem:[#allocation0]]
  $region65: #{tpu_custom_call.1} parent=0
    _
  %s9 = ssub.s32 1, %s7
  %s10 = scalar_select 0, %s9, %s7
  $region1: #{tpu_custom_call.1} parent=0
    #allocation2 [shape = 'u8[524288]{0}', space=vmem, size = 0x80000, scoped, tag = 'input window, operand 0']
    #allocation3 [shape = 's32[2]{0}', space=sflag, size = 0x8, scoped, tag = 'scoped memory for tpu_custom_call.1']
    #allocation4 [shape = 's32[2]{0}', space=sflag, size = 0x8, scoped, tag = 'scoped memory for tpu_custom_call.1']
    #allocation5 [shape = 'u8[524288]{0}', space=vmem, size = 0x80000, scoped, tag = 'input window, operand 1']
    #allocation6 [shape = 's32[2]{0}', space=sflag, size = 0x8, scoped, tag = 'scoped memory for tpu_custom_call.1']
    #allocation7 [shape = 'u8[524288]{0}', space=vmem, size = 0x80000, scoped, tag = 'output window, operand 0']
    %11 = vsyncpa [#allocation3], 0
    %s12 = scalar_lea.sflag [#allocation3], 1
    %13 = vsyncpa %s12, 0
    %14 = vsyncpa [#allocation6], 0
    %s15 = scalar_lea.sflag [#allocation6], 1
    %16 = vsyncpa %s15, 0
    %17 = vsyncpa [#allocation4], 0
    %s18 = scalar_lea.sflag [#allocation4], 1
    %19 = vsyncpa %s18, 0
    loop: start=0, step=1, limit=4
    $region2: #{tpu_custom_call.1} parent=1 // loop_pre_header
      _
    $region3: #{tpu_custom_call.1} parent=1 // loop_header
      %s21 = sphi 0, %s25
      %p22 = scmp.ge.s32.totalorder %s21, 4
      %s28 = sphi 0, %s40
      %s29 = sphi 0, %s36
      %s30 = sphi 0, %s28
      %s31 = sphi 0, %s29
      %s32 = sphi 0, %s30
      %s33 = sphi 0, %s31
      %s45 = sphi 0, %s47
      %s48 = sphi 0, %s45
      %s49 = sphi 0, %s48
      %s65 = sphi 0, %s49
      %s73 = sphi 0, %s75
      %s76 = sphi 0, %s73
      %s77 = sphi 0, %s76
      %s93 = sphi 0, %s77
      %s101 = sphi 0, %s103
      %s104 = sphi 0, %s101
      %s105 = sphi 0, %s104
      %s121 = sphi 0, %s105
      %s125 = sphi 0, %s125
      %s127 = sphi 0, %s125
      %s128 = sphi 0, %s127
      %s142 = sphi 0, %s128
      %s146 = sphi 0, %s146
      %s148 = sphi 0, %s146
      %s149 = sphi 0, %s148
      %s163 = sphi 0, %s149
      %s167 = sphi 0, %s167
      %s169 = sphi 0, %s167
      %s170 = sphi 0, %s169
      %s184 = sphi 0, %s170
      %s192 = sphi 0, %s194
      %s195 = sphi 0, %s192
      %s196 = sphi 0, %s195
      %s212 = sphi 0, %s196
    $region4: #{tpu_custom_call.1} parent=1 // loop_header_branch
      %24 = sbr.rel (%p22) target = $region8
    $region5: #{tpu_custom_call.1} parent=1 // loop_body
      %s26 = ssub.s32 %s21, 1
      %s27 = ssub.s32 %s21, 2
      %s34 = sadd.s32 1, %s29
      %p35 = scmp.ge.s32.totalorder %s34, 1
      %s36 = scalar_select %p35, 0, %s34
      %s37 = sadd.s32 1, %s28
      %s38 = scalar_select %p35, %s37, %s28
      %p39 = scmp.ge.s32.totalorder %s38, 2
      %s40 = scalar_select %p39, 0, %s38
      %s41 = ssub.s32 %s28, %s40
      %s42 = ssub.s32 %s29, %s36
      %s43 = sor.u32 %s41, %s42
      %p44 = scmp.eq.s32.totalorder %s43, 0
      %s46 = sadd.s32 %s45, 1
      %s47 = scalar_select %p44, %s45, %s46
      %p50 = pneg %p44
      %p51 = scmp.eq.s32.totalorder %s21, 1
      %p52 = por %p50, %p51
      %p53 = scmp.ne.s32.totalorder %s45, %s48
      %p54 = scmp.eq.s32.totalorder %s21, 0
      %p55 = por %p53, %p54
      %p56 = scmp.ne.s32.totalorder %s45, %s48
      %p57 = scmp.eq.s32.totalorder %s26, 1
      %p58 = por %p56, %p57
      %p59 = scmp.ne.s32.totalorder %s48, %s49
      %p60 = scmp.eq.s32.totalorder %s26, 0
      %p61 = por %p59, %p60
      %p62 = scmp.ne.s32.totalorder %s48, %s49
      %p63 = scmp.eq.s32.totalorder %s27, 1
      %p64 = por %p62, %p63
      %p66 = scmp.ne.s32.totalorder %s49, %s65
      %p67 = scmp.eq.s32.totalorder %s27, 0
      %p68 = por %p66, %p67
      %s69 = ssub.s32 %s28, %s40
      %s70 = ssub.s32 %s29, %s36
      %s71 = sor.u32 %s69, %s70
      %p72 = scmp.eq.s32.totalorder %s71, 0
      %s74 = sadd.s32 %s73, 1
      %s75 = scalar_select %p72, %s73, %s74
      %p78 = pneg %p72
      %p79 = scmp.eq.s32.totalorder %s21, 1
      %p80 = por %p78, %p79
      %p81 = scmp.ne.s32.totalorder %s73, %s76
      %p82 = scmp.eq.s32.totalorder %s21, 0
      %p83 = por %p81, %p82
      %p84 = scmp.ne.s32.totalorder %s73, %s76
      %p85 = scmp.eq.s32.totalorder %s26, 1
      %p86 = por %p84, %p85
      %p87 = scmp.ne.s32.totalorder %s76, %s77
      %p88 = scmp.eq.s32.totalorder %s26, 0
      %p89 = por %p87, %p88
      %p90 = scmp.ne.s32.totalorder %s76, %s77
      %p91 = scmp.eq.s32.totalorder %s27, 1
      %p92 = por %p90, %p91
      %p94 = scmp.ne.s32.totalorder %s77, %s93
      %p95 = scmp.eq.s32.totalorder %s27, 0
      %p96 = por %p94, %p95
      %s97 = ssub.s32 %s28, %s40
      %s98 = ssub.s32 %s29, %s36
      %s99 = sor.u32 %s97, %s98
      %p100 = scmp.eq.s32.totalorder %s99, 0
      %s102 = sadd.s32 %s101, 1
      %s103 = scalar_select %p100, %s101, %s102
      %p106 = pneg %p100
      %p107 = scmp.eq.s32.totalorder %s21, 1
      %p108 = por %p106, %p107
      %p109 = scmp.ne.s32.totalorder %s101, %s104
      %p110 = scmp.eq.s32.totalorder %s21, 0
      %p111 = por %p109, %p110
      %p112 = scmp.ne.s32.totalorder %s101, %s104
      %p113 = scmp.eq.s32.totalorder %s26, 1
      %p114 = por %p112, %p113
      %p115 = scmp.ne.s32.totalorder %s104, %s105
      %p116 = scmp.eq.s32.totalorder %s26, 0
      %p117 = por %p115, %p116
      %p118 = scmp.ne.s32.totalorder %s104, %s105
      %p119 = scmp.eq.s32.totalorder %s27, 1
      %p120 = por %p118, %p119
      %p122 = scmp.ne.s32.totalorder %s105, %s121
      %p123 = scmp.eq.s32.totalorder %s27, 0
      %p124 = por %p122, %p123
      %s126 = sadd.s32 %s125, 1
      %p129 = scmp.eq.s32.totalorder %s21, 1
      %p130 = scmp.ne.s32.totalorder %s125, %s127
      %p131 = scmp.eq.s32.totalorder %s21, 0
      %p132 = por %p130, %p131
      %p133 = scmp.ne.s32.totalorder %s125, %s127
      %p134 = scmp.eq.s32.totalorder %s26, 1
      %p135 = por %p133, %p134
      %p136 = scmp.ne.s32.totalorder %s127, %s128
      %p137 = scmp.eq.s32.totalorder %s26, 0
      %p138 = por %p136, %p137
      %p139 = scmp.ne.s32.totalorder %s127, %s128
      %p140 = scmp.eq.s32.totalorder %s27, 1
      %p141 = por %p139, %p140
      %p143 = scmp.ne.s32.totalorder %s128, %s142
      %p144 = scmp.eq.s32.totalorder %s27, 0
      %p145 = por %p143, %p144
      %s147 = sadd.s32 %s146, 1
      %p150 = scmp.eq.s32.totalorder %s21, 1
      %p151 = scmp.ne.s32.totalorder %s146, %s148
      %p152 = scmp.eq.s32.totalorder %s21, 0
      %p153 = por %p151, %p152
      %p154 = scmp.ne.s32.totalorder %s146, %s148
      %p155 = scmp.eq.s32.totalorder %s26, 1
      %p156 = por %p154, %p155
      %p157 = scmp.ne.s32.totalorder %s148, %s149
      %p158 = scmp.eq.s32.totalorder %s26, 0
      %p159 = por %p157, %p158
      %p160 = scmp.ne.s32.totalorder %s148, %s149
      %p161 = scmp.eq.s32.totalorder %s27, 1
      %p162 = por %p160, %p161
      %p164 = scmp.ne.s32.totalorder %s149, %s163
      %p165 = scmp.eq.s32.totalorder %s27, 0
      %p166 = por %p164, %p165
      %s168 = sadd.s32 %s167, 1
      %p171 = scmp.eq.s32.totalorder %s21, 1
      %p172 = scmp.ne.s32.totalorder %s167, %s169
      %p173 = scmp.eq.s32.totalorder %s21, 0
      %p174 = por %p172, %p173
      %p175 = scmp.ne.s32.totalorder %s167, %s169
      %p176 = scmp.eq.s32.totalorder %s26, 1
      %p177 = por %p175, %p176
      %p178 = scmp.ne.s32.totalorder %s169, %s170
      %p179 = scmp.eq.s32.totalorder %s26, 0
      %p180 = por %p178, %p179
      %p181 = scmp.ne.s32.totalorder %s169, %s170
      %p182 = scmp.eq.s32.totalorder %s27, 1
      %p183 = por %p181, %p182
      %p185 = scmp.ne.s32.totalorder %s170, %s184
      %p186 = scmp.eq.s32.totalorder %s27, 0
      %p187 = por %p185, %p186
      %s188 = ssub.s32 %s28, %s40
      %s189 = ssub.s32 %s29, %s36
      %s190 = sor.u32 %s188, %s189
      %p191 = scmp.eq.s32.totalorder %s190, 0
      %s193 = sadd.s32 %s192, 1
      %s194 = scalar_select %p191, %s192, %s193
      %p197 = pneg %p191
      %p198 = scmp.eq.s32.totalorder %s21, 1
      %p199 = por %p197, %p198
      %p200 = scmp.ne.s32.totalorder %s192, %s195
      %p201 = scmp.eq.s32.totalorder %s21, 0
      %p202 = por %p200, %p201
      %p203 = scmp.ne.s32.totalorder %s192, %s195
      %p204 = scmp.eq.s32.totalorder %s26, 1
      %p205 = por %p203, %p204
      %p206 = scmp.ne.s32.totalorder %s195, %s196
      %p207 = scmp.eq.s32.totalorder %s26, 0
      %p208 = por %p206, %p207
      %p209 = scmp.ne.s32.totalorder %s195, %s196
      %p210 = scmp.eq.s32.totalorder %s27, 1
      %p211 = por %p209, %p210
      %p213 = scmp.ne.s32.totalorder %s196, %s212
      %p214 = scmp.eq.s32.totalorder %s27, 0
      %p215 = por %p213, %p214
      %p216 = scmp.le.s32.totalorder 1, %s21
      %p217 = scmp.lt.s32.totalorder %s21, 3
      %p218 = pnand %p216, %p217
      %p219 = pneg %p218
      // Predicated region
      $region9: #{tpu_custom_call.1} parent=5 // pred_check
        _
      $region10: #{tpu_custom_call.1} parent=5 // pred_check_branch
        %221 = sbr.rel (%p218) target = $region12
      $region11: #{tpu_custom_call.1} parent=5 // pred_region
        %s222 = ssub.s32 %s21, 1
        // Predicated region
        $region13: #{tpu_custom_call.1} parent=11 // pred_check
          %p223 = pneg %p138
        $region14: #{tpu_custom_call.1} parent=11 // pred_check_branch
          %225 = sbr.rel (%p223) target = $region16
        $region15: #{tpu_custom_call.1} parent=11 // pred_region
          _
        $region16: #{tpu_custom_call.1} parent=11 // pred_fallthru
          _
        // Predicated region
        $region17: #{tpu_custom_call.1} parent=11 // pred_check
          %p226 = pneg %p159
        $region18: #{tpu_custom_call.1} parent=11 // pred_check_branch
          %228 = sbr.rel (%p226) target = $region20
        $region19: #{tpu_custom_call.1} parent=11 // pred_region
          _
        $region20: #{tpu_custom_call.1} parent=11 // pred_fallthru
          _
        // Predicated region
        $region21: #{tpu_custom_call.1} parent=11 // pred_check
          %p229 = pneg %p180
        $region22: #{tpu_custom_call.1} parent=11 // pred_check_branch
          %231 = sbr.rel (%p229) target = $region24
        $region23: #{tpu_custom_call.1} parent=11 // pred_region
          _
        $region24: #{tpu_custom_call.1} parent=11 // pred_fallthru
          _
      $region12: #{tpu_custom_call.1} parent=5 // pred_fallthru
        _
      %p232 = scmp.lt.s32.totalorder %s21, 2
      // Predicated region
      $region25: #{tpu_custom_call.1} parent=5 // pred_check
        %p233 = pneg %p232
      $region26: #{tpu_custom_call.1} parent=5 // pred_check_branch
        %235 = sbr.rel (%p233) target = $region28
      $region27: #{tpu_custom_call.1} parent=5 // pred_region
        // Predicated region
        $region29: #{tpu_custom_call.1} parent=27 // pred_check
          %p236 = pneg %p55
        $region30: #{tpu_custom_call.1} parent=27 // pred_check_branch
          %238 = sbr.rel (%p236) target = $region32
        $region31: #{tpu_custom_call.1} parent=27 // pred_region
          %s239 = sand.u32 %s45, 1
          %s240 = scalar_lea.sflag [#allocation3], %s239
          %s241 = sand.u32 %s45, 1
          %s242 = smul.addr %s241, 512
          %s243 = scalar_lea.vmem [#allocation2], %s242
          %s244 = smul.u32 16, %s29
          %246 = vsyncadd %s240, 0
          %s247 = smul.addr %s28, 64
          %s248 = sadd.s32 %s244, %s247
          %s249 = smul.addr %s248, 8
          %s250 = scalar_lea.hbm %s0, %s249
          %s251 = sshll.u32 %s250, 4
          %s252 = int_to_ptr.hbm [resolvable:$true] %s251
          %s253 = sshll.u32 %s243, 4
          %s254 = int_to_ptr.vmem [resolvable:$true] %s253
          %259 = dma.hbm_to_vmem [thread:$0]  %s252, 8192, %s254, %s240, 2048, 2048, 128
        $region32: #{tpu_custom_call.1} parent=27 // pred_fallthru
          _
        // Predicated region
        $region33: #{tpu_custom_call.1} parent=27 // pred_check
          %p260 = pneg %p83
        $region34: #{tpu_custom_call.1} parent=27 // pred_check_branch
          %262 = sbr.rel (%p260) target = $region36
        $region35: #{tpu_custom_call.1} parent=27 // pred_region
          %s263 = sand.u32 %s73, 1
          %s264 = scalar_lea.sflag [#allocation6], %s263
          %s265 = sand.u32 %s73, 1
          %s266 = smul.addr %s265, 512
          %s267 = scalar_lea.vmem [#allocation5], %s266
          %s268 = smul.u32 16, %s29
          %270 = vsyncadd %s264, 0
          %s271 = smul.addr %s28, 64
          %s272 = sadd.s32 %s268, %s271
          %s273 = smul.addr %s272, 8
          %s274 = scalar_lea.hbm %s1, %s273
          %s275 = sshll.u32 %s274, 4
          %s276 = int_to_ptr.hbm [resolvable:$true] %s275
          %s277 = sshll.u32 %s267, 4
          %s278 = int_to_ptr.vmem [resolvable:$true] %s277
          %283 = dma.hbm_to_vmem [thread:$0]  %s276, 8192, %s278, %s264, 2048, 2048, 128
        $region36: #{tpu_custom_call.1} parent=27 // pred_fallthru
          _
        // Predicated region
        $region37: #{tpu_custom_call.1} parent=27 // pred_check
          %p284 = pneg %p111
        $region38: #{tpu_custom_call.1} parent=27 // pred_check_branch
          %286 = sbr.rel (%p284) target = $region40
        $region39: #{tpu_custom_call.1} parent=27 // pred_region
          %s287 = smul.u32 16, %s29
          %p288 = scmp.lt.s32.totalorder %s28, 1
          %s289 = scalar_select %p288, %s28, 1
          %p290 = scmp.lt.s32.totalorder %s287, 15
          %s291 = scalar_select %p290, %s287, 15
          %s292 = smul.addr %s289, 16
          %s293 = sadd.s32 %s291, %s292
          %s294 = scalar_lea.vmem %s2, %s293
          %s295 = smul.u32 16, %s29
        $region40: #{tpu_custom_call.1} parent=27 // pred_fallthru
          _
      $region28: #{tpu_custom_call.1} parent=5 // pred_fallthru
        _
      %p296 = scmp.le.s32.totalorder 1, %s21
      %p297 = scmp.lt.s32.totalorder %s21, 3
      %p298 = pnand %p296, %p297
      %p299 = pneg %p298
      // Predicated region
      $region41: #{tpu_custom_call.1} parent=5 // pred_check
        _
      $region42: #{tpu_custom_call.1} parent=5 // pred_check_branch
        %301 = sbr.rel (%p298) target = $region44
      $region43: #{tpu_custom_call.1} parent=5 // pred_region
        %s302 = ssub.s32 %s21, 1
        %s303 = sand.u32 %s48, 1
        %s304 = scalar_lea.sflag [#allocation3], %s303
        %s305 = sand.u32 %s48, 1
        %s306 = smul.addr %s305, 512
        %s307 = scalar_lea.vmem [#allocation2], %s306
        // Predicated region
        $region45: #{tpu_custom_call.1} parent=43 // pred_check
          %p308 = pneg %p61
        $region46: #{tpu_custom_call.1} parent=43 // pred_check_branch
          %310 = sbr.rel (%p308) target = $region48
        $region47: #{tpu_custom_call.1} parent=43 // pred_region
          %312 = dma.done %s304, 8192
        $region48: #{tpu_custom_call.1} parent=43 // pred_fallthru
          _
        %s313 = sand.u32 %s76, 1
        %s314 = scalar_lea.sflag [#allocation6], %s313
        %s315 = sand.u32 %s76, 1
        %s316 = smul.addr %s315, 512
        %s317 = scalar_lea.vmem [#allocation5], %s316
        // Predicated region
        $region49: #{tpu_custom_call.1} parent=43 // pred_check
          %p318 = pneg %p89
        $region50: #{tpu_custom_call.1} parent=43 // pred_check_branch
          %320 = sbr.rel (%p318) target = $region52
        $region51: #{tpu_custom_call.1} parent=43 // pred_region
          %322 = dma.done %s314, 8192
        $region52: #{tpu_custom_call.1} parent=43 // pred_fallthru
          _
        %s323 = sand.u32 %s48, 1
        %s324 = scalar_lea.sflag [#allocation3], %s323
        %s325 = sand.u32 %s48, 1
        %s326 = smul.addr %s325, 512
        %s327 = scalar_lea.vmem [#allocation2], %s326
        %p328 = pneg %p61
        %p329 = pneg %p58
        %s330 = sand.u32 %s76, 1
        %s331 = scalar_lea.sflag [#allocation6], %s330
        %s332 = sand.u32 %s76, 1
        %s333 = smul.addr %s332, 512
        %s334 = scalar_lea.vmem [#allocation5], %s333
        %p335 = pneg %p89
        %p336 = pneg %p86
        %s337 = smul.u32 16, %s31
        %p338 = scmp.lt.s32.totalorder %s30, 1
        %s339 = scalar_select %p338, %s30, 1
        %p340 = scmp.lt.s32.totalorder %s337, 15
        %s341 = scalar_select %p340, %s337, 15
        %s342 = smul.addr %s339, 16
        %s343 = sadd.s32 %s341, %s342
        %s344 = scalar_lea.vmem %s2, %s343
        %p345 = pneg %p117
        %p346 = pneg %p114
        %p347 = pneg %p138
        %p348 = pneg %p135
        %p349 = pneg %p159
        %p350 = pneg %p156
        %p351 = pneg %p180
        %p352 = pneg %p177
        %p353 = pneg %p208
        %p354 = pneg %p205
        %s355 = sand.u32 %s195, 1
        %s356 = scalar_lea.sflag [#allocation4], %s355
        %s357 = sand.u32 %s195, 1
        %s358 = smul.addr %s357, 512
        %s359 = scalar_lea.vmem [#allocation7], %s358
        %s360 = smul.u32 16, %s31
        %s361 = smul.u32 16, %s31
        %s362 = smul.u32 16, %s31
        %p363 = scmp.lt.s32.totalorder %s30, 1
        %s364 = scalar_select %p363, %s30, 1
        %p365 = scmp.lt.s32.totalorder %s362, 15
        %s366 = scalar_select %p365, %s362, 15
        %s367 = smul.addr %s364, 16
        %s368 = sadd.s32 %s366, %s367
        %s369 = scalar_lea.vmem %s2, %s368
        %s370 = smul.u32 16, %s31
        %s371 = smul.u32 16, %s31
        %v374 = vld [vmem:[%s3] sm:$0xff]
        %v375 = vld [vmem:[%s3 + $0x8] sm:$0xff]
        %v376 = vld [vmem:[%s3 + $0x10] sm:$0xff]
        %v377 = vld [vmem:[%s3 + $0x18] sm:$0xff]
        %v378 = vld [vmem:[%s307] sm:$0xff]
        %v379 = vld [vmem:[%s307 + $0x8] sm:$0xff]
        %v380 = vld [vmem:[%s307 + $0x10] sm:$0xff]
        %v381 = vld [vmem:[%s307 + $0x18] sm:$0xff]
        %v382 = vld [vmem:[%s307 + $0x20] sm:$0xff]
        %v383 = vld [vmem:[%s307 + $0x28] sm:$0xff]
        %v384 = vld [vmem:[%s307 + $0x30] sm:$0xff]
        %v385 = vld [vmem:[%s307 + $0x38] sm:$0xff]
        %v386 = vld [vmem:[%s307 + $0x40] sm:$0xff]
        %v387 = vld [vmem:[%s307 + $0x48] sm:$0xff]
        %v388 = vld [vmem:[%s307 + $0x50] sm:$0xff]
        %v389 = vld [vmem:[%s307 + $0x58] sm:$0xff]
        %v390 = vld [vmem:[%s307 + $0x60] sm:$0xff]
        %v391 = vld [vmem:[%s307 + $0x68] sm:$0xff]
        %v392 = vld [vmem:[%s307 + $0x70] sm:$0xff]
        %v393 = vld [vmem:[%s307 + $0x78] sm:$0xff]
        %v394 = vld [vmem:[%s307 + $0x80] sm:$0xff]
        %v395 = vld [vmem:[%s307 + $0x88] sm:$0xff]
        %v396 = vld [vmem:[%s307 + $0x90] sm:$0xff]
        %v397 = vld [vmem:[%s307 + $0x98] sm:$0xff]
        %v398 = vld [vmem:[%s307 + $0xa0] sm:$0xff]
        %v399 = vld [vmem:[%s307 + $0xa8] sm:$0xff]
        %v400 = vld [vmem:[%s307 + $0xb0] sm:$0xff]
        %v401 = vld [vmem:[%s307 + $0xb8] sm:$0xff]
        %v402 = vld [vmem:[%s307 + $0xc0] sm:$0xff]
        %v403 = vld [vmem:[%s307 + $0xc8] sm:$0xff]
        %v404 = vld [vmem:[%s307 + $0xd0] sm:$0xff]
        %v405 = vld [vmem:[%s307 + $0xd8] sm:$0xff]
        %v406 = vld [vmem:[%s307 + $0xe0] sm:$0xff]
        %v407 = vld [vmem:[%s307 + $0xe8] sm:$0xff]
        %v408 = vld [vmem:[%s307 + $0xf0] sm:$0xff]
        %v409 = vld [vmem:[%s307 + $0xf8] sm:$0xff]
        %v410 = vld [vmem:[%s307 + $0x100] sm:$0xff]
        %v411 = vld [vmem:[%s307 + $0x108] sm:$0xff]
        %v412 = vld [vmem:[%s307 + $0x110] sm:$0xff]
        %v413 = vld [vmem:[%s307 + $0x118] sm:$0xff]
        %v414 = vld [vmem:[%s307 + $0x120] sm:$0xff]
        %v415 = vld [vmem:[%s307 + $0x128] sm:$0xff]
        %v416 = vld [vmem:[%s307 + $0x130] sm:$0xff]
        %v417 = vld [vmem:[%s307 + $0x138] sm:$0xff]
        %v418 = vld [vmem:[%s307 + $0x140] sm:$0xff]
        %v419 = vld [vmem:[%s307 + $0x148] sm:$0xff]
        %v420 = vld [vmem:[%s307 + $0x150] sm:$0xff]
        %v421 = vld [vmem:[%s307 + $0x158] sm:$0xff]
        %v422 = vld [vmem:[%s307 + $0x160] sm:$0xff]
        %v423 = vld [vmem:[%s307 + $0x168] sm:$0xff]
        %v424 = vld [vmem:[%s307 + $0x170] sm:$0xff]
        %v425 = vld [vmem:[%s307 + $0x178] sm:$0xff]
        %v426 = vld [vmem:[%s307 + $0x180] sm:$0xff]
        %v427 = vld [vmem:[%s307 + $0x188] sm:$0xff]
        %v428 = vld [vmem:[%s307 + $0x190] sm:$0xff]
        %v429 = vld [vmem:[%s307 + $0x198] sm:$0xff]
        %v430 = vld [vmem:[%s307 + $0x1a0] sm:$0xff]
        %v431 = vld [vmem:[%s307 + $0x1a8] sm:$0xff]
        %v432 = vld [vmem:[%s307 + $0x1b0] sm:$0xff]
        %v433 = vld [vmem:[%s307 + $0x1b8] sm:$0xff]
        %v434 = vld [vmem:[%s307 + $0x1c0] sm:$0xff]
        %v435 = vld [vmem:[%s307 + $0x1c8] sm:$0xff]
        %v436 = vld [vmem:[%s307 + $0x1d0] sm:$0xff]
        %v437 = vld [vmem:[%s307 + $0x1d8] sm:$0xff]
        %v438 = vld [vmem:[%s307 + $0x1e0] sm:$0xff]
        %v439 = vld [vmem:[%s307 + $0x1e8] sm:$0xff]
        %v440 = vld [vmem:[%s307 + $0x1f0] sm:$0xff]
        %v441 = vld [vmem:[%s307 + $0x1f8] sm:$0xff]
        %vm442 = vcmask 261120
        %v444 = vsel %vm442, %v374, 0
        %v447 = vsel %vm442, %v375, 0
        %v450 = vsel %vm442, %v376, 0
        %v453 = vsel %vm442, %v377, 0
        %455 = vmatpush.msra.mxu0 0.0
        %456 = vmatpush.msra.mxu0 0.0
        %457 = vmatpush.msra.mxu0 0.0
        %458 = vmatpush.msra.mxu0 0.0
        %459 = vmatpush.msra.mxu0 0.0
        %460 = vmatpush.msra.mxu0 0.0
        %461 = vmatpush.msra.mxu0 0.0
        %462 = vmatpush.msra.mxu0 0.0
        %463 = vmatpush.msra.mxu0 0.0
        %464 = vmatpush.msra.mxu0 0.0
        %465 = vmatpush.msra.mxu0 0.0
        %466 = vmatpush.msra.mxu0 0.0
        %v467 = vand.u32 %v426, 4294901760
        %468 = vmatpush.msra.mxu0 %v467
        %v469 = vand.u32 %v410, 4294901760
        %470 = vmatpush.msra.mxu0 %v469
        %v471 = vand.u32 %v394, 4294901760
        %472 = vmatpush.msra.mxu0 %v471
        %v473 = vand.u32 %v378, 4294901760
        %474 = vmatpush.msra.mxu0 %v473
        %v475 = vand.u32 %v444, 4294901760
        %v476 = vsub.f32 %v444, %v475
        %v477 = vand.u32 %v476, 4294901760
        %v478 = vsub.f32 %v476, %v477
        %v479 = vand.u32 %v478, 4294901760
        %480 = vmatmul.f32.gmra.mxu0 %v479
        %v481 = vpop.f32.mrf.mxu0
        %v482 = vadd.f32 0.0, %v481
        %v483 = vand.u32 %v447, 4294901760
        %v484 = vsub.f32 %v447, %v483
        %v485 = vand.u32 %v484, 4294901760
        %v486 = vsub.f32 %v484, %v485
        %v487 = vand.u32 %v486, 4294901760
        %488 = vmatmul.f32.gmra.mxu0 %v487
        %v489 = vpop.f32.mrf.mxu0
        %v490 = vadd.f32 0.0, %v489
        %v491 = vand.u32 %v450, 4294901760
        %v492 = vsub.f32 %v450, %v491
        %v493 = vand.u32 %v492, 4294901760
        %v494 = vsub.f32 %v492, %v493
        %v495 = vand.u32 %v494, 4294901760
        %496 = vmatmul.f32.gmra.mxu0 %v495
        %v497 = vpop.f32.mrf.mxu0
        %v498 = vadd.f32 0.0, %v497
        %v499 = vand.u32 %v453, 4294901760
        %v500 = vsub.f32 %v453, %v499
        %v501 = vand.u32 %v500, 4294901760
        %v502 = vsub.f32 %v500, %v501
        %v503 = vand.u32 %v502, 4294901760
        %504 = vmatmul.f32.gmra.mxu0 %v503
        %v505 = vpop.f32.mrf.mxu0
        %v506 = vadd.f32 0.0, %v505
        %507 = vdwg.mxu0
        %508 = vmatpush.msra.mxu0 0.0
        %509 = vmatpush.msra.mxu0 0.0
        %510 = vmatpush.msra.mxu0 0.0
        %511 = vmatpush.msra.mxu0 0.0
        %512 = vmatpush.msra.mxu0 0.0
        %513 = vmatpush.msra.mxu0 0.0
        %514 = vmatpush.msra.mxu0 0.0
        %515 = vmatpush.msra.mxu0 0.0
        %516 = vmatpush.msra.mxu0 0.0
        %517 = vmatpush.msra.mxu0 0.0
        %518 = vmatpush.msra.mxu0 0.0
        %519 = vmatpush.msra.mxu0 0.0
        %v520 = vand.u32 %v426, 4294901760
        %v521 = vsub.f32 %v426, %v520
        %v522 = vand.u32 %v521, 4294901760
        %v523 = vsub.f32 %v521, %v522
        %v524 = vand.u32 %v523, 4294901760
        %525 = vmatpush.msra.mxu0 %v524
        %v526 = vand.u32 %v410, 4294901760
        %v527 = vsub.f32 %v410, %v526
        %v528 = vand.u32 %v527, 4294901760
        %v529 = vsub.f32 %v527, %v528
        %v530 = vand.u32 %v529, 4294901760
        %531 = vmatpush.msra.mxu0 %v530
        %v532 = vand.u32 %v394, 4294901760
        %v533 = vsub.f32 %v394, %v532
        %v534 = vand.u32 %v533, 4294901760
        %v535 = vsub.f32 %v533, %v534
        %v536 = vand.u32 %v535, 4294901760
        %537 = vmatpush.msra.mxu0 %v536
        %v538 = vand.u32 %v378, 4294901760
        %v539 = vsub.f32 %v378, %v538
        %v540 = vand.u32 %v539, 4294901760
        %v541 = vsub.f32 %v539, %v540
        %v542 = vand.u32 %v541, 4294901760
        %543 = vmatpush.msra.mxu0 %v542
        %v544 = vand.u32 %v444, 4294901760
        %545 = vmatmul.f32.gmra.mxu0 %v544
        %v546 = vpop.f32.mrf.mxu0
        %v547 = vadd.f32 %v482, %v546
        %v548 = vand.u32 %v447, 4294901760
        %549 = vmatmul.f32.gmra.mxu0 %v548
        %v550 = vpop.f32.mrf.mxu0
        %v551 = vadd.f32 %v490, %v550
        %v552 = vand.u32 %v450, 4294901760
        %553 = vmatmul.f32.gmra.mxu0 %v552
        %v554 = vpop.f32.mrf.mxu0
        %v555 = vadd.f32 %v498, %v554
        %v556 = vand.u32 %v453, 4294901760
        %557 = vmatmul.f32.gmra.mxu0 %v556
        %v558 = vpop.f32.mrf.mxu0
        %v559 = vadd.f32 %v506, %v558
        %560 = vdwg.mxu0
        %561 = vmatpush.msra.mxu0 0.0
        %562 = vmatpush.msra.mxu0 0.0
        %563 = vmatpush.msra.mxu0 0.0
        %564 = vmatpush.msra.mxu0 0.0
        %565 = vmatpush.msra.mxu0 0.0
        %566 = vmatpush.msra.mxu0 0.0
        %567 = vmatpush.msra.mxu0 0.0
        %568 = vmatpush.msra.mxu0 0.0
        %569 = vmatpush.msra.mxu0 0.0
        %570 = vmatpush.msra.mxu0 0.0
        %571 = vmatpush.msra.mxu0 0.0
        %572 = vmatpush.msra.mxu0 0.0
        %v573 = vand.u32 %v426, 4294901760
        %v574 = vsub.f32 %v426, %v573
        %575 = vmatpush.msra.mxu0 %v574
        %v576 = vand.u32 %v410, 4294901760
        %v577 = vsub.f32 %v410, %v576
        %578 = vmatpush.msra.mxu0 %v577
        %v579 = vand.u32 %v394, 4294901760
        %v580 = vsub.f32 %v394, %v579
        %581 = vmatpush.msra.mxu0 %v580
        %v582 = vand.u32 %v378, 4294901760
        %v583 = vsub.f32 %v378, %v582
        %584 = vmatpush.msra.mxu0 %v583
        %v585 = vand.u32 %v444, 4294901760
        %v586 = vsub.f32 %v444, %v585
        %587 = vmatmul.f32.gmra.mxu0 %v586
        %v588 = vpop.f32.mrf.mxu0
        %v589 = vadd.f32 %v547, %v588
        %v590 = vand.u32 %v447, 4294901760
        %v591 = vsub.f32 %v447, %v590
        %592 = vmatmul.f32.gmra.mxu0 %v591
        %v593 = vpop.f32.mrf.mxu0
        %v594 = vadd.f32 %v551, %v593
        %v595 = vand.u32 %v450, 4294901760
        %v596 = vsub.f32 %v450, %v595
        %597 = vmatmul.f32.gmra.mxu0 %v596
        %v598 = vpop.f32.mrf.mxu0
        %v599 = vadd.f32 %v555, %v598
        %v600 = vand.u32 %v453, 4294901760
        %v601 = vsub.f32 %v453, %v600
        %602 = vmatmul.f32.gmra.mxu0 %v601
        %v603 = vpop.f32.mrf.mxu0
        %v604 = vadd.f32 %v559, %v603
        %605 = vdwg.mxu0
        %606 = vmatpush.msra.mxu0 0.0
        %607 = vmatpush.msra.mxu0 0.0
        %608 = vmatpush.msra.mxu0 0.0
        %609 = vmatpush.msra.mxu0 0.0
        %610 = vmatpush.msra.mxu0 0.0
        %611 = vmatpush.msra.mxu0 0.0
        %612 = vmatpush.msra.mxu0 0.0
        %613 = vmatpush.msra.mxu0 0.0
        %614 = vmatpush.msra.mxu0 0.0
        %615 = vmatpush.msra.mxu0 0.0
        %616 = vmatpush.msra.mxu0 0.0
        %617 = vmatpush.msra.mxu0 0.0
        %v618 = vand.u32 %v426, 4294901760
        %619 = vmatpush.msra.mxu0 %v618
        %v620 = vand.u32 %v410, 4294901760
        %621 = vmatpush.msra.mxu0 %v620
        %v622 = vand.u32 %v394, 4294901760
        %623 = vmatpush.msra.mxu0 %v622
        %v624 = vand.u32 %v378, 4294901760
        %625 = vmatpush.msra.mxu0 %v624
        %v626 = vand.u32 %v444, 4294901760
        %v627 = vsub.f32 %v444, %v626
        %v628 = vand.u32 %v627, 4294901760
        %629 = vmatmul.f32.gmra.mxu0 %v628
        %v630 = vpop.f32.mrf.mxu0
        %v631 = vadd.f32 %v589, %v630
        %v632 = vand.u32 %v447, 4294901760
        %v633 = vsub.f32 %v447, %v632
        %v634 = vand.u32 %v633, 4294901760
        %635 = vmatmul.f32.gmra.mxu0 %v634
        %v636 = vpop.f32.mrf.mxu0
        %v637 = vadd.f32 %v594, %v636
        %v638 = vand.u32 %v450, 4294901760
        %v639 = vsub.f32 %v450, %v638
        %v640 = vand.u32 %v639, 4294901760
        %641 = vmatmul.f32.gmra.mxu0 %v640
        %v642 = vpop.f32.mrf.mxu0
        %v643 = vadd.f32 %v599, %v642
        %v644 = vand.u32 %v453, 4294901760
        %v645 = vsub.f32 %v453, %v644
        %v646 = vand.u32 %v645, 4294901760
        %647 = vmatmul.f32.gmra.mxu0 %v646
        %v648 = vpop.f32.mrf.mxu0
        %v649 = vadd.f32 %v604, %v648
        %650 = vdwg.mxu0
        %651 = vmatpush.msra.mxu0 0.0
        %652 = vmatpush.msra.mxu0 0.0
        %653 = vmatpush.msra.mxu0 0.0
        %654 = vmatpush.msra.mxu0 0.0
        %655 = vmatpush.msra.mxu0 0.0
        %656 = vmatpush.msra.mxu0 0.0
        %657 = vmatpush.msra.mxu0 0.0
        %658 = vmatpush.msra.mxu0 0.0
        %659 = vmatpush.msra.mxu0 0.0
        %660 = vmatpush.msra.mxu0 0.0
        %661 = vmatpush.msra.mxu0 0.0
        %662 = vmatpush.msra.mxu0 0.0
        %v663 = vand.u32 %v426, 4294901760
        %v664 = vsub.f32 %v426, %v663
        %v665 = vand.u32 %v664, 4294901760
        %666 = vmatpush.msra.mxu0 %v665
        %v667 = vand.u32 %v410, 4294901760
        %v668 = vsub.f32 %v410, %v667
        %v669 = vand.u32 %v668, 4294901760
        %670 = vmatpush.msra.mxu0 %v669
        %v671 = vand.u32 %v394, 4294901760
        %v672 = vsub.f32 %v394, %v671
        %v673 = vand.u32 %v672, 4294901760
        %674 = vmatpush.msra.mxu0 %v673
        %v675 = vand.u32 %v378, 4294901760
        %v676 = vsub.f32 %v378, %v675
        %v677 = vand.u32 %v676, 4294901760
        %678 = vmatpush.msra.mxu0 %v677
        %v679 = vand.u32 %v444, 4294901760
        %680 = vmatmul.f32.gmra.mxu0 %v679
        %v681 = vpop.f32.mrf.mxu0
        %v682 = vadd.f32 %v631, %v681
        %v683 = vand.u32 %v447, 4294901760
        %684 = vmatmul.f32.gmra.mxu0 %v683
        %v685 = vpop.f32.mrf.mxu0
        %v686 = vadd.f32 %v637, %v685
        %v687 = vand.u32 %v450, 4294901760
        %688 = vmatmul.f32.gmra.mxu0 %v687
        %v689 = vpop.f32.mrf.mxu0
        %v690 = vadd.f32 %v643, %v689
        %v691 = vand.u32 %v453, 4294901760
        %692 = vmatmul.f32.gmra.mxu0 %v691
        %v693 = vpop.f32.mrf.mxu0
        %v694 = vadd.f32 %v649, %v693
        %695 = vdwg.mxu0
        %696 = vmatpush.msra.mxu0 0.0
        %697 = vmatpush.msra.mxu0 0.0
        %698 = vmatpush.msra.mxu0 0.0
        %699 = vmatpush.msra.mxu0 0.0
        %700 = vmatpush.msra.mxu0 0.0
        %701 = vmatpush.msra.mxu0 0.0
        %702 = vmatpush.msra.mxu0 0.0
        %703 = vmatpush.msra.mxu0 0.0
        %704 = vmatpush.msra.mxu0 0.0
        %705 = vmatpush.msra.mxu0 0.0
        %706 = vmatpush.msra.mxu0 0.0
        %707 = vmatpush.msra.mxu0 0.0
        %v708 = vand.u32 %v426, 4294901760
        %709 = vmatpush.msra.mxu0 %v708
        %v710 = vand.u32 %v410, 4294901760
        %711 = vmatpush.msra.mxu0 %v710
        %v712 = vand.u32 %v394, 4294901760
        %713 = vmatpush.msra.mxu0 %v712
        %v714 = vand.u32 %v378, 4294901760
        %715 = vmatpush.msra.mxu0 %v714
        %v716 = vand.u32 %v444, 4294901760
        %717 = vmatmul.f32.gmra.mxu0 %v716
        %v718 = vpop.f32.mrf.mxu0
        %v719 = vadd.f32 %v682, %v718
        %v720 = vand.u32 %v447, 4294901760
        %721 = vmatmul.f32.gmra.mxu0 %v720
        %v722 = vpop.f32.mrf.mxu0
        %v723 = vadd.f32 %v686, %v722
        %v724 = vand.u32 %v450, 4294901760
        %725 = vmatmul.f32.gmra.mxu0 %v724
        %v726 = vpop.f32.mrf.mxu0
        %v727 = vadd.f32 %v690, %v726
        %v728 = vand.u32 %v453, 4294901760
        %729 = vmatmul.f32.gmra.mxu0 %v728
        %v730 = vpop.f32.mrf.mxu0
        %v731 = vadd.f32 %v694, %v730
        %732 = vdwg.mxu0
        %733 = vmatpush.msra.mxu0 0.0
        %734 = vmatpush.msra.mxu0 0.0
        %735 = vmatpush.msra.mxu0 0.0
        %736 = vmatpush.msra.mxu0 0.0
        %737 = vmatpush.msra.mxu0 0.0
        %738 = vmatpush.msra.mxu0 0.0
        %739 = vmatpush.msra.mxu0 0.0
        %740 = vmatpush.msra.mxu0 0.0
        %741 = vmatpush.msra.mxu0 0.0
        %742 = vmatpush.msra.mxu0 0.0
        %743 = vmatpush.msra.mxu0 0.0
        %744 = vmatpush.msra.mxu0 0.0
        %v745 = vand.u32 %v427, 4294901760
        %746 = vmatpush.msra.mxu0 %v745
        %v747 = vand.u32 %v411, 4294901760
        %748 = vmatpush.msra.mxu0 %v747
        %v749 = vand.u32 %v395, 4294901760
        %750 = vmatpush.msra.mxu0 %v749
        %v751 = vand.u32 %v379, 4294901760
        %752 = vmatpush.msra.mxu0 %v751
        %v753 = vand.u32 %v444, 4294901760
        %v754 = vsub.f32 %v444, %v753
        %v755 = vand.u32 %v754, 4294901760
        %v756 = vsub.f32 %v754, %v755
        %v757 = vand.u32 %v756, 4294901760
        %758 = vmatmul.f32.gmra.mxu0 %v757
        %v759 = vpop.f32.mrf.mxu0
        %v760 = vadd.f32 0.0, %v759
        %v761 = vand.u32 %v447, 4294901760
        %v762 = vsub.f32 %v447, %v761
        %v763 = vand.u32 %v762, 4294901760
        %v764 = vsub.f32 %v762, %v763
        %v765 = vand.u32 %v764, 4294901760
        %766 = vmatmul.f32.gmra.mxu0 %v765
        %v767 = vpop.f32.mrf.mxu0
        %v768 = vadd.f32 0.0, %v767
        %v769 = vand.u32 %v450, 4294901760
        %v770 = vsub.f32 %v450, %v769
        %v771 = vand.u32 %v770, 4294901760
        %v772 = vsub.f32 %v770, %v771
        %v773 = vand.u32 %v772, 4294901760
        %774 = vmatmul.f32.gmra.mxu0 %v773
        %v775 = vpop.f32.mrf.mxu0
        %v776 = vadd.f32 0.0, %v775
        %v777 = vand.u32 %v453, 4294901760
        %v778 = vsub.f32 %v453, %v777
        %v779 = vand.u32 %v778, 4294901760
        %v780 = vsub.f32 %v778, %v779
        %v781 = vand.u32 %v780, 4294901760
        %782 = vmatmul.f32.gmra.mxu0 %v781
        %v783 = vpop.f32.mrf.mxu0
        %v784 = vadd.f32 0.0, %v783
        %785 = vdwg.mxu0
        %786 = vmatpush.msra.mxu0 0.0
        %787 = vmatpush.msra.mxu0 0.0
        %788 = vmatpush.msra.mxu0 0.0
        %789 = vmatpush.msra.mxu0 0.0
        %790 = vmatpush.msra.mxu0 0.0
        %791 = vmatpush.msra.mxu0 0.0
        %792 = vmatpush.msra.mxu0 0.0
        %793 = vmatpush.msra.mxu0 0.0
        %794 = vmatpush.msra.mxu0 0.0
        %795 = vmatpush.msra.mxu0 0.0
        %796 = vmatpush.msra.mxu0 0.0
        %797 = vmatpush.msra.mxu0 0.0
        %v798 = vand.u32 %v427, 4294901760
        %v799 = vsub.f32 %v427, %v798
        %v800 = vand.u32 %v799, 4294901760
        %v801 = vsub.f32 %v799, %v800
        %v802 = vand.u32 %v801, 4294901760
        %803 = vmatpush.msra.mxu0 %v802
        %v804 = vand.u32 %v411, 4294901760
        %v805 = vsub.f32 %v411, %v804
        %v806 = vand.u32 %v805, 4294901760
        %v807 = vsub.f32 %v805, %v806
        %v808 = vand.u32 %v807, 4294901760
        %809 = vmatpush.msra.mxu0 %v808
        %v810 = vand.u32 %v395, 4294901760
        %v811 = vsub.f32 %v395, %v810
        %v812 = vand.u32 %v811, 4294901760
        %v813 = vsub.f32 %v811, %v812
        %v814 = vand.u32 %v813, 4294901760
        %815 = vmatpush.msra.mxu0 %v814
        %v816 = vand.u32 %v379, 4294901760
        %v817 = vsub.f32 %v379, %v816
        %v818 = vand.u32 %v817, 4294901760
        %v819 = vsub.f32 %v817, %v818
        %v820 = vand.u32 %v819, 4294901760
        %821 = vmatpush.msra.mxu0 %v820
        %v822 = vand.u32 %v444, 4294901760
        %823 = vmatmul.f32.gmra.mxu0 %v822
        %v824 = vpop.f32.mrf.mxu0
        %v825 = vadd.f32 %v760, %v824
        %v826 = vand.u32 %v447, 4294901760
        %827 = vmatmul.f32.gmra.mxu0 %v826
        %v828 = vpop.f32.mrf.mxu0
        %v829 = vadd.f32 %v768, %v828
        %v830 = vand.u32 %v450, 4294901760
        %831 = vmatmul.f32.gmra.mxu0 %v830
        %v832 = vpop.f32.mrf.mxu0
        %v833 = vadd.f32 %v776, %v832
        %v834 = vand.u32 %v453, 4294901760
        %835 = vmatmul.f32.gmra.mxu0 %v834
        %v836 = vpop.f32.mrf.mxu0
        %v837 = vadd.f32 %v784, %v836
        %838 = vdwg.mxu0
        %839 = vmatpush.msra.mxu0 0.0
        %840 = vmatpush.msra.mxu0 0.0
        %841 = vmatpush.msra.mxu0 0.0
        %842 = vmatpush.msra.mxu0 0.0
        %843 = vmatpush.msra.mxu0 0.0
        %844 = vmatpush.msra.mxu0 0.0
        %845 = vmatpush.msra.mxu0 0.0
        %846 = vmatpush.msra.mxu0 0.0
        %847 = vmatpush.msra.mxu0 0.0
        %848 = vmatpush.msra.mxu0 0.0
        %849 = vmatpush.msra.mxu0 0.0
        %850 = vmatpush.msra.mxu0 0.0
        %v851 = vand.u32 %v427, 4294901760
        %v852 = vsub.f32 %v427, %v851
        %853 = vmatpush.msra.mxu0 %v852
        %v854 = vand.u32 %v411, 4294901760
        %v855 = vsub.f32 %v411, %v854
        %856 = vmatpush.msra.mxu0 %v855
        %v857 = vand.u32 %v395, 4294901760
        %v858 = vsub.f32 %v395, %v857
        %859 = vmatpush.msra.mxu0 %v858
        %v860 = vand.u32 %v379, 4294901760
        %v861 = vsub.f32 %v379, %v860
        %862 = vmatpush.msra.mxu0 %v861
        %v863 = vand.u32 %v444, 4294901760
        %v864 = vsub.f32 %v444, %v863
        %865 = vmatmul.f32.gmra.mxu0 %v864
        %v866 = vpop.f32.mrf.mxu0
        %v867 = vadd.f32 %v825, %v866
        %v868 = vand.u32 %v447, 4294901760
        %v869 = vsub.f32 %v447, %v868
        %870 = vmatmul.f32.gmra.mxu0 %v869
        %v871 = vpop.f32.mrf.mxu0
        %v872 = vadd.f32 %v829, %v871
        %v873 = vand.u32 %v450, 4294901760
        %v874 = vsub.f32 %v450, %v873
        %875 = vmatmul.f32.gmra.mxu0 %v874
        %v876 = vpop.f32.mrf.mxu0
        %v877 = vadd.f32 %v833, %v876
        %v878 = vand.u32 %v453, 4294901760
        %v879 = vsub.f32 %v453, %v878
        %880 = vmatmul.f32.gmra.mxu0 %v879
        %v881 = vpop.f32.mrf.mxu0
        %v882 = vadd.f32 %v837, %v881
        %883 = vdwg.mxu0
        %884 = vmatpush.msra.mxu0 0.0
        %885 = vmatpush.msra.mxu0 0.0
        %886 = vmatpush.msra.mxu0 0.0
        %887 = vmatpush.msra.mxu0 0.0
        %888 = vmatpush.msra.mxu0 0.0
        %889 = vmatpush.msra.mxu0 0.0
        %890 = vmatpush.msra.mxu0 0.0
        %891 = vmatpush.msra.mxu0 0.0
        %892 = vmatpush.msra.mxu0 0.0
        %893 = vmatpush.msra.mxu0 0.0
        %894 = vmatpush.msra.mxu0 0.0
        %895 = vmatpush.msra.mxu0 0.0
        %v896 = vand.u32 %v427, 4294901760
        %897 = vmatpush.msra.mxu0 %v896
        %v898 = vand.u32 %v411, 4294901760
        %899 = vmatpush.msra.mxu0 %v898
        %v900 = vand.u32 %v395, 4294901760
        %901 = vmatpush.msra.mxu0 %v900
        %v902 = vand.u32 %v379, 4294901760
        %903 = vmatpush.msra.mxu0 %v902
        %v904 = vand.u32 %v444, 4294901760
        %v905 = vsub.f32 %v444, %v904
        %v906 = vand.u32 %v905, 4294901760
        %907 = vmatmul.f32.gmra.mxu0 %v906
        %v908 = vpop.f32.mrf.mxu0
        %v909 = vadd.f32 %v867, %v908
        %v910 = vand.u32 %v447, 4294901760
        %v911 = vsub.f32 %v447, %v910
        %v912 = vand.u32 %v911, 4294901760
        %913 = vmatmul.f32.gmra.mxu0 %v912
        %v914 = vpop.f32.mrf.mxu0
        %v915 = vadd.f32 %v872, %v914
        %v916 = vand.u32 %v450, 4294901760
        %v917 = vsub.f32 %v450, %v916
        %v918 = vand.u32 %v917, 4294901760
        %919 = vmatmul.f32.gmra.mxu0 %v918
        %v920 = vpop.f32.mrf.mxu0
        %v921 = vadd.f32 %v877, %v920
        %v922 = vand.u32 %v453, 4294901760
        %v923 = vsub.f32 %v453, %v922
        %v924 = vand.u32 %v923, 4294901760
        %925 = vmatmul.f32.gmra.mxu0 %v924
        %v926 = vpop.f32.mrf.mxu0
        %v927 = vadd.f32 %v882, %v926
        %928 = vdwg.mxu0
        %929 = vmatpush.msra.mxu0 0.0
        %930 = vmatpush.msra.mxu0 0.0
        %931 = vmatpush.msra.mxu0 0.0
        %932 = vmatpush.msra.mxu0 0.0
        %933 = vmatpush.msra.mxu0 0.0
        %934 = vmatpush.msra.mxu0 0.0
        %935 = vmatpush.msra.mxu0 0.0
        %936 = vmatpush.msra.mxu0 0.0
        %937 = vmatpush.msra.mxu0 0.0
        %938 = vmatpush.msra.mxu0 0.0
        %939 = vmatpush.msra.mxu0 0.0
        %940 = vmatpush.msra.mxu0 0.0
        %v941 = vand.u32 %v427, 4294901760
        %v942 = vsub.f32 %v427, %v941
        %v943 = vand.u32 %v942, 4294901760
        %944 = vmatpush.msra.mxu0 %v943
        %v945 = vand.u32 %v411, 4294901760
        %v946 = vsub.f32 %v411, %v945
        %v947 = vand.u32 %v946, 4294901760
        %948 = vmatpush.msra.mxu0 %v947
        %v949 = vand.u32 %v395, 4294901760
        %v950 = vsub.f32 %v395, %v949
        %v951 = vand.u32 %v950, 4294901760
        %952 = vmatpush.msra.mxu0 %v951
        %v953 = vand.u32 %v379, 4294901760
        %v954 = vsub.f32 %v379, %v953
        %v955 = vand.u32 %v954, 4294901760
        %956 = vmatpush.msra.mxu0 %v955
        %v957 = vand.u32 %v444, 4294901760
        %958 = vmatmul.f32.gmra.mxu0 %v957
        %v959 = vpop.f32.mrf.mxu0
        %v960 = vadd.f32 %v909, %v959
        %v961 = vand.u32 %v447, 4294901760
        %962 = vmatmul.f32.gmra.mxu0 %v961
        %v963 = vpop.f32.mrf.mxu0
        %v964 = vadd.f32 %v915, %v963
        %v965 = vand.u32 %v450, 4294901760
        %966 = vmatmul.f32.gmra.mxu0 %v965
        %v967 = vpop.f32.mrf.mxu0
        %v968 = vadd.f32 %v921, %v967
        %v969 = vand.u32 %v453, 4294901760
        %970 = vmatmul.f32.gmra.mxu0 %v969
        %v971 = vpop.f32.mrf.mxu0
        %v972 = vadd.f32 %v927, %v971
        %973 = vdwg.mxu0
        %974 = vmatpush.msra.mxu0 0.0
        %975 = vmatpush.msra.mxu0 0.0
        %976 = vmatpush.msra.mxu0 0.0
        %977 = vmatpush.msra.mxu0 0.0
        %978 = vmatpush.msra.mxu0 0.0
        %979 = vmatpush.msra.mxu0 0.0
        %980 = vmatpush.msra.mxu0 0.0
        %981 = vmatpush.msra.mxu0 0.0
        %982 = vmatpush.msra.mxu0 0.0
        %983 = vmatpush.msra.mxu0 0.0
        %984 = vmatpush.msra.mxu0 0.0
        %985 = vmatpush.msra.mxu0 0.0
        %v986 = vand.u32 %v427, 4294901760
        %987 = vmatpush.msra.mxu0 %v986
        %v988 = vand.u32 %v411, 4294901760
        %989 = vmatpush.msra.mxu0 %v988
        %v990 = vand.u32 %v395, 4294901760
        %991 = vmatpush.msra.mxu0 %v990
        %v992 = vand.u32 %v379, 4294901760
        %993 = vmatpush.msra.mxu0 %v992
        %v994 = vand.u32 %v444, 4294901760
        %995 = vmatmul.f32.gmra.mxu0 %v994
        %v996 = vpop.f32.mrf.mxu0
        %v997 = vadd.f32 %v960, %v996
        %v998 = vand.u32 %v447, 4294901760
        %999 = vmatmul.f32.gmra.mxu0 %v998
        %v1000 = vpop.f32.mrf.mxu0
        %v1001 = vadd.f32 %v964, %v1000
        %v1002 = vand.u32 %v450, 4294901760
        %1003 = vmatmul.f32.gmra.mxu0 %v1002
        %v1004 = vpop.f32.mrf.mxu0
        %v1005 = vadd.f32 %v968, %v1004
        %v1006 = vand.u32 %v453, 4294901760
        %1007 = vmatmul.f32.gmra.mxu0 %v1006
        %v1008 = vpop.f32.mrf.mxu0
        %v1009 = vadd.f32 %v972, %v1008
        %1010 = vdwg.mxu0
        %1011 = vmatpush.msra.mxu0 0.0
        %1012 = vmatpush.msra.mxu0 0.0
        %1013 = vmatpush.msra.mxu0 0.0
        %1014 = vmatpush.msra.mxu0 0.0
        %1015 = vmatpush.msra.mxu0 0.0
        %1016 = vmatpush.msra.mxu0 0.0
        %1017 = vmatpush.msra.mxu0 0.0
        %1018 = vmatpush.msra.mxu0 0.0
        %1019 = vmatpush.msra.mxu0 0.0
        %1020 = vmatpush.msra.mxu0 0.0
        %1021 = vmatpush.msra.mxu0 0.0
        %1022 = vmatpush.msra.mxu0 0.0
        %v1023 = vand.u32 %v428, 4294901760
        %1024 = vmatpush.msra.mxu0 %v1023
        %v1025 = vand.u32 %v412, 4294901760
        %1026 = vmatpush.msra.mxu0 %v1025
        %v1027 = vand.u32 %v396, 4294901760
        %1028 = vmatpush.msra.mxu0 %v1027
        %v1029 = vand.u32 %v380, 4294901760
        %1030 = vmatpush.msra.mxu0 %v1029
        %v1031 = vand.u32 %v444, 4294901760
        %v1032 = vsub.f32 %v444, %v1031
        %v1033 = vand.u32 %v1032, 4294901760
        %v1034 = vsub.f32 %v1032, %v1033
        %v1035 = vand.u32 %v1034, 4294901760
        %1036 = vmatmul.f32.gmra.mxu0 %v1035
        %v1037 = vpop.f32.mrf.mxu0
        %v1038 = vadd.f32 0.0, %v1037
        %v1039 = vand.u32 %v447, 4294901760
        %v1040 = vsub.f32 %v447, %v1039
        %v1041 = vand.u32 %v1040, 4294901760
        %v1042 = vsub.f32 %v1040, %v1041
        %v1043 = vand.u32 %v1042, 4294901760
        %1044 = vmatmul.f32.gmra.mxu0 %v1043
        %v1045 = vpop.f32.mrf.mxu0
        %v1046 = vadd.f32 0.0, %v1045
        %v1047 = vand.u32 %v450, 4294901760
        %v1048 = vsub.f32 %v450, %v1047
        %v1049 = vand.u32 %v1048, 4294901760
        %v1050 = vsub.f32 %v1048, %v1049
        %v1051 = vand.u32 %v1050, 4294901760
        %1052 = vmatmul.f32.gmra.mxu0 %v1051
        %v1053 = vpop.f32.mrf.mxu0
        %v1054 = vadd.f32 0.0, %v1053
        %v1055 = vand.u32 %v453, 4294901760
        %v1056 = vsub.f32 %v453, %v1055
        %v1057 = vand.u32 %v1056, 4294901760
        %v1058 = vsub.f32 %v1056, %v1057
        %v1059 = vand.u32 %v1058, 4294901760
        %1060 = vmatmul.f32.gmra.mxu0 %v1059
        %v1061 = vpop.f32.mrf.mxu0
        %v1062 = vadd.f32 0.0, %v1061
        %1063 = vdwg.mxu0
        %1064 = vmatpush.msra.mxu0 0.0
        %1065 = vmatpush.msra.mxu0 0.0
        %1066 = vmatpush.msra.mxu0 0.0
        %1067 = vmatpush.msra.mxu0 0.0
        %1068 = vmatpush.msra.mxu0 0.0
        %1069 = vmatpush.msra.mxu0 0.0
        %1070 = vmatpush.msra.mxu0 0.0
        %1071 = vmatpush.msra.mxu0 0.0
        %1072 = vmatpush.msra.mxu0 0.0
        %1073 = vmatpush.msra.mxu0 0.0
        %1074 = vmatpush.msra.mxu0 0.0
        %1075 = vmatpush.msra.mxu0 0.0
        %v1076 = vand.u32 %v428, 4294901760
        %v1077 = vsub.f32 %v428, %v1076
        %v1078 = vand.u32 %v1077, 4294901760
        %v1079 = vsub.f32 %v1077, %v1078
        %v1080 = vand.u32 %v1079, 4294901760
        %1081 = vmatpush.msra.mxu0 %v1080
        %v1082 = vand.u32 %v412, 4294901760
        %v1083 = vsub.f32 %v412, %v1082
        %v1084 = vand.u32 %v1083, 4294901760
        %v1085 = vsub.f32 %v1083, %v1084
        %v1086 = vand.u32 %v1085, 4294901760
        %1087 = vmatpush.msra.mxu0 %v1086
        %v1088 = vand.u32 %v396, 4294901760
        %v1089 = vsub.f32 %v396, %v1088
        %v1090 = vand.u32 %v1089, 4294901760
        %v1091 = vsub.f32 %v1089, %v1090
        %v1092 = vand.u32 %v1091, 4294901760
        %1093 = vmatpush.msra.mxu0 %v1092
        %v1094 = vand.u32 %v380, 4294901760
        %v1095 = vsub.f32 %v380, %v1094
        %v1096 = vand.u32 %v1095, 4294901760
        %v1097 = vsub.f32 %v1095, %v1096
        %v1098 = vand.u32 %v1097, 4294901760
        %1099 = vmatpush.msra.mxu0 %v1098
        %v1100 = vand.u32 %v444, 4294901760
        %1101 = vmatmul.f32.gmra.mxu0 %v1100
        %v1102 = vpop.f32.mrf.mxu0
        %v1103 = vadd.f32 %v1038, %v1102
        %v1104 = vand.u32 %v447, 4294901760
        %1105 = vmatmul.f32.gmra.mxu0 %v1104
        %v1106 = vpop.f32.mrf.mxu0
        %v1107 = vadd.f32 %v1046, %v1106
        %v1108 = vand.u32 %v450, 4294901760
        %1109 = vmatmul.f32.gmra.mxu0 %v1108
        %v1110 = vpop.f32.mrf.mxu0
        %v1111 = vadd.f32 %v1054, %v1110
        %v1112 = vand.u32 %v453, 4294901760
        %1113 = vmatmul.f32.gmra.mxu0 %v1112
        %v1114 = vpop.f32.mrf.mxu0
        %v1115 = vadd.f32 %v1062, %v1114
        %1116 = vdwg.mxu0
        %1117 = vmatpush.msra.mxu0 0.0
        %1118 = vmatpush.msra.mxu0 0.0
        %1119 = vmatpush.msra.mxu0 0.0
        %1120 = vmatpush.msra.mxu0 0.0
        %1121 = vmatpush.msra.mxu0 0.0
        %1122 = vmatpush.msra.mxu0 0.0
        %1123 = vmatpush.msra.mxu0 0.0
        %1124 = vmatpush.msra.mxu0 0.0
        %1125 = vmatpush.msra.mxu0 0.0
        %1126 = vmatpush.msra.mxu0 0.0
        %1127 = vmatpush.msra.mxu0 0.0
        %1128 = vmatpush.msra.mxu0 0.0
        %v1129 = vand.u32 %v428, 4294901760
        %v1130 = vsub.f32 %v428, %v1129
        %1131 = vmatpush.msra.mxu0 %v1130
        %v1132 = vand.u32 %v412, 4294901760
        %v1133 = vsub.f32 %v412, %v1132
        %1134 = vmatpush.msra.mxu0 %v1133
        %v1135 = vand.u32 %v396, 4294901760
        %v1136 = vsub.f32 %v396, %v1135
        %1137 = vmatpush.msra.mxu0 %v1136
        %v1138 = vand.u32 %v380, 4294901760
        %v1139 = vsub.f32 %v380, %v1138
        %1140 = vmatpush.msra.mxu0 %v1139
        %v1141 = vand.u32 %v444, 4294901760
        %v1142 = vsub.f32 %v444, %v1141
        %1143 = vmatmul.f32.gmra.mxu0 %v1142
        %v1144 = vpop.f32.mrf.mxu0
        %v1145 = vadd.f32 %v1103, %v1144
        %v1146 = vand.u32 %v447, 4294901760
        %v1147 = vsub.f32 %v447, %v1146
        %1148 = vmatmul.f32.gmra.mxu0 %v1147
        %v1149 = vpop.f32.mrf.mxu0
        %v1150 = vadd.f32 %v1107, %v1149
        %v1151 = vand.u32 %v450, 4294901760
        %v1152 = vsub.f32 %v450, %v1151
        %1153 = vmatmul.f32.gmra.mxu0 %v1152
        %v1154 = vpop.f32.mrf.mxu0
        %v1155 = vadd.f32 %v1111, %v1154
        %v1156 = vand.u32 %v453, 4294901760
        %v1157 = vsub.f32 %v453, %v1156
        %1158 = vmatmul.f32.gmra.mxu0 %v1157
        %v1159 = vpop.f32.mrf.mxu0
        %v1160 = vadd.f32 %v1115, %v1159
        %1161 = vdwg.mxu0
        %1162 = vmatpush.msra.mxu0 0.0
        %1163 = vmatpush.msra.mxu0 0.0
        %1164 = vmatpush.msra.mxu0 0.0
        %1165 = vmatpush.msra.mxu0 0.0
        %1166 = vmatpush.msra.mxu0 0.0
        %1167 = vmatpush.msra.mxu0 0.0
        %1168 = vmatpush.msra.mxu0 0.0
        %1169 = vmatpush.msra.mxu0 0.0
        %1170 = vmatpush.msra.mxu0 0.0
        %1171 = vmatpush.msra.mxu0 0.0
        %1172 = vmatpush.msra.mxu0 0.0
        %1173 = vmatpush.msra.mxu0 0.0
        %v1174 = vand.u32 %v428, 4294901760
        %1175 = vmatpush.msra.mxu0 %v1174
        %v1176 = vand.u32 %v412, 4294901760
        %1177 = vmatpush.msra.mxu0 %v1176
        %v1178 = vand.u32 %v396, 4294901760
        %1179 = vmatpush.msra.mxu0 %v1178
        %v1180 = vand.u32 %v380, 4294901760
        %1181 = vmatpush.msra.mxu0 %v1180
        %v1182 = vand.u32 %v444, 4294901760
        %v1183 = vsub.f32 %v444, %v1182
        %v1184 = vand.u32 %v1183, 4294901760
        %1185 = vmatmul.f32.gmra.mxu0 %v1184
        %v1186 = vpop.f32.mrf.mxu0
        %v1187 = vadd.f32 %v1145, %v1186
        %v1188 = vand.u32 %v447, 4294901760
        %v1189 = vsub.f32 %v447, %v1188
        %v1190 = vand.u32 %v1189, 4294901760
        %1191 = vmatmul.f32.gmra.mxu0 %v1190
        %v1192 = vpop.f32.mrf.mxu0
        %v1193 = vadd.f32 %v1150, %v1192
        %v1194 = vand.u32 %v450, 4294901760
        %v1195 = vsub.f32 %v450, %v1194
        %v1196 = vand.u32 %v1195, 4294901760
        %1197 = vmatmul.f32.gmra.mxu0 %v1196
        %v1198 = vpop.f32.mrf.mxu0
        %v1199 = vadd.f32 %v1155, %v1198
        %v1200 = vand.u32 %v453, 4294901760
        %v1201 = vsub.f32 %v453, %v1200
        %v1202 = vand.u32 %v1201, 4294901760
        %1203 = vmatmul.f32.gmra.mxu0 %v1202
        %v1204 = vpop.f32.mrf.mxu0
        %v1205 = vadd.f32 %v1160, %v1204
        %1206 = vdwg.mxu0
        %1207 = vmatpush.msra.mxu0 0.0
        %1208 = vmatpush.msra.mxu0 0.0
        %1209 = vmatpush.msra.mxu0 0.0
        %1210 = vmatpush.msra.mxu0 0.0
        %1211 = vmatpush.msra.mxu0 0.0
        %1212 = vmatpush.msra.mxu0 0.0
        %1213 = vmatpush.msra.mxu0 0.0
        %1214 = vmatpush.msra.mxu0 0.0
        %1215 = vmatpush.msra.mxu0 0.0
        %1216 = vmatpush.msra.mxu0 0.0
        %1217 = vmatpush.msra.mxu0 0.0
        %1218 = vmatpush.msra.mxu0 0.0
        %v1219 = vand.u32 %v428, 4294901760
        %v1220 = vsub.f32 %v428, %v1219
        %v1221 = vand.u32 %v1220, 4294901760
        %1222 = vmatpush.msra.mxu0 %v1221
        %v1223 = vand.u32 %v412, 4294901760
        %v1224 = vsub.f32 %v412, %v1223
        %v1225 = vand.u32 %v1224, 4294901760
        %1226 = vmatpush.msra.mxu0 %v1225
        %v1227 = vand.u32 %v396, 4294901760
        %v1228 = vsub.f32 %v396, %v1227
        %v1229 = vand.u32 %v1228, 4294901760
        %1230 = vmatpush.msra.mxu0 %v1229
        %v1231 = vand.u32 %v380, 4294901760
        %v1232 = vsub.f32 %v380, %v1231
        %v1233 = vand.u32 %v1232, 4294901760
        %1234 = vmatpush.msra.mxu0 %v1233
        %v1235 = vand.u32 %v444, 4294901760
        %1236 = vmatmul.f32.gmra.mxu0 %v1235
        %v1237 = vpop.f32.mrf.mxu0
        %v1238 = vadd.f32 %v1187, %v1237
        %v1239 = vand.u32 %v447, 4294901760
        %1240 = vmatmul.f32.gmra.mxu0 %v1239
        %v1241 = vpop.f32.mrf.mxu0
        %v1242 = vadd.f32 %v1193, %v1241
        %v1243 = vand.u32 %v450, 4294901760
        %1244 = vmatmul.f32.gmra.mxu0 %v1243
        %v1245 = vpop.f32.mrf.mxu0
        %v1246 = vadd.f32 %v1199, %v1245
        %v1247 = vand.u32 %v453, 4294901760
        %1248 = vmatmul.f32.gmra.mxu0 %v1247
        %v1249 = vpop.f32.mrf.mxu0
        %v1250 = vadd.f32 %v1205, %v1249
        %1251 = vdwg.mxu0
        %1252 = vmatpush.msra.mxu0 0.0
        %1253 = vmatpush.msra.mxu0 0.0
        %1254 = vmatpush.msra.mxu0 0.0
        %1255 = vmatpush.msra.mxu0 0.0
        %1256 = vmatpush.msra.mxu0 0.0
        %1257 = vmatpush.msra.mxu0 0.0
        %1258 = vmatpush.msra.mxu0 0.0
        %1259 = vmatpush.msra.mxu0 0.0
        %1260 = vmatpush.msra.mxu0 0.0
        %1261 = vmatpush.msra.mxu0 0.0
        %1262 = vmatpush.msra.mxu0 0.0
        %1263 = vmatpush.msra.mxu0 0.0
        %v1264 = vand.u32 %v428, 4294901760
        %1265 = vmatpush.msra.mxu0 %v1264
        %v1266 = vand.u32 %v412, 4294901760
        %1267 = vmatpush.msra.mxu0 %v1266
        %v1268 = vand.u32 %v396, 4294901760
        %1269 = vmatpush.msra.mxu0 %v1268
        %v1270 = vand.u32 %v380, 4294901760
        %1271 = vmatpush.msra.mxu0 %v1270
        %v1272 = vand.u32 %v444, 4294901760
        %1273 = vmatmul.f32.gmra.mxu0 %v1272
        %v1274 = vpop.f32.mrf.mxu0
        %v1275 = vadd.f32 %v1238, %v1274
        %v1276 = vand.u32 %v447, 4294901760
        %1277 = vmatmul.f32.gmra.mxu0 %v1276
        %v1278 = vpop.f32.mrf.mxu0
        %v1279 = vadd.f32 %v1242, %v1278
        %v1280 = vand.u32 %v450, 4294901760
        %1281 = vmatmul.f32.gmra.mxu0 %v1280
        %v1282 = vpop.f32.mrf.mxu0
        %v1283 = vadd.f32 %v1246, %v1282
        %v1284 = vand.u32 %v453, 4294901760
        %1285 = vmatmul.f32.gmra.mxu0 %v1284
        %v1286 = vpop.f32.mrf.mxu0
        %v1287 = vadd.f32 %v1250, %v1286
        %1288 = vdwg.mxu0
        %1289 = vmatpush.msra.mxu0 0.0
        %1290 = vmatpush.msra.mxu0 0.0
        %1291 = vmatpush.msra.mxu0 0.0
        %1292 = vmatpush.msra.mxu0 0.0
        %1293 = vmatpush.msra.mxu0 0.0
        %1294 = vmatpush.msra.mxu0 0.0
        %1295 = vmatpush.msra.mxu0 0.0
        %1296 = vmatpush.msra.mxu0 0.0
        %1297 = vmatpush.msra.mxu0 0.0
        %1298 = vmatpush.msra.mxu0 0.0
        %1299 = vmatpush.msra.mxu0 0.0
        %1300 = vmatpush.msra.mxu0 0.0
        %v1301 = vand.u32 %v429, 4294901760
        %1302 = vmatpush.msra.mxu0 %v1301
        %v1303 = vand.u32 %v413, 4294901760
        %1304 = vmatpush.msra.mxu0 %v1303
        %v1305 = vand.u32 %v397, 4294901760
        %1306 = vmatpush.msra.mxu0 %v1305
        %v1307 = vand.u32 %v381, 4294901760
        %1308 = vmatpush.msra.mxu0 %v1307
        %v1309 = vand.u32 %v444, 4294901760
        %v1310 = vsub.f32 %v444, %v1309
        %v1311 = vand.u32 %v1310, 4294901760
        %v1312 = vsub.f32 %v1310, %v1311
        %v1313 = vand.u32 %v1312, 4294901760
        %1314 = vmatmul.f32.gmra.mxu0 %v1313
        %v1315 = vpop.f32.mrf.mxu0
        %v1316 = vadd.f32 0.0, %v1315
        %v1317 = vand.u32 %v447, 4294901760
        %v1318 = vsub.f32 %v447, %v1317
        %v1319 = vand.u32 %v1318, 4294901760
        %v1320 = vsub.f32 %v1318, %v1319
        %v1321 = vand.u32 %v1320, 4294901760
        %1322 = vmatmul.f32.gmra.mxu0 %v1321
        %v1323 = vpop.f32.mrf.mxu0
        %v1324 = vadd.f32 0.0, %v1323
        %v1325 = vand.u32 %v450, 4294901760
        %v1326 = vsub.f32 %v450, %v1325
        %v1327 = vand.u32 %v1326, 4294901760
        %v1328 = vsub.f32 %v1326, %v1327
        %v1329 = vand.u32 %v1328, 4294901760
        %1330 = vmatmul.f32.gmra.mxu0 %v1329
        %v1331 = vpop.f32.mrf.mxu0
        %v1332 = vadd.f32 0.0, %v1331
        %v1333 = vand.u32 %v453, 4294901760
        %v1334 = vsub.f32 %v453, %v1333
        %v1335 = vand.u32 %v1334, 4294901760
        %v1336 = vsub.f32 %v1334, %v1335
        %v1337 = vand.u32 %v1336, 4294901760
        %1338 = vmatmul.f32.gmra.mxu0 %v1337
        %v1339 = vpop.f32.mrf.mxu0
        %v1340 = vadd.f32 0.0, %v1339
        %1341 = vdwg.mxu0
        %1342 = vmatpush.msra.mxu0 0.0
        %1343 = vmatpush.msra.mxu0 0.0
        %1344 = vmatpush.msra.mxu0 0.0
        %1345 = vmatpush.msra.mxu0 0.0
        %1346 = vmatpush.msra.mxu0 0.0
        %1347 = vmatpush.msra.mxu0 0.0
        %1348 = vmatpush.msra.mxu0 0.0
        %1349 = vmatpush.msra.mxu0 0.0
        %1350 = vmatpush.msra.mxu0 0.0
        %1351 = vmatpush.msra.mxu0 0.0
        %1352 = vmatpush.msra.mxu0 0.0
        %1353 = vmatpush.msra.mxu0 0.0
        %v1354 = vand.u32 %v429, 4294901760
        %v1355 = vsub.f32 %v429, %v1354
        %v1356 = vand.u32 %v1355, 4294901760
        %v1357 = vsub.f32 %v1355, %v1356
        %v1358 = vand.u32 %v1357, 4294901760
        %1359 = vmatpush.msra.mxu0 %v1358
        %v1360 = vand.u32 %v413, 4294901760
        %v1361 = vsub.f32 %v413, %v1360
        %v1362 = vand.u32 %v1361, 4294901760
        %v1363 = vsub.f32 %v1361, %v1362
        %v1364 = vand.u32 %v1363, 4294901760
        %1365 = vmatpush.msra.mxu0 %v1364
        %v1366 = vand.u32 %v397, 4294901760
        %v1367 = vsub.f32 %v397, %v1366
        %v1368 = vand.u32 %v1367, 4294901760
        %v1369 = vsub.f32 %v1367, %v1368
        %v1370 = vand.u32 %v1369, 4294901760
        %1371 = vmatpush.msra.mxu0 %v1370
        %v1372 = vand.u32 %v381, 4294901760
        %v1373 = vsub.f32 %v381, %v1372
        %v1374 = vand.u32 %v1373, 4294901760
        %v1375 = vsub.f32 %v1373, %v1374
        %v1376 = vand.u32 %v1375, 4294901760
        %1377 = vmatpush.msra.mxu0 %v1376
        %v1378 = vand.u32 %v444, 4294901760
        %1379 = vmatmul.f32.gmra.mxu0 %v1378
        %v1380 = vpop.f32.mrf.mxu0
        %v1381 = vadd.f32 %v1316, %v1380
        %v1382 = vand.u32 %v447, 4294901760
        %1383 = vmatmul.f32.gmra.mxu0 %v1382
        %v1384 = vpop.f32.mrf.mxu0
        %v1385 = vadd.f32 %v1324, %v1384
        %v1386 = vand.u32 %v450, 4294901760
        %1387 = vmatmul.f32.gmra.mxu0 %v1386
        %v1388 = vpop.f32.mrf.mxu0
        %v1389 = vadd.f32 %v1332, %v1388
        %v1390 = vand.u32 %v453, 4294901760
        %1391 = vmatmul.f32.gmra.mxu0 %v1390
        %v1392 = vpop.f32.mrf.mxu0
        %v1393 = vadd.f32 %v1340, %v1392
        %1394 = vdwg.mxu0
        %1395 = vmatpush.msra.mxu0 0.0
        %1396 = vmatpush.msra.mxu0 0.0
        %1397 = vmatpush.msra.mxu0 0.0
        %1398 = vmatpush.msra.mxu0 0.0
        %1399 = vmatpush.msra.mxu0 0.0
        %1400 = vmatpush.msra.mxu0 0.0
        %1401 = vmatpush.msra.mxu0 0.0
        %1402 = vmatpush.msra.mxu0 0.0
        %1403 = vmatpush.msra.mxu0 0.0
        %1404 = vmatpush.msra.mxu0 0.0
        %1405 = vmatpush.msra.mxu0 0.0
        %1406 = vmatpush.msra.mxu0 0.0
        %v1407 = vand.u32 %v429, 4294901760
        %v1408 = vsub.f32 %v429, %v1407
        %1409 = vmatpush.msra.mxu0 %v1408
        %v1410 = vand.u32 %v413, 4294901760
        %v1411 = vsub.f32 %v413, %v1410
        %1412 = vmatpush.msra.mxu0 %v1411
        %v1413 = vand.u32 %v397, 4294901760
        %v1414 = vsub.f32 %v397, %v1413
        %1415 = vmatpush.msra.mxu0 %v1414
        %v1416 = vand.u32 %v381, 4294901760
        %v1417 = vsub.f32 %v381, %v1416
        %1418 = vmatpush.msra.mxu0 %v1417
        %v1419 = vand.u32 %v444, 4294901760
        %v1420 = vsub.f32 %v444, %v1419
        %1421 = vmatmul.f32.gmra.mxu0 %v1420
        %v1422 = vpop.f32.mrf.mxu0
        %v1423 = vadd.f32 %v1381, %v1422
        %v1424 = vand.u32 %v447, 4294901760
        %v1425 = vsub.f32 %v447, %v1424
        %1426 = vmatmul.f32.gmra.mxu0 %v1425
        %v1427 = vpop.f32.mrf.mxu0
        %v1428 = vadd.f32 %v1385, %v1427
        %v1429 = vand.u32 %v450, 4294901760
        %v1430 = vsub.f32 %v450, %v1429
        %1431 = vmatmul.f32.gmra.mxu0 %v1430
        %v1432 = vpop.f32.mrf.mxu0
        %v1433 = vadd.f32 %v1389, %v1432
        %v1434 = vand.u32 %v453, 4294901760
        %v1435 = vsub.f32 %v453, %v1434
        %1436 = vmatmul.f32.gmra.mxu0 %v1435
        %v1437 = vpop.f32.mrf.mxu0
        %v1438 = vadd.f32 %v1393, %v1437
        %1439 = vdwg.mxu0
        %1440 = vmatpush.msra.mxu0 0.0
        %1441 = vmatpush.msra.mxu0 0.0
        %1442 = vmatpush.msra.mxu0 0.0
        %1443 = vmatpush.msra.mxu0 0.0
        %1444 = vmatpush.msra.mxu0 0.0
        %1445 = vmatpush.msra.mxu0 0.0
        %1446 = vmatpush.msra.mxu0 0.0
        %1447 = vmatpush.msra.mxu0 0.0
        %1448 = vmatpush.msra.mxu0 0.0
        %1449 = vmatpush.msra.mxu0 0.0
        %1450 = vmatpush.msra.mxu0 0.0
        %1451 = vmatpush.msra.mxu0 0.0
        %v1452 = vand.u32 %v429, 4294901760
        %1453 = vmatpush.msra.mxu0 %v1452
        %v1454 = vand.u32 %v413, 4294901760
        %1455 = vmatpush.msra.mxu0 %v1454
        %v1456 = vand.u32 %v397, 4294901760
        %1457 = vmatpush.msra.mxu0 %v1456
        %v1458 = vand.u32 %v381, 4294901760
        %1459 = vmatpush.msra.mxu0 %v1458
        %v1460 = vand.u32 %v444, 4294901760
        %v1461 = vsub.f32 %v444, %v1460
        %v1462 = vand.u32 %v1461, 4294901760
        %1463 = vmatmul.f32.gmra.mxu0 %v1462
        %v1464 = vpop.f32.mrf.mxu0
        %v1465 = vadd.f32 %v1423, %v1464
        %v1466 = vand.u32 %v447, 4294901760
        %v1467 = vsub.f32 %v447, %v1466
        %v1468 = vand.u32 %v1467, 4294901760
        %1469 = vmatmul.f32.gmra.mxu0 %v1468
        %v1470 = vpop.f32.mrf.mxu0
        %v1471 = vadd.f32 %v1428, %v1470
        %v1472 = vand.u32 %v450, 4294901760
        %v1473 = vsub.f32 %v450, %v1472
        %v1474 = vand.u32 %v1473, 4294901760
        %1475 = vmatmul.f32.gmra.mxu0 %v1474
        %v1476 = vpop.f32.mrf.mxu0
        %v1477 = vadd.f32 %v1433, %v1476
        %v1478 = vand.u32 %v453, 4294901760
        %v1479 = vsub.f32 %v453, %v1478
        %v1480 = vand.u32 %v1479, 4294901760
        %1481 = vmatmul.f32.gmra.mxu0 %v1480
        %v1482 = vpop.f32.mrf.mxu0
        %v1483 = vadd.f32 %v1438, %v1482
        %1484 = vdwg.mxu0
        %1485 = vmatpush.msra.mxu0 0.0
        %1486 = vmatpush.msra.mxu0 0.0
        %1487 = vmatpush.msra.mxu0 0.0
        %1488 = vmatpush.msra.mxu0 0.0
        %1489 = vmatpush.msra.mxu0 0.0
        %1490 = vmatpush.msra.mxu0 0.0
        %1491 = vmatpush.msra.mxu0 0.0
        %1492 = vmatpush.msra.mxu0 0.0
        %1493 = vmatpush.msra.mxu0 0.0
        %1494 = vmatpush.msra.mxu0 0.0
        %1495 = vmatpush.msra.mxu0 0.0
        %1496 = vmatpush.msra.mxu0 0.0
        %v1497 = vand.u32 %v429, 4294901760
        %v1498 = vsub.f32 %v429, %v1497
        %v1499 = vand.u32 %v1498, 4294901760
        %1500 = vmatpush.msra.mxu0 %v1499
        %v1501 = vand.u32 %v413, 4294901760
        %v1502 = vsub.f32 %v413, %v1501
        %v1503 = vand.u32 %v1502, 4294901760
        %1504 = vmatpush.msra.mxu0 %v1503
        %v1505 = vand.u32 %v397, 4294901760
        %v1506 = vsub.f32 %v397, %v1505
        %v1507 = vand.u32 %v1506, 4294901760
        %1508 = vmatpush.msra.mxu0 %v1507
        %v1509 = vand.u32 %v381, 4294901760
        %v1510 = vsub.f32 %v381, %v1509
        %v1511 = vand.u32 %v1510, 4294901760
        %1512 = vmatpush.msra.mxu0 %v1511
        %v1513 = vand.u32 %v444, 4294901760
        %1514 = vmatmul.f32.gmra.mxu0 %v1513
        %v1515 = vpop.f32.mrf.mxu0
        %v1516 = vadd.f32 %v1465, %v1515
        %v1517 = vand.u32 %v447, 4294901760
        %1518 = vmatmul.f32.gmra.mxu0 %v1517
        %v1519 = vpop.f32.mrf.mxu0
        %v1520 = vadd.f32 %v1471, %v1519
        %v1521 = vand.u32 %v450, 4294901760
        %1522 = vmatmul.f32.gmra.mxu0 %v1521
        %v1523 = vpop.f32.mrf.mxu0
        %v1524 = vadd.f32 %v1477, %v1523
        %v1525 = vand.u32 %v453, 4294901760
        %1526 = vmatmul.f32.gmra.mxu0 %v1525
        %v1527 = vpop.f32.mrf.mxu0
        %v1528 = vadd.f32 %v1483, %v1527
        %1529 = vdwg.mxu0
        %1530 = vmatpush.msra.mxu0 0.0
        %1531 = vmatpush.msra.mxu0 0.0
        %1532 = vmatpush.msra.mxu0 0.0
        %1533 = vmatpush.msra.mxu0 0.0
        %1534 = vmatpush.msra.mxu0 0.0
        %1535 = vmatpush.msra.mxu0 0.0
        %1536 = vmatpush.msra.mxu0 0.0
        %1537 = vmatpush.msra.mxu0 0.0
        %1538 = vmatpush.msra.mxu0 0.0
        %1539 = vmatpush.msra.mxu0 0.0
        %1540 = vmatpush.msra.mxu0 0.0
        %1541 = vmatpush.msra.mxu0 0.0
        %v1542 = vand.u32 %v429, 4294901760
        %1543 = vmatpush.msra.mxu0 %v1542
        %v1544 = vand.u32 %v413, 4294901760
        %1545 = vmatpush.msra.mxu0 %v1544
        %v1546 = vand.u32 %v397, 4294901760
        %1547 = vmatpush.msra.mxu0 %v1546
        %v1548 = vand.u32 %v381, 4294901760
        %1549 = vmatpush.msra.mxu0 %v1548
        %v1550 = vand.u32 %v444, 4294901760
        %1551 = vmatmul.f32.gmra.mxu0 %v1550
        %v1552 = vpop.f32.mrf.mxu0
        %v1553 = vadd.f32 %v1516, %v1552
        %v1554 = vand.u32 %v447, 4294901760
        %1555 = vmatmul.f32.gmra.mxu0 %v1554
        %v1556 = vpop.f32.mrf.mxu0
        %v1557 = vadd.f32 %v1520, %v1556
        %v1558 = vand.u32 %v450, 4294901760
        %1559 = vmatmul.f32.gmra.mxu0 %v1558
        %v1560 = vpop.f32.mrf.mxu0
        %v1561 = vadd.f32 %v1524, %v1560
        %v1562 = vand.u32 %v453, 4294901760
        %1563 = vmatmul.f32.gmra.mxu0 %v1562
        %v1564 = vpop.f32.mrf.mxu0
        %v1565 = vadd.f32 %v1528, %v1564
        %1566 = vdwg.mxu0
        %1567 = vmatpush.msra.mxu0 0.0
        %1568 = vmatpush.msra.mxu0 0.0
        %1569 = vmatpush.msra.mxu0 0.0
        %1570 = vmatpush.msra.mxu0 0.0
        %1571 = vmatpush.msra.mxu0 0.0
        %1572 = vmatpush.msra.mxu0 0.0
        %1573 = vmatpush.msra.mxu0 0.0
        %1574 = vmatpush.msra.mxu0 0.0
        %1575 = vmatpush.msra.mxu0 0.0
        %1576 = vmatpush.msra.mxu0 0.0
        %1577 = vmatpush.msra.mxu0 0.0
        %1578 = vmatpush.msra.mxu0 0.0
        %v1579 = vand.u32 %v430, 4294901760
        %1580 = vmatpush.msra.mxu0 %v1579
        %v1581 = vand.u32 %v414, 4294901760
        %1582 = vmatpush.msra.mxu0 %v1581
        %v1583 = vand.u32 %v398, 4294901760
        %1584 = vmatpush.msra.mxu0 %v1583
        %v1585 = vand.u32 %v382, 4294901760
        %1586 = vmatpush.msra.mxu0 %v1585
        %v1587 = vand.u32 %v444, 4294901760
        %v1588 = vsub.f32 %v444, %v1587
        %v1589 = vand.u32 %v1588, 4294901760
        %v1590 = vsub.f32 %v1588, %v1589
        %v1591 = vand.u32 %v1590, 4294901760
        %1592 = vmatmul.f32.gmra.mxu0 %v1591
        %v1593 = vpop.f32.mrf.mxu0
        %v1594 = vadd.f32 0.0, %v1593
        %v1595 = vand.u32 %v447, 4294901760
        %v1596 = vsub.f32 %v447, %v1595
        %v1597 = vand.u32 %v1596, 4294901760
        %v1598 = vsub.f32 %v1596, %v1597
        %v1599 = vand.u32 %v1598, 4294901760
        %1600 = vmatmul.f32.gmra.mxu0 %v1599
        %v1601 = vpop.f32.mrf.mxu0
        %v1602 = vadd.f32 0.0, %v1601
        %v1603 = vand.u32 %v450, 4294901760
        %v1604 = vsub.f32 %v450, %v1603
        %v1605 = vand.u32 %v1604, 4294901760
        %v1606 = vsub.f32 %v1604, %v1605
        %v1607 = vand.u32 %v1606, 4294901760
        %1608 = vmatmul.f32.gmra.mxu0 %v1607
        %v1609 = vpop.f32.mrf.mxu0
        %v1610 = vadd.f32 0.0, %v1609
        %v1611 = vand.u32 %v453, 4294901760
        %v1612 = vsub.f32 %v453, %v1611
        %v1613 = vand.u32 %v1612, 4294901760
        %v1614 = vsub.f32 %v1612, %v1613
        %v1615 = vand.u32 %v1614, 4294901760
        %1616 = vmatmul.f32.gmra.mxu0 %v1615
        %v1617 = vpop.f32.mrf.mxu0
        %v1618 = vadd.f32 0.0, %v1617
        %1619 = vdwg.mxu0
        %1620 = vmatpush.msra.mxu0 0.0
        %1621 = vmatpush.msra.mxu0 0.0
        %1622 = vmatpush.msra.mxu0 0.0
        %1623 = vmatpush.msra.mxu0 0.0
        %1624 = vmatpush.msra.mxu0 0.0
        %1625 = vmatpush.msra.mxu0 0.0
        %1626 = vmatpush.msra.mxu0 0.0
        %1627 = vmatpush.msra.mxu0 0.0
        %1628 = vmatpush.msra.mxu0 0.0
        %1629 = vmatpush.msra.mxu0 0.0
        %1630 = vmatpush.msra.mxu0 0.0
        %1631 = vmatpush.msra.mxu0 0.0
        %v1632 = vand.u32 %v430, 4294901760
        %v1633 = vsub.f32 %v430, %v1632
        %v1634 = vand.u32 %v1633, 4294901760
        %v1635 = vsub.f32 %v1633, %v1634
        %v1636 = vand.u32 %v1635, 4294901760
        %1637 = vmatpush.msra.mxu0 %v1636
        %v1638 = vand.u32 %v414, 4294901760
        %v1639 = vsub.f32 %v414, %v1638
        %v1640 = vand.u32 %v1639, 4294901760
        %v1641 = vsub.f32 %v1639, %v1640
        %v1642 = vand.u32 %v1641, 4294901760
        %1643 = vmatpush.msra.mxu0 %v1642
        %v1644 = vand.u32 %v398, 4294901760
        %v1645 = vsub.f32 %v398, %v1644
        %v1646 = vand.u32 %v1645, 4294901760
        %v1647 = vsub.f32 %v1645, %v1646
        %v1648 = vand.u32 %v1647, 4294901760
        %1649 = vmatpush.msra.mxu0 %v1648
        %v1650 = vand.u32 %v382, 4294901760
        %v1651 = vsub.f32 %v382, %v1650
        %v1652 = vand.u32 %v1651, 4294901760
        %v1653 = vsub.f32 %v1651, %v1652
        %v1654 = vand.u32 %v1653, 4294901760
        %1655 = vmatpush.msra.mxu0 %v1654
        %v1656 = vand.u32 %v444, 4294901760
        %1657 = vmatmul.f32.gmra.mxu0 %v1656
        %v1658 = vpop.f32.mrf.mxu0
        %v1659 = vadd.f32 %v1594, %v1658
        %v1660 = vand.u32 %v447, 4294901760
        %1661 = vmatmul.f32.gmra.mxu0 %v1660
        %v1662 = vpop.f32.mrf.mxu0
        %v1663 = vadd.f32 %v1602, %v1662
        %v1664 = vand.u32 %v450, 4294901760
        %1665 = vmatmul.f32.gmra.mxu0 %v1664
        %v1666 = vpop.f32.mrf.mxu0
        %v1667 = vadd.f32 %v1610, %v1666
        %v1668 = vand.u32 %v453, 4294901760
        %1669 = vmatmul.f32.gmra.mxu0 %v1668
        %v1670 = vpop.f32.mrf.mxu0
        %v1671 = vadd.f32 %v1618, %v1670
        %1672 = vdwg.mxu0
        %1673 = vmatpush.msra.mxu0 0.0
        %1674 = vmatpush.msra.mxu0 0.0
        %1675 = vmatpush.msra.mxu0 0.0
        %1676 = vmatpush.msra.mxu0 0.0
        %1677 = vmatpush.msra.mxu0 0.0
        %1678 = vmatpush.msra.mxu0 0.0
        %1679 = vmatpush.msra.mxu0 0.0
        %1680 = vmatpush.msra.mxu0 0.0
        %1681 = vmatpush.msra.mxu0 0.0
        %1682 = vmatpush.msra.mxu0 0.0
        %1683 = vmatpush.msra.mxu0 0.0
        %1684 = vmatpush.msra.mxu0 0.0
        %v1685 = vand.u32 %v430, 4294901760
        %v1686 = vsub.f32 %v430, %v1685
        %1687 = vmatpush.msra.mxu0 %v1686
        %v1688 = vand.u32 %v414, 4294901760
        %v1689 = vsub.f32 %v414, %v1688
        %1690 = vmatpush.msra.mxu0 %v1689
        %v1691 = vand.u32 %v398, 4294901760
        %v1692 = vsub.f32 %v398, %v1691
        %1693 = vmatpush.msra.mxu0 %v1692
        %v1694 = vand.u32 %v382, 4294901760
        %v1695 = vsub.f32 %v382, %v1694
        %1696 = vmatpush.msra.mxu0 %v1695
        %v1697 = vand.u32 %v444, 4294901760
        %v1698 = vsub.f32 %v444, %v1697
        %1699 = vmatmul.f32.gmra.mxu0 %v1698
        %v1700 = vpop.f32.mrf.mxu0
        %v1701 = vadd.f32 %v1659, %v1700
        %v1702 = vand.u32 %v447, 4294901760
        %v1703 = vsub.f32 %v447, %v1702
        %1704 = vmatmul.f32.gmra.mxu0 %v1703
        %v1705 = vpop.f32.mrf.mxu0
        %v1706 = vadd.f32 %v1663, %v1705
        %v1707 = vand.u32 %v450, 4294901760
        %v1708 = vsub.f32 %v450, %v1707
        %1709 = vmatmul.f32.gmra.mxu0 %v1708
        %v1710 = vpop.f32.mrf.mxu0
        %v1711 = vadd.f32 %v1667, %v1710
        %v1712 = vand.u32 %v453, 4294901760
        %v1713 = vsub.f32 %v453, %v1712
        %1714 = vmatmul.f32.gmra.mxu0 %v1713
        %v1715 = vpop.f32.mrf.mxu0
        %v1716 = vadd.f32 %v1671, %v1715
        %1717 = vdwg.mxu0
        %1718 = vmatpush.msra.mxu0 0.0
        %1719 = vmatpush.msra.mxu0 0.0
        %1720 = vmatpush.msra.mxu0 0.0
        %1721 = vmatpush.msra.mxu0 0.0
        %1722 = vmatpush.msra.mxu0 0.0
        %1723 = vmatpush.msra.mxu0 0.0
        %1724 = vmatpush.msra.mxu0 0.0
        %1725 = vmatpush.msra.mxu0 0.0
        %1726 = vmatpush.msra.mxu0 0.0
        %1727 = vmatpush.msra.mxu0 0.0
        %1728 = vmatpush.msra.mxu0 0.0
        %1729 = vmatpush.msra.mxu0 0.0
        %v1730 = vand.u32 %v430, 4294901760
        %1731 = vmatpush.msra.mxu0 %v1730
        %v1732 = vand.u32 %v414, 4294901760
        %1733 = vmatpush.msra.mxu0 %v1732
        %v1734 = vand.u32 %v398, 4294901760
        %1735 = vmatpush.msra.mxu0 %v1734
        %v1736 = vand.u32 %v382, 4294901760
        %1737 = vmatpush.msra.mxu0 %v1736
        %v1738 = vand.u32 %v444, 4294901760
        %v1739 = vsub.f32 %v444, %v1738
        %v1740 = vand.u32 %v1739, 4294901760
        %1741 = vmatmul.f32.gmra.mxu0 %v1740
        %v1742 = vpop.f32.mrf.mxu0
        %v1743 = vadd.f32 %v1701, %v1742
        %v1744 = vand.u32 %v447, 4294901760
        %v1745 = vsub.f32 %v447, %v1744
        %v1746 = vand.u32 %v1745, 4294901760
        %1747 = vmatmul.f32.gmra.mxu0 %v1746
        %v1748 = vpop.f32.mrf.mxu0
        %v1749 = vadd.f32 %v1706, %v1748
        %v1750 = vand.u32 %v450, 4294901760
        %v1751 = vsub.f32 %v450, %v1750
        %v1752 = vand.u32 %v1751, 4294901760
        %1753 = vmatmul.f32.gmra.mxu0 %v1752
        %v1754 = vpop.f32.mrf.mxu0
        %v1755 = vadd.f32 %v1711, %v1754
        %v1756 = vand.u32 %v453, 4294901760
        %v1757 = vsub.f32 %v453, %v1756
        %v1758 = vand.u32 %v1757, 4294901760
        %1759 = vmatmul.f32.gmra.mxu0 %v1758
        %v1760 = vpop.f32.mrf.mxu0
        %v1761 = vadd.f32 %v1716, %v1760
        %1762 = vdwg.mxu0
        %1763 = vmatpush.msra.mxu0 0.0
        %1764 = vmatpush.msra.mxu0 0.0
        %1765 = vmatpush.msra.mxu0 0.0
        %1766 = vmatpush.msra.mxu0 0.0
        %1767 = vmatpush.msra.mxu0 0.0
        %1768 = vmatpush.msra.mxu0 0.0
        %1769 = vmatpush.msra.mxu0 0.0
        %1770 = vmatpush.msra.mxu0 0.0
        %1771 = vmatpush.msra.mxu0 0.0
        %1772 = vmatpush.msra.mxu0 0.0
        %1773 = vmatpush.msra.mxu0 0.0
        %1774 = vmatpush.msra.mxu0 0.0
        %v1775 = vand.u32 %v430, 4294901760
        %v1776 = vsub.f32 %v430, %v1775
        %v1777 = vand.u32 %v1776, 4294901760
        %1778 = vmatpush.msra.mxu0 %v1777
        %v1779 = vand.u32 %v414, 4294901760
        %v1780 = vsub.f32 %v414, %v1779
        %v1781 = vand.u32 %v1780, 4294901760
        %1782 = vmatpush.msra.mxu0 %v1781
        %v1783 = vand.u32 %v398, 4294901760
        %v1784 = vsub.f32 %v398, %v1783
        %v1785 = vand.u32 %v1784, 4294901760
        %1786 = vmatpush.msra.mxu0 %v1785
        %v1787 = vand.u32 %v382, 4294901760
        %v1788 = vsub.f32 %v382, %v1787
        %v1789 = vand.u32 %v1788, 4294901760
        %1790 = vmatpush.msra.mxu0 %v1789
        %v1791 = vand.u32 %v444, 4294901760
        %1792 = vmatmul.f32.gmra.mxu0 %v1791
        %v1793 = vpop.f32.mrf.mxu0
        %v1794 = vadd.f32 %v1743, %v1793
        %v1795 = vand.u32 %v447, 4294901760
        %1796 = vmatmul.f32.gmra.mxu0 %v1795
        %v1797 = vpop.f32.mrf.mxu0
        %v1798 = vadd.f32 %v1749, %v1797
        %v1799 = vand.u32 %v450, 4294901760
        %1800 = vmatmul.f32.gmra.mxu0 %v1799
        %v1801 = vpop.f32.mrf.mxu0
        %v1802 = vadd.f32 %v1755, %v1801
        %v1803 = vand.u32 %v453, 4294901760
        %1804 = vmatmul.f32.gmra.mxu0 %v1803
        %v1805 = vpop.f32.mrf.mxu0
        %v1806 = vadd.f32 %v1761, %v1805
        %1807 = vdwg.mxu0
        %1808 = vmatpush.msra.mxu0 0.0
        %1809 = vmatpush.msra.mxu0 0.0
        %1810 = vmatpush.msra.mxu0 0.0
        %1811 = vmatpush.msra.mxu0 0.0
        %1812 = vmatpush.msra.mxu0 0.0
        %1813 = vmatpush.msra.mxu0 0.0
        %1814 = vmatpush.msra.mxu0 0.0
        %1815 = vmatpush.msra.mxu0 0.0
        %1816 = vmatpush.msra.mxu0 0.0
        %1817 = vmatpush.msra.mxu0 0.0
        %1818 = vmatpush.msra.mxu0 0.0
        %1819 = vmatpush.msra.mxu0 0.0
        %v1820 = vand.u32 %v430, 4294901760
        %1821 = vmatpush.msra.mxu0 %v1820
        %v1822 = vand.u32 %v414, 4294901760
        %1823 = vmatpush.msra.mxu0 %v1822
        %v1824 = vand.u32 %v398, 4294901760
        %1825 = vmatpush.msra.mxu0 %v1824
        %v1826 = vand.u32 %v382, 4294901760
        %1827 = vmatpush.msra.mxu0 %v1826
        %v1828 = vand.u32 %v444, 4294901760
        %1829 = vmatmul.f32.gmra.mxu0 %v1828
        %v1830 = vpop.f32.mrf.mxu0
        %v1831 = vadd.f32 %v1794, %v1830
        %v1832 = vand.u32 %v447, 4294901760
        %1833 = vmatmul.f32.gmra.mxu0 %v1832
        %v1834 = vpop.f32.mrf.mxu0
        %v1835 = vadd.f32 %v1798, %v1834
        %v1836 = vand.u32 %v450, 4294901760
        %1837 = vmatmul.f32.gmra.mxu0 %v1836
        %v1838 = vpop.f32.mrf.mxu0
        %v1839 = vadd.f32 %v1802, %v1838
        %v1840 = vand.u32 %v453, 4294901760
        %1841 = vmatmul.f32.gmra.mxu0 %v1840
        %v1842 = vpop.f32.mrf.mxu0
        %v1843 = vadd.f32 %v1806, %v1842
        %1844 = vdwg.mxu0
        %1845 = vmatpush.msra.mxu0 0.0
        %1846 = vmatpush.msra.mxu0 0.0
        %1847 = vmatpush.msra.mxu0 0.0
        %1848 = vmatpush.msra.mxu0 0.0
        %1849 = vmatpush.msra.mxu0 0.0
        %1850 = vmatpush.msra.mxu0 0.0
        %1851 = vmatpush.msra.mxu0 0.0
        %1852 = vmatpush.msra.mxu0 0.0
        %1853 = vmatpush.msra.mxu0 0.0
        %1854 = vmatpush.msra.mxu0 0.0
        %1855 = vmatpush.msra.mxu0 0.0
        %1856 = vmatpush.msra.mxu0 0.0
        %v1857 = vand.u32 %v431, 4294901760
        %1858 = vmatpush.msra.mxu0 %v1857
        %v1859 = vand.u32 %v415, 4294901760
        %1860 = vmatpush.msra.mxu0 %v1859
        %v1861 = vand.u32 %v399, 4294901760
        %1862 = vmatpush.msra.mxu0 %v1861
        %v1863 = vand.u32 %v383, 4294901760
        %1864 = vmatpush.msra.mxu0 %v1863
        %v1865 = vand.u32 %v444, 4294901760
        %v1866 = vsub.f32 %v444, %v1865
        %v1867 = vand.u32 %v1866, 4294901760
        %v1868 = vsub.f32 %v1866, %v1867
        %v1869 = vand.u32 %v1868, 4294901760
        %1870 = vmatmul.f32.gmra.mxu0 %v1869
        %v1871 = vpop.f32.mrf.mxu0
        %v1872 = vadd.f32 0.0, %v1871
        %v1873 = vand.u32 %v447, 4294901760
        %v1874 = vsub.f32 %v447, %v1873
        %v1875 = vand.u32 %v1874, 4294901760
        %v1876 = vsub.f32 %v1874, %v1875
        %v1877 = vand.u32 %v1876, 4294901760
        %1878 = vmatmul.f32.gmra.mxu0 %v1877
        %v1879 = vpop.f32.mrf.mxu0
        %v1880 = vadd.f32 0.0, %v1879
        %v1881 = vand.u32 %v450, 4294901760
        %v1882 = vsub.f32 %v450, %v1881
        %v1883 = vand.u32 %v1882, 4294901760
        %v1884 = vsub.f32 %v1882, %v1883
        %v1885 = vand.u32 %v1884, 4294901760
        %1886 = vmatmul.f32.gmra.mxu0 %v1885
        %v1887 = vpop.f32.mrf.mxu0
        %v1888 = vadd.f32 0.0, %v1887
        %v1889 = vand.u32 %v453, 4294901760
        %v1890 = vsub.f32 %v453, %v1889
        %v1891 = vand.u32 %v1890, 4294901760
        %v1892 = vsub.f32 %v1890, %v1891
        %v1893 = vand.u32 %v1892, 4294901760
        %1894 = vmatmul.f32.gmra.mxu0 %v1893
        %v1895 = vpop.f32.mrf.mxu0
        %v1896 = vadd.f32 0.0, %v1895
        %1897 = vdwg.mxu0
        %1898 = vmatpush.msra.mxu0 0.0
        %1899 = vmatpush.msra.mxu0 0.0
        %1900 = vmatpush.msra.mxu0 0.0
        %1901 = vmatpush.msra.mxu0 0.0
        %1902 = vmatpush.msra.mxu0 0.0
        %1903 = vmatpush.msra.mxu0 0.0
        %1904 = vmatpush.msra.mxu0 0.0
        %1905 = vmatpush.msra.mxu0 0.0
        %1906 = vmatpush.msra.mxu0 0.0
        %1907 = vmatpush.msra.mxu0 0.0
        %1908 = vmatpush.msra.mxu0 0.0
        %1909 = vmatpush.msra.mxu0 0.0
        %v1910 = vand.u32 %v431, 4294901760
        %v1911 = vsub.f32 %v431, %v1910
        %v1912 = vand.u32 %v1911, 4294901760
        %v1913 = vsub.f32 %v1911, %v1912
        %v1914 = vand.u32 %v1913, 4294901760
        %1915 = vmatpush.msra.mxu0 %v1914
        %v1916 = vand.u32 %v415, 4294901760
        %v1917 = vsub.f32 %v415, %v1916
        %v1918 = vand.u32 %v1917, 4294901760
        %v1919 = vsub.f32 %v1917, %v1918
        %v1920 = vand.u32 %v1919, 4294901760
        %1921 = vmatpush.msra.mxu0 %v1920
        %v1922 = vand.u32 %v399, 4294901760
        %v1923 = vsub.f32 %v399, %v1922
        %v1924 = vand.u32 %v1923, 4294901760
        %v1925 = vsub.f32 %v1923, %v1924
        %v1926 = vand.u32 %v1925, 4294901760
        %1927 = vmatpush.msra.mxu0 %v1926
        %v1928 = vand.u32 %v383, 4294901760
        %v1929 = vsub.f32 %v383, %v1928
        %v1930 = vand.u32 %v1929, 4294901760
        %v1931 = vsub.f32 %v1929, %v1930
        %v1932 = vand.u32 %v1931, 4294901760
        %1933 = vmatpush.msra.mxu0 %v1932
        %v1934 = vand.u32 %v444, 4294901760
        %1935 = vmatmul.f32.gmra.mxu0 %v1934
        %v1936 = vpop.f32.mrf.mxu0
        %v1937 = vadd.f32 %v1872, %v1936
        %v1938 = vand.u32 %v447, 4294901760
        %1939 = vmatmul.f32.gmra.mxu0 %v1938
        %v1940 = vpop.f32.mrf.mxu0
        %v1941 = vadd.f32 %v1880, %v1940
        %v1942 = vand.u32 %v450, 4294901760
        %1943 = vmatmul.f32.gmra.mxu0 %v1942
        %v1944 = vpop.f32.mrf.mxu0
        %v1945 = vadd.f32 %v1888, %v1944
        %v1946 = vand.u32 %v453, 4294901760
        %1947 = vmatmul.f32.gmra.mxu0 %v1946
        %v1948 = vpop.f32.mrf.mxu0
        %v1949 = vadd.f32 %v1896, %v1948
        %1950 = vdwg.mxu0
        %1951 = vmatpush.msra.mxu0 0.0
        %1952 = vmatpush.msra.mxu0 0.0
        %1953 = vmatpush.msra.mxu0 0.0
        %1954 = vmatpush.msra.mxu0 0.0
        %1955 = vmatpush.msra.mxu0 0.0
        %1956 = vmatpush.msra.mxu0 0.0
        %1957 = vmatpush.msra.mxu0 0.0
        %1958 = vmatpush.msra.mxu0 0.0
        %1959 = vmatpush.msra.mxu0 0.0
        %1960 = vmatpush.msra.mxu0 0.0
        %1961 = vmatpush.msra.mxu0 0.0
        %1962 = vmatpush.msra.mxu0 0.0
        %v1963 = vand.u32 %v431, 4294901760
        %v1964 = vsub.f32 %v431, %v1963
        %1965 = vmatpush.msra.mxu0 %v1964
        %v1966 = vand.u32 %v415, 4294901760
        %v1967 = vsub.f32 %v415, %v1966
        %1968 = vmatpush.msra.mxu0 %v1967
        %v1969 = vand.u32 %v399, 4294901760
        %v1970 = vsub.f32 %v399, %v1969
        %1971 = vmatpush.msra.mxu0 %v1970
        %v1972 = vand.u32 %v383, 4294901760
        %v1973 = vsub.f32 %v383, %v1972
        %1974 = vmatpush.msra.mxu0 %v1973
        %v1975 = vand.u32 %v444, 4294901760
        %v1976 = vsub.f32 %v444, %v1975
        %1977 = vmatmul.f32.gmra.mxu0 %v1976
        %v1978 = vpop.f32.mrf.mxu0
        %v1979 = vadd.f32 %v1937, %v1978
        %v1980 = vand.u32 %v447, 4294901760
        %v1981 = vsub.f32 %v447, %v1980
        %1982 = vmatmul.f32.gmra.mxu0 %v1981
        %v1983 = vpop.f32.mrf.mxu0
        %v1984 = vadd.f32 %v1941, %v1983
        %v1985 = vand.u32 %v450, 4294901760
        %v1986 = vsub.f32 %v450, %v1985
        %1987 = vmatmul.f32.gmra.mxu0 %v1986
        %v1988 = vpop.f32.mrf.mxu0
        %v1989 = vadd.f32 %v1945, %v1988
        %v1990 = vand.u32 %v453, 4294901760
        %v1991 = vsub.f32 %v453, %v1990
        %1992 = vmatmul.f32.gmra.mxu0 %v1991
        %v1993 = vpop.f32.mrf.mxu0
        %v1994 = vadd.f32 %v1949, %v1993
        %1995 = vdwg.mxu0
        %1996 = vmatpush.msra.mxu0 0.0
        %1997 = vmatpush.msra.mxu0 0.0
        %1998 = vmatpush.msra.mxu0 0.0
        %1999 = vmatpush.msra.mxu0 0.0
        %2000 = vmatpush.msra.mxu0 0.0
        %2001 = vmatpush.msra.mxu0 0.0
        %2002 = vmatpush.msra.mxu0 0.0
        %2003 = vmatpush.msra.mxu0 0.0
        %2004 = vmatpush.msra.mxu0 0.0
        %2005 = vmatpush.msra.mxu0 0.0
        %2006 = vmatpush.msra.mxu0 0.0
        %2007 = vmatpush.msra.mxu0 0.0
        %v2008 = vand.u32 %v431, 4294901760
        %2009 = vmatpush.msra.mxu0 %v2008
        %v2010 = vand.u32 %v415, 4294901760
        %2011 = vmatpush.msra.mxu0 %v2010
        %v2012 = vand.u32 %v399, 4294901760
        %2013 = vmatpush.msra.mxu0 %v2012
        %v2014 = vand.u32 %v383, 4294901760
        %2015 = vmatpush.msra.mxu0 %v2014
        %v2016 = vand.u32 %v444, 4294901760
        %v2017 = vsub.f32 %v444, %v2016
        %v2018 = vand.u32 %v2017, 4294901760
        %2019 = vmatmul.f32.gmra.mxu0 %v2018
        %v2020 = vpop.f32.mrf.mxu0
        %v2021 = vadd.f32 %v1979, %v2020
        %v2022 = vand.u32 %v447, 4294901760
        %v2023 = vsub.f32 %v447, %v2022
        %v2024 = vand.u32 %v2023, 4294901760
        %2025 = vmatmul.f32.gmra.mxu0 %v2024
        %v2026 = vpop.f32.mrf.mxu0
        %v2027 = vadd.f32 %v1984, %v2026
        %v2028 = vand.u32 %v450, 4294901760
        %v2029 = vsub.f32 %v450, %v2028
        %v2030 = vand.u32 %v2029, 4294901760
        %2031 = vmatmul.f32.gmra.mxu0 %v2030
        %v2032 = vpop.f32.mrf.mxu0
        %v2033 = vadd.f32 %v1989, %v2032
        %v2034 = vand.u32 %v453, 4294901760
        %v2035 = vsub.f32 %v453, %v2034
        %v2036 = vand.u32 %v2035, 4294901760
        %2037 = vmatmul.f32.gmra.mxu0 %v2036
        %v2038 = vpop.f32.mrf.mxu0
        %v2039 = vadd.f32 %v1994, %v2038
        %2040 = vdwg.mxu0
        %2041 = vmatpush.msra.mxu0 0.0
        %2042 = vmatpush.msra.mxu0 0.0
        %2043 = vmatpush.msra.mxu0 0.0
        %2044 = vmatpush.msra.mxu0 0.0
        %2045 = vmatpush.msra.mxu0 0.0
        %2046 = vmatpush.msra.mxu0 0.0
        %2047 = vmatpush.msra.mxu0 0.0
        %2048 = vmatpush.msra.mxu0 0.0
        %2049 = vmatpush.msra.mxu0 0.0
        %2050 = vmatpush.msra.mxu0 0.0
        %2051 = vmatpush.msra.mxu0 0.0
        %2052 = vmatpush.msra.mxu0 0.0
        %v2053 = vand.u32 %v431, 4294901760
        %v2054 = vsub.f32 %v431, %v2053
        %v2055 = vand.u32 %v2054, 4294901760
        %2056 = vmatpush.msra.mxu0 %v2055
        %v2057 = vand.u32 %v415, 4294901760
        %v2058 = vsub.f32 %v415, %v2057
        %v2059 = vand.u32 %v2058, 4294901760
        %2060 = vmatpush.msra.mxu0 %v2059
        %v2061 = vand.u32 %v399, 4294901760
        %v2062 = vsub.f32 %v399, %v2061
        %v2063 = vand.u32 %v2062, 4294901760
        %2064 = vmatpush.msra.mxu0 %v2063
        %v2065 = vand.u32 %v383, 4294901760
        %v2066 = vsub.f32 %v383, %v2065
        %v2067 = vand.u32 %v2066, 4294901760
        %2068 = vmatpush.msra.mxu0 %v2067
        %v2069 = vand.u32 %v444, 4294901760
        %2070 = vmatmul.f32.gmra.mxu0 %v2069
        %v2071 = vpop.f32.mrf.mxu0
        %v2072 = vadd.f32 %v2021, %v2071
        %v2073 = vand.u32 %v447, 4294901760
        %2074 = vmatmul.f32.gmra.mxu0 %v2073
        %v2075 = vpop.f32.mrf.mxu0
        %v2076 = vadd.f32 %v2027, %v2075
        %v2077 = vand.u32 %v450, 4294901760
        %2078 = vmatmul.f32.gmra.mxu0 %v2077
        %v2079 = vpop.f32.mrf.mxu0
        %v2080 = vadd.f32 %v2033, %v2079
        %v2081 = vand.u32 %v453, 4294901760
        %2082 = vmatmul.f32.gmra.mxu0 %v2081
        %v2083 = vpop.f32.mrf.mxu0
        %v2084 = vadd.f32 %v2039, %v2083
        %2085 = vdwg.mxu0
        %2086 = vmatpush.msra.mxu0 0.0
        %2087 = vmatpush.msra.mxu0 0.0
        %2088 = vmatpush.msra.mxu0 0.0
        %2089 = vmatpush.msra.mxu0 0.0
        %2090 = vmatpush.msra.mxu0 0.0
        %2091 = vmatpush.msra.mxu0 0.0
        %2092 = vmatpush.msra.mxu0 0.0
        %2093 = vmatpush.msra.mxu0 0.0
        %2094 = vmatpush.msra.mxu0 0.0
        %2095 = vmatpush.msra.mxu0 0.0
        %2096 = vmatpush.msra.mxu0 0.0
        %2097 = vmatpush.msra.mxu0 0.0
        %v2098 = vand.u32 %v431, 4294901760
        %2099 = vmatpush.msra.mxu0 %v2098
        %v2100 = vand.u32 %v415, 4294901760
        %2101 = vmatpush.msra.mxu0 %v2100
        %v2102 = vand.u32 %v399, 4294901760
        %2103 = vmatpush.msra.mxu0 %v2102
        %v2104 = vand.u32 %v383, 4294901760
        %2105 = vmatpush.msra.mxu0 %v2104
        %v2106 = vand.u32 %v444, 4294901760
        %2107 = vmatmul.f32.gmra.mxu0 %v2106
        %v2108 = vpop.f32.mrf.mxu0
        %v2109 = vadd.f32 %v2072, %v2108
        %v2110 = vand.u32 %v447, 4294901760
        %2111 = vmatmul.f32.gmra.mxu0 %v2110
        %v2112 = vpop.f32.mrf.mxu0
        %v2113 = vadd.f32 %v2076, %v2112
        %v2114 = vand.u32 %v450, 4294901760
        %2115 = vmatmul.f32.gmra.mxu0 %v2114
        %v2116 = vpop.f32.mrf.mxu0
        %v2117 = vadd.f32 %v2080, %v2116
        %v2118 = vand.u32 %v453, 4294901760
        %2119 = vmatmul.f32.gmra.mxu0 %v2118
        %v2120 = vpop.f32.mrf.mxu0
        %v2121 = vadd.f32 %v2084, %v2120
        %2122 = vdwg.mxu0
        %2123 = vmatpush.msra.mxu0 0.0
        %2124 = vmatpush.msra.mxu0 0.0
        %2125 = vmatpush.msra.mxu0 0.0
        %2126 = vmatpush.msra.mxu0 0.0
        %2127 = vmatpush.msra.mxu0 0.0
        %2128 = vmatpush.msra.mxu0 0.0
        %2129 = vmatpush.msra.mxu0 0.0
        %2130 = vmatpush.msra.mxu0 0.0
        %2131 = vmatpush.msra.mxu0 0.0
        %2132 = vmatpush.msra.mxu0 0.0
        %2133 = vmatpush.msra.mxu0 0.0
        %2134 = vmatpush.msra.mxu0 0.0
        %v2135 = vand.u32 %v432, 4294901760
        %2136 = vmatpush.msra.mxu0 %v2135
        %v2137 = vand.u32 %v416, 4294901760
        %2138 = vmatpush.msra.mxu0 %v2137
        %v2139 = vand.u32 %v400, 4294901760
        %2140 = vmatpush.msra.mxu0 %v2139
        %v2141 = vand.u32 %v384, 4294901760
        %2142 = vmatpush.msra.mxu0 %v2141
        %v2143 = vand.u32 %v444, 4294901760
        %v2144 = vsub.f32 %v444, %v2143
        %v2145 = vand.u32 %v2144, 4294901760
        %v2146 = vsub.f32 %v2144, %v2145
        %v2147 = vand.u32 %v2146, 4294901760
        %2148 = vmatmul.f32.gmra.mxu0 %v2147
        %v2149 = vpop.f32.mrf.mxu0
        %v2150 = vadd.f32 0.0, %v2149
        %v2151 = vand.u32 %v447, 4294901760
        %v2152 = vsub.f32 %v447, %v2151
        %v2153 = vand.u32 %v2152, 4294901760
        %v2154 = vsub.f32 %v2152, %v2153
        %v2155 = vand.u32 %v2154, 4294901760
        %2156 = vmatmul.f32.gmra.mxu0 %v2155
        %v2157 = vpop.f32.mrf.mxu0
        %v2158 = vadd.f32 0.0, %v2157
        %v2159 = vand.u32 %v450, 4294901760
        %v2160 = vsub.f32 %v450, %v2159
        %v2161 = vand.u32 %v2160, 4294901760
        %v2162 = vsub.f32 %v2160, %v2161
        %v2163 = vand.u32 %v2162, 4294901760
        %2164 = vmatmul.f32.gmra.mxu0 %v2163
        %v2165 = vpop.f32.mrf.mxu0
        %v2166 = vadd.f32 0.0, %v2165
        %v2167 = vand.u32 %v453, 4294901760
        %v2168 = vsub.f32 %v453, %v2167
        %v2169 = vand.u32 %v2168, 4294901760
        %v2170 = vsub.f32 %v2168, %v2169
        %v2171 = vand.u32 %v2170, 4294901760
        %2172 = vmatmul.f32.gmra.mxu0 %v2171
        %v2173 = vpop.f32.mrf.mxu0
        %v2174 = vadd.f32 0.0, %v2173
        %2175 = vdwg.mxu0
        %2176 = vmatpush.msra.mxu0 0.0
        %2177 = vmatpush.msra.mxu0 0.0
        %2178 = vmatpush.msra.mxu0 0.0
        %2179 = vmatpush.msra.mxu0 0.0
        %2180 = vmatpush.msra.mxu0 0.0
        %2181 = vmatpush.msra.mxu0 0.0
        %2182 = vmatpush.msra.mxu0 0.0
        %2183 = vmatpush.msra.mxu0 0.0
        %2184 = vmatpush.msra.mxu0 0.0
        %2185 = vmatpush.msra.mxu0 0.0
        %2186 = vmatpush.msra.mxu0 0.0
        %2187 = vmatpush.msra.mxu0 0.0
        %v2188 = vand.u32 %v432, 4294901760
        %v2189 = vsub.f32 %v432, %v2188
        %v2190 = vand.u32 %v2189, 4294901760
        %v2191 = vsub.f32 %v2189, %v2190
        %v2192 = vand.u32 %v2191, 4294901760
        %2193 = vmatpush.msra.mxu0 %v2192
        %v2194 = vand.u32 %v416, 4294901760
        %v2195 = vsub.f32 %v416, %v2194
        %v2196 = vand.u32 %v2195, 4294901760
        %v2197 = vsub.f32 %v2195, %v2196
        %v2198 = vand.u32 %v2197, 4294901760
        %2199 = vmatpush.msra.mxu0 %v2198
        %v2200 = vand.u32 %v400, 4294901760
        %v2201 = vsub.f32 %v400, %v2200
        %v2202 = vand.u32 %v2201, 4294901760
        %v2203 = vsub.f32 %v2201, %v2202
        %v2204 = vand.u32 %v2203, 4294901760
        %2205 = vmatpush.msra.mxu0 %v2204
        %v2206 = vand.u32 %v384, 4294901760
        %v2207 = vsub.f32 %v384, %v2206
        %v2208 = vand.u32 %v2207, 4294901760
        %v2209 = vsub.f32 %v2207, %v2208
        %v2210 = vand.u32 %v2209, 4294901760
        %2211 = vmatpush.msra.mxu0 %v2210
        %v2212 = vand.u32 %v444, 4294901760
        %2213 = vmatmul.f32.gmra.mxu0 %v2212
        %v2214 = vpop.f32.mrf.mxu0
        %v2215 = vadd.f32 %v2150, %v2214
        %v2216 = vand.u32 %v447, 4294901760
        %2217 = vmatmul.f32.gmra.mxu0 %v2216
        %v2218 = vpop.f32.mrf.mxu0
        %v2219 = vadd.f32 %v2158, %v2218
        %v2220 = vand.u32 %v450, 4294901760
        %2221 = vmatmul.f32.gmra.mxu0 %v2220
        %v2222 = vpop.f32.mrf.mxu0
        %v2223 = vadd.f32 %v2166, %v2222
        %v2224 = vand.u32 %v453, 4294901760
        %2225 = vmatmul.f32.gmra.mxu0 %v2224
        %v2226 = vpop.f32.mrf.mxu0
        %v2227 = vadd.f32 %v2174, %v2226
        %2228 = vdwg.mxu0
        %2229 = vmatpush.msra.mxu0 0.0
        %2230 = vmatpush.msra.mxu0 0.0
        %2231 = vmatpush.msra.mxu0 0.0
        %2232 = vmatpush.msra.mxu0 0.0
        %2233 = vmatpush.msra.mxu0 0.0
        %2234 = vmatpush.msra.mxu0 0.0
        %2235 = vmatpush.msra.mxu0 0.0
        %2236 = vmatpush.msra.mxu0 0.0
        %2237 = vmatpush.msra.mxu0 0.0
        %2238 = vmatpush.msra.mxu0 0.0
        %2239 = vmatpush.msra.mxu0 0.0
        %2240 = vmatpush.msra.mxu0 0.0
        %v2241 = vand.u32 %v432, 4294901760
        %v2242 = vsub.f32 %v432, %v2241
        %2243 = vmatpush.msra.mxu0 %v2242
        %v2244 = vand.u32 %v416, 4294901760
        %v2245 = vsub.f32 %v416, %v2244
        %2246 = vmatpush.msra.mxu0 %v2245
        %v2247 = vand.u32 %v400, 4294901760
        %v2248 = vsub.f32 %v400, %v2247
        %2249 = vmatpush.msra.mxu0 %v2248
        %v2250 = vand.u32 %v384, 4294901760
        %v2251 = vsub.f32 %v384, %v2250
        %2252 = vmatpush.msra.mxu0 %v2251
        %v2253 = vand.u32 %v444, 4294901760
        %v2254 = vsub.f32 %v444, %v2253
        %2255 = vmatmul.f32.gmra.mxu0 %v2254
        %v2256 = vpop.f32.mrf.mxu0
        %v2257 = vadd.f32 %v2215, %v2256
        %v2258 = vand.u32 %v447, 4294901760
        %v2259 = vsub.f32 %v447, %v2258
        %2260 = vmatmul.f32.gmra.mxu0 %v2259
        %v2261 = vpop.f32.mrf.mxu0
        %v2262 = vadd.f32 %v2219, %v2261
        %v2263 = vand.u32 %v450, 4294901760
        %v2264 = vsub.f32 %v450, %v2263
        %2265 = vmatmul.f32.gmra.mxu0 %v2264
        %v2266 = vpop.f32.mrf.mxu0
        %v2267 = vadd.f32 %v2223, %v2266
        %v2268 = vand.u32 %v453, 4294901760
        %v2269 = vsub.f32 %v453, %v2268
        %2270 = vmatmul.f32.gmra.mxu0 %v2269
        %v2271 = vpop.f32.mrf.mxu0
        %v2272 = vadd.f32 %v2227, %v2271
        %2273 = vdwg.mxu0
        %2274 = vmatpush.msra.mxu0 0.0
        %2275 = vmatpush.msra.mxu0 0.0
        %2276 = vmatpush.msra.mxu0 0.0
        %2277 = vmatpush.msra.mxu0 0.0
        %2278 = vmatpush.msra.mxu0 0.0
        %2279 = vmatpush.msra.mxu0 0.0
        %2280 = vmatpush.msra.mxu0 0.0
        %2281 = vmatpush.msra.mxu0 0.0
        %2282 = vmatpush.msra.mxu0 0.0
        %2283 = vmatpush.msra.mxu0 0.0
        %2284 = vmatpush.msra.mxu0 0.0
        %2285 = vmatpush.msra.mxu0 0.0
        %v2286 = vand.u32 %v432, 4294901760
        %2287 = vmatpush.msra.mxu0 %v2286
        %v2288 = vand.u32 %v416, 4294901760
        %2289 = vmatpush.msra.mxu0 %v2288
        %v2290 = vand.u32 %v400, 4294901760
        %2291 = vmatpush.msra.mxu0 %v2290
        %v2292 = vand.u32 %v384, 4294901760
        %2293 = vmatpush.msra.mxu0 %v2292
        %v2294 = vand.u32 %v444, 4294901760
        %v2295 = vsub.f32 %v444, %v2294
        %v2296 = vand.u32 %v2295, 4294901760
        %2297 = vmatmul.f32.gmra.mxu0 %v2296
        %v2298 = vpop.f32.mrf.mxu0
        %v2299 = vadd.f32 %v2257, %v2298
        %v2300 = vand.u32 %v447, 4294901760
        %v2301 = vsub.f32 %v447, %v2300
        %v2302 = vand.u32 %v2301, 4294901760
        %2303 = vmatmul.f32.gmra.mxu0 %v2302
        %v2304 = vpop.f32.mrf.mxu0
        %v2305 = vadd.f32 %v2262, %v2304
        %v2306 = vand.u32 %v450, 4294901760
        %v2307 = vsub.f32 %v450, %v2306
        %v2308 = vand.u32 %v2307, 4294901760
        %2309 = vmatmul.f32.gmra.mxu0 %v2308
        %v2310 = vpop.f32.mrf.mxu0
        %v2311 = vadd.f32 %v2267, %v2310
        %v2312 = vand.u32 %v453, 4294901760
        %v2313 = vsub.f32 %v453, %v2312
        %v2314 = vand.u32 %v2313, 4294901760
        %2315 = vmatmul.f32.gmra.mxu0 %v2314
        %v2316 = vpop.f32.mrf.mxu0
        %v2317 = vadd.f32 %v2272, %v2316
        %2318 = vdwg.mxu0
        %2319 = vmatpush.msra.mxu0 0.0
        %2320 = vmatpush.msra.mxu0 0.0
        %2321 = vmatpush.msra.mxu0 0.0
        %2322 = vmatpush.msra.mxu0 0.0
        %2323 = vmatpush.msra.mxu0 0.0
        %2324 = vmatpush.msra.mxu0 0.0
        %2325 = vmatpush.msra.mxu0 0.0
        %2326 = vmatpush.msra.mxu0 0.0
        %2327 = vmatpush.msra.mxu0 0.0
        %2328 = vmatpush.msra.mxu0 0.0
        %2329 = vmatpush.msra.mxu0 0.0
        %2330 = vmatpush.msra.mxu0 0.0
        %v2331 = vand.u32 %v432, 4294901760
        %v2332 = vsub.f32 %v432, %v2331
        %v2333 = vand.u32 %v2332, 4294901760
        %2334 = vmatpush.msra.mxu0 %v2333
        %v2335 = vand.u32 %v416, 4294901760
        %v2336 = vsub.f32 %v416, %v2335
        %v2337 = vand.u32 %v2336, 4294901760
        %2338 = vmatpush.msra.mxu0 %v2337
        %v2339 = vand.u32 %v400, 4294901760
        %v2340 = vsub.f32 %v400, %v2339
        %v2341 = vand.u32 %v2340, 4294901760
        %2342 = vmatpush.msra.mxu0 %v2341
        %v2343 = vand.u32 %v384, 4294901760
        %v2344 = vsub.f32 %v384, %v2343
        %v2345 = vand.u32 %v2344, 4294901760
        %2346 = vmatpush.msra.mxu0 %v2345
        %v2347 = vand.u32 %v444, 4294901760
        %2348 = vmatmul.f32.gmra.mxu0 %v2347
        %v2349 = vpop.f32.mrf.mxu0
        %v2350 = vadd.f32 %v2299, %v2349
        %v2351 = vand.u32 %v447, 4294901760
        %2352 = vmatmul.f32.gmra.mxu0 %v2351
        %v2353 = vpop.f32.mrf.mxu0
        %v2354 = vadd.f32 %v2305, %v2353
        %v2355 = vand.u32 %v450, 4294901760
        %2356 = vmatmul.f32.gmra.mxu0 %v2355
        %v2357 = vpop.f32.mrf.mxu0
        %v2358 = vadd.f32 %v2311, %v2357
        %v2359 = vand.u32 %v453, 4294901760
        %2360 = vmatmul.f32.gmra.mxu0 %v2359
        %v2361 = vpop.f32.mrf.mxu0
        %v2362 = vadd.f32 %v2317, %v2361
        %2363 = vdwg.mxu0
        %2364 = vmatpush.msra.mxu0 0.0
        %2365 = vmatpush.msra.mxu0 0.0
        %2366 = vmatpush.msra.mxu0 0.0
        %2367 = vmatpush.msra.mxu0 0.0
        %2368 = vmatpush.msra.mxu0 0.0
        %2369 = vmatpush.msra.mxu0 0.0
        %2370 = vmatpush.msra.mxu0 0.0
        %2371 = vmatpush.msra.mxu0 0.0
        %2372 = vmatpush.msra.mxu0 0.0
        %2373 = vmatpush.msra.mxu0 0.0
        %2374 = vmatpush.msra.mxu0 0.0
        %2375 = vmatpush.msra.mxu0 0.0
        %v2376 = vand.u32 %v432, 4294901760
        %2377 = vmatpush.msra.mxu0 %v2376
        %v2378 = vand.u32 %v416, 4294901760
        %2379 = vmatpush.msra.mxu0 %v2378
        %v2380 = vand.u32 %v400, 4294901760
        %2381 = vmatpush.msra.mxu0 %v2380
        %v2382 = vand.u32 %v384, 4294901760
        %2383 = vmatpush.msra.mxu0 %v2382
        %v2384 = vand.u32 %v444, 4294901760
        %2385 = vmatmul.f32.gmra.mxu0 %v2384
        %v2386 = vpop.f32.mrf.mxu0
        %v2387 = vadd.f32 %v2350, %v2386
        %v2388 = vand.u32 %v447, 4294901760
        %2389 = vmatmul.f32.gmra.mxu0 %v2388
        %v2390 = vpop.f32.mrf.mxu0
        %v2391 = vadd.f32 %v2354, %v2390
        %v2392 = vand.u32 %v450, 4294901760
        %2393 = vmatmul.f32.gmra.mxu0 %v2392
        %v2394 = vpop.f32.mrf.mxu0
        %v2395 = vadd.f32 %v2358, %v2394
        %v2396 = vand.u32 %v453, 4294901760
        %2397 = vmatmul.f32.gmra.mxu0 %v2396
        %v2398 = vpop.f32.mrf.mxu0
        %v2399 = vadd.f32 %v2362, %v2398
        %2400 = vdwg.mxu0
        %2401 = vmatpush.msra.mxu0 0.0
        %2402 = vmatpush.msra.mxu0 0.0
        %2403 = vmatpush.msra.mxu0 0.0
        %2404 = vmatpush.msra.mxu0 0.0
        %2405 = vmatpush.msra.mxu0 0.0
        %2406 = vmatpush.msra.mxu0 0.0
        %2407 = vmatpush.msra.mxu0 0.0
        %2408 = vmatpush.msra.mxu0 0.0
        %2409 = vmatpush.msra.mxu0 0.0
        %2410 = vmatpush.msra.mxu0 0.0
        %2411 = vmatpush.msra.mxu0 0.0
        %2412 = vmatpush.msra.mxu0 0.0
        %v2413 = vand.u32 %v433, 4294901760
        %2414 = vmatpush.msra.mxu0 %v2413
        %v2415 = vand.u32 %v417, 4294901760
        %2416 = vmatpush.msra.mxu0 %v2415
        %v2417 = vand.u32 %v401, 4294901760
        %2418 = vmatpush.msra.mxu0 %v2417
        %v2419 = vand.u32 %v385, 4294901760
        %2420 = vmatpush.msra.mxu0 %v2419
        %v2421 = vand.u32 %v444, 4294901760
        %v2422 = vsub.f32 %v444, %v2421
        %v2423 = vand.u32 %v2422, 4294901760
        %v2424 = vsub.f32 %v2422, %v2423
        %v2425 = vand.u32 %v2424, 4294901760
        %2426 = vmatmul.f32.gmra.mxu0 %v2425
        %v2427 = vpop.f32.mrf.mxu0
        %v2428 = vadd.f32 0.0, %v2427
        %v2429 = vand.u32 %v447, 4294901760
        %v2430 = vsub.f32 %v447, %v2429
        %v2431 = vand.u32 %v2430, 4294901760
        %v2432 = vsub.f32 %v2430, %v2431
        %v2433 = vand.u32 %v2432, 4294901760
        %2434 = vmatmul.f32.gmra.mxu0 %v2433
        %v2435 = vpop.f32.mrf.mxu0
        %v2436 = vadd.f32 0.0, %v2435
        %v2437 = vand.u32 %v450, 4294901760
        %v2438 = vsub.f32 %v450, %v2437
        %v2439 = vand.u32 %v2438, 4294901760
        %v2440 = vsub.f32 %v2438, %v2439
        %v2441 = vand.u32 %v2440, 4294901760
        %2442 = vmatmul.f32.gmra.mxu0 %v2441
        %v2443 = vpop.f32.mrf.mxu0
        %v2444 = vadd.f32 0.0, %v2443
        %v2445 = vand.u32 %v453, 4294901760
        %v2446 = vsub.f32 %v453, %v2445
        %v2447 = vand.u32 %v2446, 4294901760
        %v2448 = vsub.f32 %v2446, %v2447
        %v2449 = vand.u32 %v2448, 4294901760
        %2450 = vmatmul.f32.gmra.mxu0 %v2449
        %v2451 = vpop.f32.mrf.mxu0
        %v2452 = vadd.f32 0.0, %v2451
        %2453 = vdwg.mxu0
        %2454 = vmatpush.msra.mxu0 0.0
        %2455 = vmatpush.msra.mxu0 0.0
        %2456 = vmatpush.msra.mxu0 0.0
        %2457 = vmatpush.msra.mxu0 0.0
        %2458 = vmatpush.msra.mxu0 0.0
        %2459 = vmatpush.msra.mxu0 0.0
        %2460 = vmatpush.msra.mxu0 0.0
        %2461 = vmatpush.msra.mxu0 0.0
        %2462 = vmatpush.msra.mxu0 0.0
        %2463 = vmatpush.msra.mxu0 0.0
        %2464 = vmatpush.msra.mxu0 0.0
        %2465 = vmatpush.msra.mxu0 0.0
        %v2466 = vand.u32 %v433, 4294901760
        %v2467 = vsub.f32 %v433, %v2466
        %v2468 = vand.u32 %v2467, 4294901760
        %v2469 = vsub.f32 %v2467, %v2468
        %v2470 = vand.u32 %v2469, 4294901760
        %2471 = vmatpush.msra.mxu0 %v2470
        %v2472 = vand.u32 %v417, 4294901760
        %v2473 = vsub.f32 %v417, %v2472
        %v2474 = vand.u32 %v2473, 4294901760
        %v2475 = vsub.f32 %v2473, %v2474
        %v2476 = vand.u32 %v2475, 4294901760
        %2477 = vmatpush.msra.mxu0 %v2476
        %v2478 = vand.u32 %v401, 4294901760
        %v2479 = vsub.f32 %v401, %v2478
        %v2480 = vand.u32 %v2479, 4294901760
        %v2481 = vsub.f32 %v2479, %v2480
        %v2482 = vand.u32 %v2481, 4294901760
        %2483 = vmatpush.msra.mxu0 %v2482
        %v2484 = vand.u32 %v385, 4294901760
        %v2485 = vsub.f32 %v385, %v2484
        %v2486 = vand.u32 %v2485, 4294901760
        %v2487 = vsub.f32 %v2485, %v2486
        %v2488 = vand.u32 %v2487, 4294901760
        %2489 = vmatpush.msra.mxu0 %v2488
        %v2490 = vand.u32 %v444, 4294901760
        %2491 = vmatmul.f32.gmra.mxu0 %v2490
        %v2492 = vpop.f32.mrf.mxu0
        %v2493 = vadd.f32 %v2428, %v2492
        %v2494 = vand.u32 %v447, 4294901760
        %2495 = vmatmul.f32.gmra.mxu0 %v2494
        %v2496 = vpop.f32.mrf.mxu0
        %v2497 = vadd.f32 %v2436, %v2496
        %v2498 = vand.u32 %v450, 4294901760
        %2499 = vmatmul.f32.gmra.mxu0 %v2498
        %v2500 = vpop.f32.mrf.mxu0
        %v2501 = vadd.f32 %v2444, %v2500
        %v2502 = vand.u32 %v453, 4294901760
        %2503 = vmatmul.f32.gmra.mxu0 %v2502
        %v2504 = vpop.f32.mrf.mxu0
        %v2505 = vadd.f32 %v2452, %v2504
        %2506 = vdwg.mxu0
        %2507 = vmatpush.msra.mxu0 0.0
        %2508 = vmatpush.msra.mxu0 0.0
        %2509 = vmatpush.msra.mxu0 0.0
        %2510 = vmatpush.msra.mxu0 0.0
        %2511 = vmatpush.msra.mxu0 0.0
        %2512 = vmatpush.msra.mxu0 0.0
        %2513 = vmatpush.msra.mxu0 0.0
        %2514 = vmatpush.msra.mxu0 0.0
        %2515 = vmatpush.msra.mxu0 0.0
        %2516 = vmatpush.msra.mxu0 0.0
        %2517 = vmatpush.msra.mxu0 0.0
        %2518 = vmatpush.msra.mxu0 0.0
        %v2519 = vand.u32 %v433, 4294901760
        %v2520 = vsub.f32 %v433, %v2519
        %2521 = vmatpush.msra.mxu0 %v2520
        %v2522 = vand.u32 %v417, 4294901760
        %v2523 = vsub.f32 %v417, %v2522
        %2524 = vmatpush.msra.mxu0 %v2523
        %v2525 = vand.u32 %v401, 4294901760
        %v2526 = vsub.f32 %v401, %v2525
        %2527 = vmatpush.msra.mxu0 %v2526
        %v2528 = vand.u32 %v385, 4294901760
        %v2529 = vsub.f32 %v385, %v2528
        %2530 = vmatpush.msra.mxu0 %v2529
        %v2531 = vand.u32 %v444, 4294901760
        %v2532 = vsub.f32 %v444, %v2531
        %2533 = vmatmul.f32.gmra.mxu0 %v2532
        %v2534 = vpop.f32.mrf.mxu0
        %v2535 = vadd.f32 %v2493, %v2534
        %v2536 = vand.u32 %v447, 4294901760
        %v2537 = vsub.f32 %v447, %v2536
        %2538 = vmatmul.f32.gmra.mxu0 %v2537
        %v2539 = vpop.f32.mrf.mxu0
        %v2540 = vadd.f32 %v2497, %v2539
        %v2541 = vand.u32 %v450, 4294901760
        %v2542 = vsub.f32 %v450, %v2541
        %2543 = vmatmul.f32.gmra.mxu0 %v2542
        %v2544 = vpop.f32.mrf.mxu0
        %v2545 = vadd.f32 %v2501, %v2544
        %v2546 = vand.u32 %v453, 4294901760
        %v2547 = vsub.f32 %v453, %v2546
        %2548 = vmatmul.f32.gmra.mxu0 %v2547
        %v2549 = vpop.f32.mrf.mxu0
        %v2550 = vadd.f32 %v2505, %v2549
        %2551 = vdwg.mxu0
        %2552 = vmatpush.msra.mxu0 0.0
        %2553 = vmatpush.msra.mxu0 0.0
        %2554 = vmatpush.msra.mxu0 0.0
        %2555 = vmatpush.msra.mxu0 0.0
        %2556 = vmatpush.msra.mxu0 0.0
        %2557 = vmatpush.msra.mxu0 0.0
        %2558 = vmatpush.msra.mxu0 0.0
        %2559 = vmatpush.msra.mxu0 0.0
        %2560 = vmatpush.msra.mxu0 0.0
        %2561 = vmatpush.msra.mxu0 0.0
        %2562 = vmatpush.msra.mxu0 0.0
        %2563 = vmatpush.msra.mxu0 0.0
        %v2564 = vand.u32 %v433, 4294901760
        %2565 = vmatpush.msra.mxu0 %v2564
        %v2566 = vand.u32 %v417, 4294901760
        %2567 = vmatpush.msra.mxu0 %v2566
        %v2568 = vand.u32 %v401, 4294901760
        %2569 = vmatpush.msra.mxu0 %v2568
        %v2570 = vand.u32 %v385, 4294901760
        %2571 = vmatpush.msra.mxu0 %v2570
        %v2572 = vand.u32 %v444, 4294901760
        %v2573 = vsub.f32 %v444, %v2572
        %v2574 = vand.u32 %v2573, 4294901760
        %2575 = vmatmul.f32.gmra.mxu0 %v2574
        %v2576 = vpop.f32.mrf.mxu0
        %v2577 = vadd.f32 %v2535, %v2576
        %v2578 = vand.u32 %v447, 4294901760
        %v2579 = vsub.f32 %v447, %v2578
        %v2580 = vand.u32 %v2579, 4294901760
        %2581 = vmatmul.f32.gmra.mxu0 %v2580
        %v2582 = vpop.f32.mrf.mxu0
        %v2583 = vadd.f32 %v2540, %v2582
        %v2584 = vand.u32 %v450, 4294901760
        %v2585 = vsub.f32 %v450, %v2584
        %v2586 = vand.u32 %v2585, 4294901760
        %2587 = vmatmul.f32.gmra.mxu0 %v2586
        %v2588 = vpop.f32.mrf.mxu0
        %v2589 = vadd.f32 %v2545, %v2588
        %v2590 = vand.u32 %v453, 4294901760
        %v2591 = vsub.f32 %v453, %v2590
        %v2592 = vand.u32 %v2591, 4294901760
        %2593 = vmatmul.f32.gmra.mxu0 %v2592
        %v2594 = vpop.f32.mrf.mxu0
        %v2595 = vadd.f32 %v2550, %v2594
        %2596 = vdwg.mxu0
        %2597 = vmatpush.msra.mxu0 0.0
        %2598 = vmatpush.msra.mxu0 0.0
        %2599 = vmatpush.msra.mxu0 0.0
        %2600 = vmatpush.msra.mxu0 0.0
        %2601 = vmatpush.msra.mxu0 0.0
        %2602 = vmatpush.msra.mxu0 0.0
        %2603 = vmatpush.msra.mxu0 0.0
        %2604 = vmatpush.msra.mxu0 0.0
        %2605 = vmatpush.msra.mxu0 0.0
        %2606 = vmatpush.msra.mxu0 0.0
        %2607 = vmatpush.msra.mxu0 0.0
        %2608 = vmatpush.msra.mxu0 0.0
        %v2609 = vand.u32 %v433, 4294901760
        %v2610 = vsub.f32 %v433, %v2609
        %v2611 = vand.u32 %v2610, 4294901760
        %2612 = vmatpush.msra.mxu0 %v2611
        %v2613 = vand.u32 %v417, 4294901760
        %v2614 = vsub.f32 %v417, %v2613
        %v2615 = vand.u32 %v2614, 4294901760
        %2616 = vmatpush.msra.mxu0 %v2615
        %v2617 = vand.u32 %v401, 4294901760
        %v2618 = vsub.f32 %v401, %v2617
        %v2619 = vand.u32 %v2618, 4294901760
        %2620 = vmatpush.msra.mxu0 %v2619
        %v2621 = vand.u32 %v385, 4294901760
        %v2622 = vsub.f32 %v385, %v2621
        %v2623 = vand.u32 %v2622, 4294901760
        %2624 = vmatpush.msra.mxu0 %v2623
        %v2625 = vand.u32 %v444, 4294901760
        %2626 = vmatmul.f32.gmra.mxu0 %v2625
        %v2627 = vpop.f32.mrf.mxu0
        %v2628 = vadd.f32 %v2577, %v2627
        %v2629 = vand.u32 %v447, 4294901760
        %2630 = vmatmul.f32.gmra.mxu0 %v2629
        %v2631 = vpop.f32.mrf.mxu0
        %v2632 = vadd.f32 %v2583, %v2631
        %v2633 = vand.u32 %v450, 4294901760
        %2634 = vmatmul.f32.gmra.mxu0 %v2633
        %v2635 = vpop.f32.mrf.mxu0
        %v2636 = vadd.f32 %v2589, %v2635
        %v2637 = vand.u32 %v453, 4294901760
        %2638 = vmatmul.f32.gmra.mxu0 %v2637
        %v2639 = vpop.f32.mrf.mxu0
        %v2640 = vadd.f32 %v2595, %v2639
        %2641 = vdwg.mxu0
        %2642 = vmatpush.msra.mxu0 0.0
        %2643 = vmatpush.msra.mxu0 0.0
        %2644 = vmatpush.msra.mxu0 0.0
        %2645 = vmatpush.msra.mxu0 0.0
        %2646 = vmatpush.msra.mxu0 0.0
        %2647 = vmatpush.msra.mxu0 0.0
        %2648 = vmatpush.msra.mxu0 0.0
        %2649 = vmatpush.msra.mxu0 0.0
        %2650 = vmatpush.msra.mxu0 0.0
        %2651 = vmatpush.msra.mxu0 0.0
        %2652 = vmatpush.msra.mxu0 0.0
        %2653 = vmatpush.msra.mxu0 0.0
        %v2654 = vand.u32 %v433, 4294901760
        %2655 = vmatpush.msra.mxu0 %v2654
        %v2656 = vand.u32 %v417, 4294901760
        %2657 = vmatpush.msra.mxu0 %v2656
        %v2658 = vand.u32 %v401, 4294901760
        %2659 = vmatpush.msra.mxu0 %v2658
        %v2660 = vand.u32 %v385, 4294901760
        %2661 = vmatpush.msra.mxu0 %v2660
        %v2662 = vand.u32 %v444, 4294901760
        %2663 = vmatmul.f32.gmra.mxu0 %v2662
        %v2664 = vpop.f32.mrf.mxu0
        %v2665 = vadd.f32 %v2628, %v2664
        %v2666 = vand.u32 %v447, 4294901760
        %2667 = vmatmul.f32.gmra.mxu0 %v2666
        %v2668 = vpop.f32.mrf.mxu0
        %v2669 = vadd.f32 %v2632, %v2668
        %v2670 = vand.u32 %v450, 4294901760
        %2671 = vmatmul.f32.gmra.mxu0 %v2670
        %v2672 = vpop.f32.mrf.mxu0
        %v2673 = vadd.f32 %v2636, %v2672
        %v2674 = vand.u32 %v453, 4294901760
        %2675 = vmatmul.f32.gmra.mxu0 %v2674
        %v2676 = vpop.f32.mrf.mxu0
        %v2677 = vadd.f32 %v2640, %v2676
        %2678 = vdwg.mxu0
        %2679 = vmatpush.msra.mxu0 0.0
        %2680 = vmatpush.msra.mxu0 0.0
        %2681 = vmatpush.msra.mxu0 0.0
        %2682 = vmatpush.msra.mxu0 0.0
        %2683 = vmatpush.msra.mxu0 0.0
        %2684 = vmatpush.msra.mxu0 0.0
        %2685 = vmatpush.msra.mxu0 0.0
        %2686 = vmatpush.msra.mxu0 0.0
        %2687 = vmatpush.msra.mxu0 0.0
        %2688 = vmatpush.msra.mxu0 0.0
        %2689 = vmatpush.msra.mxu0 0.0
        %2690 = vmatpush.msra.mxu0 0.0
        %v2691 = vand.u32 %v434, 4294901760
        %2692 = vmatpush.msra.mxu0 %v2691
        %v2693 = vand.u32 %v418, 4294901760
        %2694 = vmatpush.msra.mxu0 %v2693
        %v2695 = vand.u32 %v402, 4294901760
        %2696 = vmatpush.msra.mxu0 %v2695
        %v2697 = vand.u32 %v386, 4294901760
        %2698 = vmatpush.msra.mxu0 %v2697
        %v2699 = vand.u32 %v444, 4294901760
        %v2700 = vsub.f32 %v444, %v2699
        %v2701 = vand.u32 %v2700, 4294901760
        %v2702 = vsub.f32 %v2700, %v2701
        %v2703 = vand.u32 %v2702, 4294901760
        %2704 = vmatmul.f32.gmra.mxu0 %v2703
        %v2705 = vpop.f32.mrf.mxu0
        %v2706 = vadd.f32 0.0, %v2705
        %v2707 = vand.u32 %v447, 4294901760
        %v2708 = vsub.f32 %v447, %v2707
        %v2709 = vand.u32 %v2708, 4294901760
        %v2710 = vsub.f32 %v2708, %v2709
        %v2711 = vand.u32 %v2710, 4294901760
        %2712 = vmatmul.f32.gmra.mxu0 %v2711
        %v2713 = vpop.f32.mrf.mxu0
        %v2714 = vadd.f32 0.0, %v2713
        %v2715 = vand.u32 %v450, 4294901760
        %v2716 = vsub.f32 %v450, %v2715
        %v2717 = vand.u32 %v2716, 4294901760
        %v2718 = vsub.f32 %v2716, %v2717
        %v2719 = vand.u32 %v2718, 4294901760
        %2720 = vmatmul.f32.gmra.mxu0 %v2719
        %v2721 = vpop.f32.mrf.mxu0
        %v2722 = vadd.f32 0.0, %v2721
        %v2723 = vand.u32 %v453, 4294901760
        %v2724 = vsub.f32 %v453, %v2723
        %v2725 = vand.u32 %v2724, 4294901760
        %v2726 = vsub.f32 %v2724, %v2725
        %v2727 = vand.u32 %v2726, 4294901760
        %2728 = vmatmul.f32.gmra.mxu0 %v2727
        %v2729 = vpop.f32.mrf.mxu0
        %v2730 = vadd.f32 0.0, %v2729
        %2731 = vdwg.mxu0
        %2732 = vmatpush.msra.mxu0 0.0
        %2733 = vmatpush.msra.mxu0 0.0
        %2734 = vmatpush.msra.mxu0 0.0
        %2735 = vmatpush.msra.mxu0 0.0
        %2736 = vmatpush.msra.mxu0 0.0
        %2737 = vmatpush.msra.mxu0 0.0
        %2738 = vmatpush.msra.mxu0 0.0
        %2739 = vmatpush.msra.mxu0 0.0
        %2740 = vmatpush.msra.mxu0 0.0
        %2741 = vmatpush.msra.mxu0 0.0
        %2742 = vmatpush.msra.mxu0 0.0
        %2743 = vmatpush.msra.mxu0 0.0
        %v2744 = vand.u32 %v434, 4294901760
        %v2745 = vsub.f32 %v434, %v2744
        %v2746 = vand.u32 %v2745, 4294901760
        %v2747 = vsub.f32 %v2745, %v2746
        %v2748 = vand.u32 %v2747, 4294901760
        %2749 = vmatpush.msra.mxu0 %v2748
        %v2750 = vand.u32 %v418, 4294901760
        %v2751 = vsub.f32 %v418, %v2750
        %v2752 = vand.u32 %v2751, 4294901760
        %v2753 = vsub.f32 %v2751, %v2752
        %v2754 = vand.u32 %v2753, 4294901760
        %2755 = vmatpush.msra.mxu0 %v2754
        %v2756 = vand.u32 %v402, 4294901760
        %v2757 = vsub.f32 %v402, %v2756
        %v2758 = vand.u32 %v2757, 4294901760
        %v2759 = vsub.f32 %v2757, %v2758
        %v2760 = vand.u32 %v2759, 4294901760
        %2761 = vmatpush.msra.mxu0 %v2760
        %v2762 = vand.u32 %v386, 4294901760
        %v2763 = vsub.f32 %v386, %v2762
        %v2764 = vand.u32 %v2763, 4294901760
        %v2765 = vsub.f32 %v2763, %v2764
        %v2766 = vand.u32 %v2765, 4294901760
        %2767 = vmatpush.msra.mxu0 %v2766
        %v2768 = vand.u32 %v444, 4294901760
        %2769 = vmatmul.f32.gmra.mxu0 %v2768
        %v2770 = vpop.f32.mrf.mxu0
        %v2771 = vadd.f32 %v2706, %v2770
        %v2772 = vand.u32 %v447, 4294901760
        %2773 = vmatmul.f32.gmra.mxu0 %v2772
        %v2774 = vpop.f32.mrf.mxu0
        %v2775 = vadd.f32 %v2714, %v2774
        %v2776 = vand.u32 %v450, 4294901760
        %2777 = vmatmul.f32.gmra.mxu0 %v2776
        %v2778 = vpop.f32.mrf.mxu0
        %v2779 = vadd.f32 %v2722, %v2778
        %v2780 = vand.u32 %v453, 4294901760
        %2781 = vmatmul.f32.gmra.mxu0 %v2780
        %v2782 = vpop.f32.mrf.mxu0
        %v2783 = vadd.f32 %v2730, %v2782
        %2784 = vdwg.mxu0
        %2785 = vmatpush.msra.mxu0 0.0
        %2786 = vmatpush.msra.mxu0 0.0
        %2787 = vmatpush.msra.mxu0 0.0
        %2788 = vmatpush.msra.mxu0 0.0
        %2789 = vmatpush.msra.mxu0 0.0
        %2790 = vmatpush.msra.mxu0 0.0
        %2791 = vmatpush.msra.mxu0 0.0
        %2792 = vmatpush.msra.mxu0 0.0
        %2793 = vmatpush.msra.mxu0 0.0
        %2794 = vmatpush.msra.mxu0 0.0
        %2795 = vmatpush.msra.mxu0 0.0
        %2796 = vmatpush.msra.mxu0 0.0
        %v2797 = vand.u32 %v434, 4294901760
        %v2798 = vsub.f32 %v434, %v2797
        %2799 = vmatpush.msra.mxu0 %v2798
        %v2800 = vand.u32 %v418, 4294901760
        %v2801 = vsub.f32 %v418, %v2800
        %2802 = vmatpush.msra.mxu0 %v2801
        %v2803 = vand.u32 %v402, 4294901760
        %v2804 = vsub.f32 %v402, %v2803
        %2805 = vmatpush.msra.mxu0 %v2804
        %v2806 = vand.u32 %v386, 4294901760
        %v2807 = vsub.f32 %v386, %v2806
        %2808 = vmatpush.msra.mxu0 %v2807
        %v2809 = vand.u32 %v444, 4294901760
        %v2810 = vsub.f32 %v444, %v2809
        %2811 = vmatmul.f32.gmra.mxu0 %v2810
        %v2812 = vpop.f32.mrf.mxu0
        %v2813 = vadd.f32 %v2771, %v2812
        %v2814 = vand.u32 %v447, 4294901760
        %v2815 = vsub.f32 %v447, %v2814
        %2816 = vmatmul.f32.gmra.mxu0 %v2815
        %v2817 = vpop.f32.mrf.mxu0
        %v2818 = vadd.f32 %v2775, %v2817
        %v2819 = vand.u32 %v450, 4294901760
        %v2820 = vsub.f32 %v450, %v2819
        %2821 = vmatmul.f32.gmra.mxu0 %v2820
        %v2822 = vpop.f32.mrf.mxu0
        %v2823 = vadd.f32 %v2779, %v2822
        %v2824 = vand.u32 %v453, 4294901760
        %v2825 = vsub.f32 %v453, %v2824
        %2826 = vmatmul.f32.gmra.mxu0 %v2825
        %v2827 = vpop.f32.mrf.mxu0
        %v2828 = vadd.f32 %v2783, %v2827
        %2829 = vdwg.mxu0
        %2830 = vmatpush.msra.mxu0 0.0
        %2831 = vmatpush.msra.mxu0 0.0
        %2832 = vmatpush.msra.mxu0 0.0
        %2833 = vmatpush.msra.mxu0 0.0
        %2834 = vmatpush.msra.mxu0 0.0
        %2835 = vmatpush.msra.mxu0 0.0
        %2836 = vmatpush.msra.mxu0 0.0
        %2837 = vmatpush.msra.mxu0 0.0
        %2838 = vmatpush.msra.mxu0 0.0
        %2839 = vmatpush.msra.mxu0 0.0
        %2840 = vmatpush.msra.mxu0 0.0
        %2841 = vmatpush.msra.mxu0 0.0
        %v2842 = vand.u32 %v434, 4294901760
        %2843 = vmatpush.msra.mxu0 %v2842
        %v2844 = vand.u32 %v418, 4294901760
        %2845 = vmatpush.msra.mxu0 %v2844
        %v2846 = vand.u32 %v402, 4294901760
        %2847 = vmatpush.msra.mxu0 %v2846
        %v2848 = vand.u32 %v386, 4294901760
        %2849 = vmatpush.msra.mxu0 %v2848
        %v2850 = vand.u32 %v444, 4294901760
        %v2851 = vsub.f32 %v444, %v2850
        %v2852 = vand.u32 %v2851, 4294901760
        %2853 = vmatmul.f32.gmra.mxu0 %v2852
        %v2854 = vpop.f32.mrf.mxu0
        %v2855 = vadd.f32 %v2813, %v2854
        %v2856 = vand.u32 %v447, 4294901760
        %v2857 = vsub.f32 %v447, %v2856
        %v2858 = vand.u32 %v2857, 4294901760
        %2859 = vmatmul.f32.gmra.mxu0 %v2858
        %v2860 = vpop.f32.mrf.mxu0
        %v2861 = vadd.f32 %v2818, %v2860
        %v2862 = vand.u32 %v450, 4294901760
        %v2863 = vsub.f32 %v450, %v2862
        %v2864 = vand.u32 %v2863, 4294901760
        %2865 = vmatmul.f32.gmra.mxu0 %v2864
        %v2866 = vpop.f32.mrf.mxu0
        %v2867 = vadd.f32 %v2823, %v2866
        %v2868 = vand.u32 %v453, 4294901760
        %v2869 = vsub.f32 %v453, %v2868
        %v2870 = vand.u32 %v2869, 4294901760
        %2871 = vmatmul.f32.gmra.mxu0 %v2870
        %v2872 = vpop.f32.mrf.mxu0
        %v2873 = vadd.f32 %v2828, %v2872
        %2874 = vdwg.mxu0
        %2875 = vmatpush.msra.mxu0 0.0
        %2876 = vmatpush.msra.mxu0 0.0
        %2877 = vmatpush.msra.mxu0 0.0
        %2878 = vmatpush.msra.mxu0 0.0
        %2879 = vmatpush.msra.mxu0 0.0
        %2880 = vmatpush.msra.mxu0 0.0
        %2881 = vmatpush.msra.mxu0 0.0
        %2882 = vmatpush.msra.mxu0 0.0
        %2883 = vmatpush.msra.mxu0 0.0
        %2884 = vmatpush.msra.mxu0 0.0
        %2885 = vmatpush.msra.mxu0 0.0
        %2886 = vmatpush.msra.mxu0 0.0
        %v2887 = vand.u32 %v434, 4294901760
        %v2888 = vsub.f32 %v434, %v2887
        %v2889 = vand.u32 %v2888, 4294901760
        %2890 = vmatpush.msra.mxu0 %v2889
        %v2891 = vand.u32 %v418, 4294901760
        %v2892 = vsub.f32 %v418, %v2891
        %v2893 = vand.u32 %v2892, 4294901760
        %2894 = vmatpush.msra.mxu0 %v2893
        %v2895 = vand.u32 %v402, 4294901760
        %v2896 = vsub.f32 %v402, %v2895
        %v2897 = vand.u32 %v2896, 4294901760
        %2898 = vmatpush.msra.mxu0 %v2897
        %v2899 = vand.u32 %v386, 4294901760
        %v2900 = vsub.f32 %v386, %v2899
        %v2901 = vand.u32 %v2900, 4294901760
        %2902 = vmatpush.msra.mxu0 %v2901
        %v2903 = vand.u32 %v444, 4294901760
        %2904 = vmatmul.f32.gmra.mxu0 %v2903
        %v2905 = vpop.f32.mrf.mxu0
        %v2906 = vadd.f32 %v2855, %v2905
        %v2907 = vand.u32 %v447, 4294901760
        %2908 = vmatmul.f32.gmra.mxu0 %v2907
        %v2909 = vpop.f32.mrf.mxu0
        %v2910 = vadd.f32 %v2861, %v2909
        %v2911 = vand.u32 %v450, 4294901760
        %2912 = vmatmul.f32.gmra.mxu0 %v2911
        %v2913 = vpop.f32.mrf.mxu0
        %v2914 = vadd.f32 %v2867, %v2913
        %v2915 = vand.u32 %v453, 4294901760
        %2916 = vmatmul.f32.gmra.mxu0 %v2915
        %v2917 = vpop.f32.mrf.mxu0
        %v2918 = vadd.f32 %v2873, %v2917
        %2919 = vdwg.mxu0
        %2920 = vmatpush.msra.mxu0 0.0
        %2921 = vmatpush.msra.mxu0 0.0
        %2922 = vmatpush.msra.mxu0 0.0
        %2923 = vmatpush.msra.mxu0 0.0
        %2924 = vmatpush.msra.mxu0 0.0
        %2925 = vmatpush.msra.mxu0 0.0
        %2926 = vmatpush.msra.mxu0 0.0
        %2927 = vmatpush.msra.mxu0 0.0
        %2928 = vmatpush.msra.mxu0 0.0
        %2929 = vmatpush.msra.mxu0 0.0
        %2930 = vmatpush.msra.mxu0 0.0
        %2931 = vmatpush.msra.mxu0 0.0
        %v2932 = vand.u32 %v434, 4294901760
        %2933 = vmatpush.msra.mxu0 %v2932
        %v2934 = vand.u32 %v418, 4294901760
        %2935 = vmatpush.msra.mxu0 %v2934
        %v2936 = vand.u32 %v402, 4294901760
        %2937 = vmatpush.msra.mxu0 %v2936
        %v2938 = vand.u32 %v386, 4294901760
        %2939 = vmatpush.msra.mxu0 %v2938
        %v2940 = vand.u32 %v444, 4294901760
        %2941 = vmatmul.f32.gmra.mxu0 %v2940
        %v2942 = vpop.f32.mrf.mxu0
        %v2943 = vadd.f32 %v2906, %v2942
        %v2944 = vand.u32 %v447, 4294901760
        %2945 = vmatmul.f32.gmra.mxu0 %v2944
        %v2946 = vpop.f32.mrf.mxu0
        %v2947 = vadd.f32 %v2910, %v2946
        %v2948 = vand.u32 %v450, 4294901760
        %2949 = vmatmul.f32.gmra.mxu0 %v2948
        %v2950 = vpop.f32.mrf.mxu0
        %v2951 = vadd.f32 %v2914, %v2950
        %v2952 = vand.u32 %v453, 4294901760
        %2953 = vmatmul.f32.gmra.mxu0 %v2952
        %v2954 = vpop.f32.mrf.mxu0
        %v2955 = vadd.f32 %v2918, %v2954
        %2956 = vdwg.mxu0
        %2957 = vmatpush.msra.mxu0 0.0
        %2958 = vmatpush.msra.mxu0 0.0
        %2959 = vmatpush.msra.mxu0 0.0
        %2960 = vmatpush.msra.mxu0 0.0
        %2961 = vmatpush.msra.mxu0 0.0
        %2962 = vmatpush.msra.mxu0 0.0
        %2963 = vmatpush.msra.mxu0 0.0
        %2964 = vmatpush.msra.mxu0 0.0
        %2965 = vmatpush.msra.mxu0 0.0
        %2966 = vmatpush.msra.mxu0 0.0
        %2967 = vmatpush.msra.mxu0 0.0
        %2968 = vmatpush.msra.mxu0 0.0
        %v2969 = vand.u32 %v435, 4294901760
        %2970 = vmatpush.msra.mxu0 %v2969
        %v2971 = vand.u32 %v419, 4294901760
        %2972 = vmatpush.msra.mxu0 %v2971
        %v2973 = vand.u32 %v403, 4294901760
        %2974 = vmatpush.msra.mxu0 %v2973
        %v2975 = vand.u32 %v387, 4294901760
        %2976 = vmatpush.msra.mxu0 %v2975
        %v2977 = vand.u32 %v444, 4294901760
        %v2978 = vsub.f32 %v444, %v2977
        %v2979 = vand.u32 %v2978, 4294901760
        %v2980 = vsub.f32 %v2978, %v2979
        %v2981 = vand.u32 %v2980, 4294901760
        %2982 = vmatmul.f32.gmra.mxu0 %v2981
        %v2983 = vpop.f32.mrf.mxu0
        %v2984 = vadd.f32 0.0, %v2983
        %v2985 = vand.u32 %v447, 4294901760
        %v2986 = vsub.f32 %v447, %v2985
        %v2987 = vand.u32 %v2986, 4294901760
        %v2988 = vsub.f32 %v2986, %v2987
        %v2989 = vand.u32 %v2988, 4294901760
        %2990 = vmatmul.f32.gmra.mxu0 %v2989
        %v2991 = vpop.f32.mrf.mxu0
        %v2992 = vadd.f32 0.0, %v2991
        %v2993 = vand.u32 %v450, 4294901760
        %v2994 = vsub.f32 %v450, %v2993
        %v2995 = vand.u32 %v2994, 4294901760
        %v2996 = vsub.f32 %v2994, %v2995
        %v2997 = vand.u32 %v2996, 4294901760
        %2998 = vmatmul.f32.gmra.mxu0 %v2997
        %v2999 = vpop.f32.mrf.mxu0
        %v3000 = vadd.f32 0.0, %v2999
        %v3001 = vand.u32 %v453, 4294901760
        %v3002 = vsub.f32 %v453, %v3001
        %v3003 = vand.u32 %v3002, 4294901760
        %v3004 = vsub.f32 %v3002, %v3003
        %v3005 = vand.u32 %v3004, 4294901760
        %3006 = vmatmul.f32.gmra.mxu0 %v3005
        %v3007 = vpop.f32.mrf.mxu0
        %v3008 = vadd.f32 0.0, %v3007
        %3009 = vdwg.mxu0
        %3010 = vmatpush.msra.mxu0 0.0
        %3011 = vmatpush.msra.mxu0 0.0
        %3012 = vmatpush.msra.mxu0 0.0
        %3013 = vmatpush.msra.mxu0 0.0
        %3014 = vmatpush.msra.mxu0 0.0
        %3015 = vmatpush.msra.mxu0 0.0
        %3016 = vmatpush.msra.mxu0 0.0
        %3017 = vmatpush.msra.mxu0 0.0
        %3018 = vmatpush.msra.mxu0 0.0
        %3019 = vmatpush.msra.mxu0 0.0
        %3020 = vmatpush.msra.mxu0 0.0
        %3021 = vmatpush.msra.mxu0 0.0
        %v3022 = vand.u32 %v435, 4294901760
        %v3023 = vsub.f32 %v435, %v3022
        %v3024 = vand.u32 %v3023, 4294901760
        %v3025 = vsub.f32 %v3023, %v3024
        %v3026 = vand.u32 %v3025, 4294901760
        %3027 = vmatpush.msra.mxu0 %v3026
        %v3028 = vand.u32 %v419, 4294901760
        %v3029 = vsub.f32 %v419, %v3028
        %v3030 = vand.u32 %v3029, 4294901760
        %v3031 = vsub.f32 %v3029, %v3030
        %v3032 = vand.u32 %v3031, 4294901760
        %3033 = vmatpush.msra.mxu0 %v3032
        %v3034 = vand.u32 %v403, 4294901760
        %v3035 = vsub.f32 %v403, %v3034
        %v3036 = vand.u32 %v3035, 4294901760
        %v3037 = vsub.f32 %v3035, %v3036
        %v3038 = vand.u32 %v3037, 4294901760
        %3039 = vmatpush.msra.mxu0 %v3038
        %v3040 = vand.u32 %v387, 4294901760
        %v3041 = vsub.f32 %v387, %v3040
        %v3042 = vand.u32 %v3041, 4294901760
        %v3043 = vsub.f32 %v3041, %v3042
        %v3044 = vand.u32 %v3043, 4294901760
        %3045 = vmatpush.msra.mxu0 %v3044
        %v3046 = vand.u32 %v444, 4294901760
        %3047 = vmatmul.f32.gmra.mxu0 %v3046
        %v3048 = vpop.f32.mrf.mxu0
        %v3049 = vadd.f32 %v2984, %v3048
        %v3050 = vand.u32 %v447, 4294901760
        %3051 = vmatmul.f32.gmra.mxu0 %v3050
        %v3052 = vpop.f32.mrf.mxu0
        %v3053 = vadd.f32 %v2992, %v3052
        %v3054 = vand.u32 %v450, 4294901760
        %3055 = vmatmul.f32.gmra.mxu0 %v3054
        %v3056 = vpop.f32.mrf.mxu0
        %v3057 = vadd.f32 %v3000, %v3056
        %v3058 = vand.u32 %v453, 4294901760
        %3059 = vmatmul.f32.gmra.mxu0 %v3058
        %v3060 = vpop.f32.mrf.mxu0
        %v3061 = vadd.f32 %v3008, %v3060
        %3062 = vdwg.mxu0
        %3063 = vmatpush.msra.mxu0 0.0
        %3064 = vmatpush.msra.mxu0 0.0
        %3065 = vmatpush.msra.mxu0 0.0
        %3066 = vmatpush.msra.mxu0 0.0
        %3067 = vmatpush.msra.mxu0 0.0
        %3068 = vmatpush.msra.mxu0 0.0
        %3069 = vmatpush.msra.mxu0 0.0
        %3070 = vmatpush.msra.mxu0 0.0
        %3071 = vmatpush.msra.mxu0 0.0
        %3072 = vmatpush.msra.mxu0 0.0
        %3073 = vmatpush.msra.mxu0 0.0
        %3074 = vmatpush.msra.mxu0 0.0
        %v3075 = vand.u32 %v435, 4294901760
        %v3076 = vsub.f32 %v435, %v3075
        %3077 = vmatpush.msra.mxu0 %v3076
        %v3078 = vand.u32 %v419, 4294901760
        %v3079 = vsub.f32 %v419, %v3078
        %3080 = vmatpush.msra.mxu0 %v3079
        %v3081 = vand.u32 %v403, 4294901760
        %v3082 = vsub.f32 %v403, %v3081
        %3083 = vmatpush.msra.mxu0 %v3082
        %v3084 = vand.u32 %v387, 4294901760
        %v3085 = vsub.f32 %v387, %v3084
        %3086 = vmatpush.msra.mxu0 %v3085
        %v3087 = vand.u32 %v444, 4294901760
        %v3088 = vsub.f32 %v444, %v3087
        %3089 = vmatmul.f32.gmra.mxu0 %v3088
        %v3090 = vpop.f32.mrf.mxu0
        %v3091 = vadd.f32 %v3049, %v3090
        %v3092 = vand.u32 %v447, 4294901760
        %v3093 = vsub.f32 %v447, %v3092
        %3094 = vmatmul.f32.gmra.mxu0 %v3093
        %v3095 = vpop.f32.mrf.mxu0
        %v3096 = vadd.f32 %v3053, %v3095
        %v3097 = vand.u32 %v450, 4294901760
        %v3098 = vsub.f32 %v450, %v3097
        %3099 = vmatmul.f32.gmra.mxu0 %v3098
        %v3100 = vpop.f32.mrf.mxu0
        %v3101 = vadd.f32 %v3057, %v3100
        %v3102 = vand.u32 %v453, 4294901760
        %v3103 = vsub.f32 %v453, %v3102
        %3104 = vmatmul.f32.gmra.mxu0 %v3103
        %v3105 = vpop.f32.mrf.mxu0
        %v3106 = vadd.f32 %v3061, %v3105
        %3107 = vdwg.mxu0
        %3108 = vmatpush.msra.mxu0 0.0
        %3109 = vmatpush.msra.mxu0 0.0
        %3110 = vmatpush.msra.mxu0 0.0
        %3111 = vmatpush.msra.mxu0 0.0
        %3112 = vmatpush.msra.mxu0 0.0
        %3113 = vmatpush.msra.mxu0 0.0
        %3114 = vmatpush.msra.mxu0 0.0
        %3115 = vmatpush.msra.mxu0 0.0
        %3116 = vmatpush.msra.mxu0 0.0
        %3117 = vmatpush.msra.mxu0 0.0
        %3118 = vmatpush.msra.mxu0 0.0
        %3119 = vmatpush.msra.mxu0 0.0
        %v3120 = vand.u32 %v435, 4294901760
        %3121 = vmatpush.msra.mxu0 %v3120
        %v3122 = vand.u32 %v419, 4294901760
        %3123 = vmatpush.msra.mxu0 %v3122
        %v3124 = vand.u32 %v403, 4294901760
        %3125 = vmatpush.msra.mxu0 %v3124
        %v3126 = vand.u32 %v387, 4294901760
        %3127 = vmatpush.msra.mxu0 %v3126
        %v3128 = vand.u32 %v444, 4294901760
        %v3129 = vsub.f32 %v444, %v3128
        %v3130 = vand.u32 %v3129, 4294901760
        %3131 = vmatmul.f32.gmra.mxu0 %v3130
        %v3132 = vpop.f32.mrf.mxu0
        %v3133 = vadd.f32 %v3091, %v3132
        %v3134 = vand.u32 %v447, 4294901760
        %v3135 = vsub.f32 %v447, %v3134
        %v3136 = vand.u32 %v3135, 4294901760
        %3137 = vmatmul.f32.gmra.mxu0 %v3136
        %v3138 = vpop.f32.mrf.mxu0
        %v3139 = vadd.f32 %v3096, %v3138
        %v3140 = vand.u32 %v450, 4294901760
        %v3141 = vsub.f32 %v450, %v3140
        %v3142 = vand.u32 %v3141, 4294901760
        %3143 = vmatmul.f32.gmra.mxu0 %v3142
        %v3144 = vpop.f32.mrf.mxu0
        %v3145 = vadd.f32 %v3101, %v3144
        %v3146 = vand.u32 %v453, 4294901760
        %v3147 = vsub.f32 %v453, %v3146
        %v3148 = vand.u32 %v3147, 4294901760
        %3149 = vmatmul.f32.gmra.mxu0 %v3148
        %v3150 = vpop.f32.mrf.mxu0
        %v3151 = vadd.f32 %v3106, %v3150
        %3152 = vdwg.mxu0
        %3153 = vmatpush.msra.mxu0 0.0
        %3154 = vmatpush.msra.mxu0 0.0
        %3155 = vmatpush.msra.mxu0 0.0
        %3156 = vmatpush.msra.mxu0 0.0
        %3157 = vmatpush.msra.mxu0 0.0
        %3158 = vmatpush.msra.mxu0 0.0
        %3159 = vmatpush.msra.mxu0 0.0
        %3160 = vmatpush.msra.mxu0 0.0
        %3161 = vmatpush.msra.mxu0 0.0
        %3162 = vmatpush.msra.mxu0 0.0
        %3163 = vmatpush.msra.mxu0 0.0
        %3164 = vmatpush.msra.mxu0 0.0
        %v3165 = vand.u32 %v435, 4294901760
        %v3166 = vsub.f32 %v435, %v3165
        %v3167 = vand.u32 %v3166, 4294901760
        %3168 = vmatpush.msra.mxu0 %v3167
        %v3169 = vand.u32 %v419, 4294901760
        %v3170 = vsub.f32 %v419, %v3169
        %v3171 = vand.u32 %v3170, 4294901760
        %3172 = vmatpush.msra.mxu0 %v3171
        %v3173 = vand.u32 %v403, 4294901760
        %v3174 = vsub.f32 %v403, %v3173
        %v3175 = vand.u32 %v3174, 4294901760
        %3176 = vmatpush.msra.mxu0 %v3175
        %v3177 = vand.u32 %v387, 4294901760
        %v3178 = vsub.f32 %v387, %v3177
        %v3179 = vand.u32 %v3178, 4294901760
        %3180 = vmatpush.msra.mxu0 %v3179
        %v3181 = vand.u32 %v444, 4294901760
        %3182 = vmatmul.f32.gmra.mxu0 %v3181
        %v3183 = vpop.f32.mrf.mxu0
        %v3184 = vadd.f32 %v3133, %v3183
        %v3185 = vand.u32 %v447, 4294901760
        %3186 = vmatmul.f32.gmra.mxu0 %v3185
        %v3187 = vpop.f32.mrf.mxu0
        %v3188 = vadd.f32 %v3139, %v3187
        %v3189 = vand.u32 %v450, 4294901760
        %3190 = vmatmul.f32.gmra.mxu0 %v3189
        %v3191 = vpop.f32.mrf.mxu0
        %v3192 = vadd.f32 %v3145, %v3191
        %v3193 = vand.u32 %v453, 4294901760
        %3194 = vmatmul.f32.gmra.mxu0 %v3193
        %v3195 = vpop.f32.mrf.mxu0
        %v3196 = vadd.f32 %v3151, %v3195
        %3197 = vdwg.mxu0
        %3198 = vmatpush.msra.mxu0 0.0
        %3199 = vmatpush.msra.mxu0 0.0
        %3200 = vmatpush.msra.mxu0 0.0
        %3201 = vmatpush.msra.mxu0 0.0
        %3202 = vmatpush.msra.mxu0 0.0
        %3203 = vmatpush.msra.mxu0 0.0
        %3204 = vmatpush.msra.mxu0 0.0
        %3205 = vmatpush.msra.mxu0 0.0
        %3206 = vmatpush.msra.mxu0 0.0
        %3207 = vmatpush.msra.mxu0 0.0
        %3208 = vmatpush.msra.mxu0 0.0
        %3209 = vmatpush.msra.mxu0 0.0
        %v3210 = vand.u32 %v435, 4294901760
        %3211 = vmatpush.msra.mxu0 %v3210
        %v3212 = vand.u32 %v419, 4294901760
        %3213 = vmatpush.msra.mxu0 %v3212
        %v3214 = vand.u32 %v403, 4294901760
        %3215 = vmatpush.msra.mxu0 %v3214
        %v3216 = vand.u32 %v387, 4294901760
        %3217 = vmatpush.msra.mxu0 %v3216
        %v3218 = vand.u32 %v444, 4294901760
        %3219 = vmatmul.f32.gmra.mxu0 %v3218
        %v3220 = vpop.f32.mrf.mxu0
        %v3221 = vadd.f32 %v3184, %v3220
        %v3222 = vand.u32 %v447, 4294901760
        %3223 = vmatmul.f32.gmra.mxu0 %v3222
        %v3224 = vpop.f32.mrf.mxu0
        %v3225 = vadd.f32 %v3188, %v3224
        %v3226 = vand.u32 %v450, 4294901760
        %3227 = vmatmul.f32.gmra.mxu0 %v3226
        %v3228 = vpop.f32.mrf.mxu0
        %v3229 = vadd.f32 %v3192, %v3228
        %v3230 = vand.u32 %v453, 4294901760
        %3231 = vmatmul.f32.gmra.mxu0 %v3230
        %v3232 = vpop.f32.mrf.mxu0
        %v3233 = vadd.f32 %v3196, %v3232
        %3234 = vdwg.mxu0
        %3235 = vmatpush.msra.mxu0 0.0
        %3236 = vmatpush.msra.mxu0 0.0
        %3237 = vmatpush.msra.mxu0 0.0
        %3238 = vmatpush.msra.mxu0 0.0
        %3239 = vmatpush.msra.mxu0 0.0
        %3240 = vmatpush.msra.mxu0 0.0
        %3241 = vmatpush.msra.mxu0 0.0
        %3242 = vmatpush.msra.mxu0 0.0
        %3243 = vmatpush.msra.mxu0 0.0
        %3244 = vmatpush.msra.mxu0 0.0
        %3245 = vmatpush.msra.mxu0 0.0
        %3246 = vmatpush.msra.mxu0 0.0
        %v3247 = vand.u32 %v436, 4294901760
        %3248 = vmatpush.msra.mxu0 %v3247
        %v3249 = vand.u32 %v420, 4294901760
        %3250 = vmatpush.msra.mxu0 %v3249
        %v3251 = vand.u32 %v404, 4294901760
        %3252 = vmatpush.msra.mxu0 %v3251
        %v3253 = vand.u32 %v388, 4294901760
        %3254 = vmatpush.msra.mxu0 %v3253
        %v3255 = vand.u32 %v444, 4294901760
        %v3256 = vsub.f32 %v444, %v3255
        %v3257 = vand.u32 %v3256, 4294901760
        %v3258 = vsub.f32 %v3256, %v3257
        %v3259 = vand.u32 %v3258, 4294901760
        %3260 = vmatmul.f32.gmra.mxu0 %v3259
        %v3261 = vpop.f32.mrf.mxu0
        %v3262 = vadd.f32 0.0, %v3261
        %v3263 = vand.u32 %v447, 4294901760
        %v3264 = vsub.f32 %v447, %v3263
        %v3265 = vand.u32 %v3264, 4294901760
        %v3266 = vsub.f32 %v3264, %v3265
        %v3267 = vand.u32 %v3266, 4294901760
        %3268 = vmatmul.f32.gmra.mxu0 %v3267
        %v3269 = vpop.f32.mrf.mxu0
        %v3270 = vadd.f32 0.0, %v3269
        %v3271 = vand.u32 %v450, 4294901760
        %v3272 = vsub.f32 %v450, %v3271
        %v3273 = vand.u32 %v3272, 4294901760
        %v3274 = vsub.f32 %v3272, %v3273
        %v3275 = vand.u32 %v3274, 4294901760
        %3276 = vmatmul.f32.gmra.mxu0 %v3275
        %v3277 = vpop.f32.mrf.mxu0
        %v3278 = vadd.f32 0.0, %v3277
        %v3279 = vand.u32 %v453, 4294901760
        %v3280 = vsub.f32 %v453, %v3279
        %v3281 = vand.u32 %v3280, 4294901760
        %v3282 = vsub.f32 %v3280, %v3281
        %v3283 = vand.u32 %v3282, 4294901760
        %3284 = vmatmul.f32.gmra.mxu0 %v3283
        %v3285 = vpop.f32.mrf.mxu0
        %v3286 = vadd.f32 0.0, %v3285
        %3287 = vdwg.mxu0
        %3288 = vmatpush.msra.mxu0 0.0
        %3289 = vmatpush.msra.mxu0 0.0
        %3290 = vmatpush.msra.mxu0 0.0
        %3291 = vmatpush.msra.mxu0 0.0
        %3292 = vmatpush.msra.mxu0 0.0
        %3293 = vmatpush.msra.mxu0 0.0
        %3294 = vmatpush.msra.mxu0 0.0
        %3295 = vmatpush.msra.mxu0 0.0
        %3296 = vmatpush.msra.mxu0 0.0
        %3297 = vmatpush.msra.mxu0 0.0
        %3298 = vmatpush.msra.mxu0 0.0
        %3299 = vmatpush.msra.mxu0 0.0
        %v3300 = vand.u32 %v436, 4294901760
        %v3301 = vsub.f32 %v436, %v3300
        %v3302 = vand.u32 %v3301, 4294901760
        %v3303 = vsub.f32 %v3301, %v3302
        %v3304 = vand.u32 %v3303, 4294901760
        %3305 = vmatpush.msra.mxu0 %v3304
        %v3306 = vand.u32 %v420, 4294901760
        %v3307 = vsub.f32 %v420, %v3306
        %v3308 = vand.u32 %v3307, 4294901760
        %v3309 = vsub.f32 %v3307, %v3308
        %v3310 = vand.u32 %v3309, 4294901760
        %3311 = vmatpush.msra.mxu0 %v3310
        %v3312 = vand.u32 %v404, 4294901760
        %v3313 = vsub.f32 %v404, %v3312
        %v3314 = vand.u32 %v3313, 4294901760
        %v3315 = vsub.f32 %v3313, %v3314
        %v3316 = vand.u32 %v3315, 4294901760
        %3317 = vmatpush.msra.mxu0 %v3316
        %v3318 = vand.u32 %v388, 4294901760
        %v3319 = vsub.f32 %v388, %v3318
        %v3320 = vand.u32 %v3319, 4294901760
        %v3321 = vsub.f32 %v3319, %v3320
        %v3322 = vand.u32 %v3321, 4294901760
        %3323 = vmatpush.msra.mxu0 %v3322
        %v3324 = vand.u32 %v444, 4294901760
        %3325 = vmatmul.f32.gmra.mxu0 %v3324
        %v3326 = vpop.f32.mrf.mxu0
        %v3327 = vadd.f32 %v3262, %v3326
        %v3328 = vand.u32 %v447, 4294901760
        %3329 = vmatmul.f32.gmra.mxu0 %v3328
        %v3330 = vpop.f32.mrf.mxu0
        %v3331 = vadd.f32 %v3270, %v3330
        %v3332 = vand.u32 %v450, 4294901760
        %3333 = vmatmul.f32.gmra.mxu0 %v3332
        %v3334 = vpop.f32.mrf.mxu0
        %v3335 = vadd.f32 %v3278, %v3334
        %v3336 = vand.u32 %v453, 4294901760
        %3337 = vmatmul.f32.gmra.mxu0 %v3336
        %v3338 = vpop.f32.mrf.mxu0
        %v3339 = vadd.f32 %v3286, %v3338
        %3340 = vdwg.mxu0
        %3341 = vmatpush.msra.mxu0 0.0
        %3342 = vmatpush.msra.mxu0 0.0
        %3343 = vmatpush.msra.mxu0 0.0
        %3344 = vmatpush.msra.mxu0 0.0
        %3345 = vmatpush.msra.mxu0 0.0
        %3346 = vmatpush.msra.mxu0 0.0
        %3347 = vmatpush.msra.mxu0 0.0
        %3348 = vmatpush.msra.mxu0 0.0
        %3349 = vmatpush.msra.mxu0 0.0
        %3350 = vmatpush.msra.mxu0 0.0
        %3351 = vmatpush.msra.mxu0 0.0
        %3352 = vmatpush.msra.mxu0 0.0
        %v3353 = vand.u32 %v436, 4294901760
        %v3354 = vsub.f32 %v436, %v3353
        %3355 = vmatpush.msra.mxu0 %v3354
        %v3356 = vand.u32 %v420, 4294901760
        %v3357 = vsub.f32 %v420, %v3356
        %3358 = vmatpush.msra.mxu0 %v3357
        %v3359 = vand.u32 %v404, 4294901760
        %v3360 = vsub.f32 %v404, %v3359
        %3361 = vmatpush.msra.mxu0 %v3360
        %v3362 = vand.u32 %v388, 4294901760
        %v3363 = vsub.f32 %v388, %v3362
        %3364 = vmatpush.msra.mxu0 %v3363
        %v3365 = vand.u32 %v444, 4294901760
        %v3366 = vsub.f32 %v444, %v3365
        %3367 = vmatmul.f32.gmra.mxu0 %v3366
        %v3368 = vpop.f32.mrf.mxu0
        %v3369 = vadd.f32 %v3327, %v3368
        %v3370 = vand.u32 %v447, 4294901760
        %v3371 = vsub.f32 %v447, %v3370
        %3372 = vmatmul.f32.gmra.mxu0 %v3371
        %v3373 = vpop.f32.mrf.mxu0
        %v3374 = vadd.f32 %v3331, %v3373
        %v3375 = vand.u32 %v450, 4294901760
        %v3376 = vsub.f32 %v450, %v3375
        %3377 = vmatmul.f32.gmra.mxu0 %v3376
        %v3378 = vpop.f32.mrf.mxu0
        %v3379 = vadd.f32 %v3335, %v3378
        %v3380 = vand.u32 %v453, 4294901760
        %v3381 = vsub.f32 %v453, %v3380
        %3382 = vmatmul.f32.gmra.mxu0 %v3381
        %v3383 = vpop.f32.mrf.mxu0
        %v3384 = vadd.f32 %v3339, %v3383
        %3385 = vdwg.mxu0
        %3386 = vmatpush.msra.mxu0 0.0
        %3387 = vmatpush.msra.mxu0 0.0
        %3388 = vmatpush.msra.mxu0 0.0
        %3389 = vmatpush.msra.mxu0 0.0
        %3390 = vmatpush.msra.mxu0 0.0
        %3391 = vmatpush.msra.mxu0 0.0
        %3392 = vmatpush.msra.mxu0 0.0
        %3393 = vmatpush.msra.mxu0 0.0
        %3394 = vmatpush.msra.mxu0 0.0
        %3395 = vmatpush.msra.mxu0 0.0
        %3396 = vmatpush.msra.mxu0 0.0
        %3397 = vmatpush.msra.mxu0 0.0
        %v3398 = vand.u32 %v436, 4294901760
        %3399 = vmatpush.msra.mxu0 %v3398
        %v3400 = vand.u32 %v420, 4294901760
        %3401 = vmatpush.msra.mxu0 %v3400
        %v3402 = vand.u32 %v404, 4294901760
        %3403 = vmatpush.msra.mxu0 %v3402
        %v3404 = vand.u32 %v388, 4294901760
        %3405 = vmatpush.msra.mxu0 %v3404
        %v3406 = vand.u32 %v444, 4294901760
        %v3407 = vsub.f32 %v444, %v3406
        %v3408 = vand.u32 %v3407, 4294901760
        %3409 = vmatmul.f32.gmra.mxu0 %v3408
        %v3410 = vpop.f32.mrf.mxu0
        %v3411 = vadd.f32 %v3369, %v3410
        %v3412 = vand.u32 %v447, 4294901760
        %v3413 = vsub.f32 %v447, %v3412
        %v3414 = vand.u32 %v3413, 4294901760
        %3415 = vmatmul.f32.gmra.mxu0 %v3414
        %v3416 = vpop.f32.mrf.mxu0
        %v3417 = vadd.f32 %v3374, %v3416
        %v3418 = vand.u32 %v450, 4294901760
        %v3419 = vsub.f32 %v450, %v3418
        %v3420 = vand.u32 %v3419, 4294901760
        %3421 = vmatmul.f32.gmra.mxu0 %v3420
        %v3422 = vpop.f32.mrf.mxu0
        %v3423 = vadd.f32 %v3379, %v3422
        %v3424 = vand.u32 %v453, 4294901760
        %v3425 = vsub.f32 %v453, %v3424
        %v3426 = vand.u32 %v3425, 4294901760
        %3427 = vmatmul.f32.gmra.mxu0 %v3426
        %v3428 = vpop.f32.mrf.mxu0
        %v3429 = vadd.f32 %v3384, %v3428
        %3430 = vdwg.mxu0
        %3431 = vmatpush.msra.mxu0 0.0
        %3432 = vmatpush.msra.mxu0 0.0
        %3433 = vmatpush.msra.mxu0 0.0
        %3434 = vmatpush.msra.mxu0 0.0
        %3435 = vmatpush.msra.mxu0 0.0
        %3436 = vmatpush.msra.mxu0 0.0
        %3437 = vmatpush.msra.mxu0 0.0
        %3438 = vmatpush.msra.mxu0 0.0
        %3439 = vmatpush.msra.mxu0 0.0
        %3440 = vmatpush.msra.mxu0 0.0
        %3441 = vmatpush.msra.mxu0 0.0
        %3442 = vmatpush.msra.mxu0 0.0
        %v3443 = vand.u32 %v436, 4294901760
        %v3444 = vsub.f32 %v436, %v3443
        %v3445 = vand.u32 %v3444, 4294901760
        %3446 = vmatpush.msra.mxu0 %v3445
        %v3447 = vand.u32 %v420, 4294901760
        %v3448 = vsub.f32 %v420, %v3447
        %v3449 = vand.u32 %v3448, 4294901760
        %3450 = vmatpush.msra.mxu0 %v3449
        %v3451 = vand.u32 %v404, 4294901760
        %v3452 = vsub.f32 %v404, %v3451
        %v3453 = vand.u32 %v3452, 4294901760
        %3454 = vmatpush.msra.mxu0 %v3453
        %v3455 = vand.u32 %v388, 4294901760
        %v3456 = vsub.f32 %v388, %v3455
        %v3457 = vand.u32 %v3456, 4294901760
        %3458 = vmatpush.msra.mxu0 %v3457
        %v3459 = vand.u32 %v444, 4294901760
        %3460 = vmatmul.f32.gmra.mxu0 %v3459
        %v3461 = vpop.f32.mrf.mxu0
        %v3462 = vadd.f32 %v3411, %v3461
        %v3463 = vand.u32 %v447, 4294901760
        %3464 = vmatmul.f32.gmra.mxu0 %v3463
        %v3465 = vpop.f32.mrf.mxu0
        %v3466 = vadd.f32 %v3417, %v3465
        %v3467 = vand.u32 %v450, 4294901760
        %3468 = vmatmul.f32.gmra.mxu0 %v3467
        %v3469 = vpop.f32.mrf.mxu0
        %v3470 = vadd.f32 %v3423, %v3469
        %v3471 = vand.u32 %v453, 4294901760
        %3472 = vmatmul.f32.gmra.mxu0 %v3471
        %v3473 = vpop.f32.mrf.mxu0
        %v3474 = vadd.f32 %v3429, %v3473
        %3475 = vdwg.mxu0
        %3476 = vmatpush.msra.mxu0 0.0
        %3477 = vmatpush.msra.mxu0 0.0
        %3478 = vmatpush.msra.mxu0 0.0
        %3479 = vmatpush.msra.mxu0 0.0
        %3480 = vmatpush.msra.mxu0 0.0
        %3481 = vmatpush.msra.mxu0 0.0
        %3482 = vmatpush.msra.mxu0 0.0
        %3483 = vmatpush.msra.mxu0 0.0
        %3484 = vmatpush.msra.mxu0 0.0
        %3485 = vmatpush.msra.mxu0 0.0
        %3486 = vmatpush.msra.mxu0 0.0
        %3487 = vmatpush.msra.mxu0 0.0
        %v3488 = vand.u32 %v436, 4294901760
        %3489 = vmatpush.msra.mxu0 %v3488
        %v3490 = vand.u32 %v420, 4294901760
        %3491 = vmatpush.msra.mxu0 %v3490
        %v3492 = vand.u32 %v404, 4294901760
        %3493 = vmatpush.msra.mxu0 %v3492
        %v3494 = vand.u32 %v388, 4294901760
        %3495 = vmatpush.msra.mxu0 %v3494
        %v3496 = vand.u32 %v444, 4294901760
        %3497 = vmatmul.f32.gmra.mxu0 %v3496
        %v3498 = vpop.f32.mrf.mxu0
        %v3499 = vadd.f32 %v3462, %v3498
        %v3500 = vand.u32 %v447, 4294901760
        %3501 = vmatmul.f32.gmra.mxu0 %v3500
        %v3502 = vpop.f32.mrf.mxu0
        %v3503 = vadd.f32 %v3466, %v3502
        %v3504 = vand.u32 %v450, 4294901760
        %3505 = vmatmul.f32.gmra.mxu0 %v3504
        %v3506 = vpop.f32.mrf.mxu0
        %v3507 = vadd.f32 %v3470, %v3506
        %v3508 = vand.u32 %v453, 4294901760
        %3509 = vmatmul.f32.gmra.mxu0 %v3508
        %v3510 = vpop.f32.mrf.mxu0
        %v3511 = vadd.f32 %v3474, %v3510
        %3512 = vdwg.mxu0
        %3513 = vmatpush.msra.mxu0 0.0
        %3514 = vmatpush.msra.mxu0 0.0
        %3515 = vmatpush.msra.mxu0 0.0
        %3516 = vmatpush.msra.mxu0 0.0
        %3517 = vmatpush.msra.mxu0 0.0
        %3518 = vmatpush.msra.mxu0 0.0
        %3519 = vmatpush.msra.mxu0 0.0
        %3520 = vmatpush.msra.mxu0 0.0
        %3521 = vmatpush.msra.mxu0 0.0
        %3522 = vmatpush.msra.mxu0 0.0
        %3523 = vmatpush.msra.mxu0 0.0
        %3524 = vmatpush.msra.mxu0 0.0
        %v3525 = vand.u32 %v437, 4294901760
        %3526 = vmatpush.msra.mxu0 %v3525
        %v3527 = vand.u32 %v421, 4294901760
        %3528 = vmatpush.msra.mxu0 %v3527
        %v3529 = vand.u32 %v405, 4294901760
        %3530 = vmatpush.msra.mxu0 %v3529
        %v3531 = vand.u32 %v389, 4294901760
        %3532 = vmatpush.msra.mxu0 %v3531
        %v3533 = vand.u32 %v444, 4294901760
        %v3534 = vsub.f32 %v444, %v3533
        %v3535 = vand.u32 %v3534, 4294901760
        %v3536 = vsub.f32 %v3534, %v3535
        %v3537 = vand.u32 %v3536, 4294901760
        %3538 = vmatmul.f32.gmra.mxu0 %v3537
        %v3539 = vpop.f32.mrf.mxu0
        %v3540 = vadd.f32 0.0, %v3539
        %v3541 = vand.u32 %v447, 4294901760
        %v3542 = vsub.f32 %v447, %v3541
        %v3543 = vand.u32 %v3542, 4294901760
        %v3544 = vsub.f32 %v3542, %v3543
        %v3545 = vand.u32 %v3544, 4294901760
        %3546 = vmatmul.f32.gmra.mxu0 %v3545
        %v3547 = vpop.f32.mrf.mxu0
        %v3548 = vadd.f32 0.0, %v3547
        %v3549 = vand.u32 %v450, 4294901760
        %v3550 = vsub.f32 %v450, %v3549
        %v3551 = vand.u32 %v3550, 4294901760
        %v3552 = vsub.f32 %v3550, %v3551
        %v3553 = vand.u32 %v3552, 4294901760
        %3554 = vmatmul.f32.gmra.mxu0 %v3553
        %v3555 = vpop.f32.mrf.mxu0
        %v3556 = vadd.f32 0.0, %v3555
        %v3557 = vand.u32 %v453, 4294901760
        %v3558 = vsub.f32 %v453, %v3557
        %v3559 = vand.u32 %v3558, 4294901760
        %v3560 = vsub.f32 %v3558, %v3559
        %v3561 = vand.u32 %v3560, 4294901760
        %3562 = vmatmul.f32.gmra.mxu0 %v3561
        %v3563 = vpop.f32.mrf.mxu0
        %v3564 = vadd.f32 0.0, %v3563
        %3565 = vdwg.mxu0
        %3566 = vmatpush.msra.mxu0 0.0
        %3567 = vmatpush.msra.mxu0 0.0
        %3568 = vmatpush.msra.mxu0 0.0
        %3569 = vmatpush.msra.mxu0 0.0
        %3570 = vmatpush.msra.mxu0 0.0
        %3571 = vmatpush.msra.mxu0 0.0
        %3572 = vmatpush.msra.mxu0 0.0
        %3573 = vmatpush.msra.mxu0 0.0
        %3574 = vmatpush.msra.mxu0 0.0
        %3575 = vmatpush.msra.mxu0 0.0
        %3576 = vmatpush.msra.mxu0 0.0
        %3577 = vmatpush.msra.mxu0 0.0
        %v3578 = vand.u32 %v437, 4294901760
        %v3579 = vsub.f32 %v437, %v3578
        %v3580 = vand.u32 %v3579, 4294901760
        %v3581 = vsub.f32 %v3579, %v3580
        %v3582 = vand.u32 %v3581, 4294901760
        %3583 = vmatpush.msra.mxu0 %v3582
        %v3584 = vand.u32 %v421, 4294901760
        %v3585 = vsub.f32 %v421, %v3584
        %v3586 = vand.u32 %v3585, 4294901760
        %v3587 = vsub.f32 %v3585, %v3586
        %v3588 = vand.u32 %v3587, 4294901760
        %3589 = vmatpush.msra.mxu0 %v3588
        %v3590 = vand.u32 %v405, 4294901760
        %v3591 = vsub.f32 %v405, %v3590
        %v3592 = vand.u32 %v3591, 4294901760
        %v3593 = vsub.f32 %v3591, %v3592
        %v3594 = vand.u32 %v3593, 4294901760
        %3595 = vmatpush.msra.mxu0 %v3594
        %v3596 = vand.u32 %v389, 4294901760
        %v3597 = vsub.f32 %v389, %v3596
        %v3598 = vand.u32 %v3597, 4294901760
        %v3599 = vsub.f32 %v3597, %v3598
        %v3600 = vand.u32 %v3599, 4294901760
        %3601 = vmatpush.msra.mxu0 %v3600
        %v3602 = vand.u32 %v444, 4294901760
        %3603 = vmatmul.f32.gmra.mxu0 %v3602
        %v3604 = vpop.f32.mrf.mxu0
        %v3605 = vadd.f32 %v3540, %v3604
        %v3606 = vand.u32 %v447, 4294901760
        %3607 = vmatmul.f32.gmra.mxu0 %v3606
        %v3608 = vpop.f32.mrf.mxu0
        %v3609 = vadd.f32 %v3548, %v3608
        %v3610 = vand.u32 %v450, 4294901760
        %3611 = vmatmul.f32.gmra.mxu0 %v3610
        %v3612 = vpop.f32.mrf.mxu0
        %v3613 = vadd.f32 %v3556, %v3612
        %v3614 = vand.u32 %v453, 4294901760
        %3615 = vmatmul.f32.gmra.mxu0 %v3614
        %v3616 = vpop.f32.mrf.mxu0
        %v3617 = vadd.f32 %v3564, %v3616
        %3618 = vdwg.mxu0
        %3619 = vmatpush.msra.mxu0 0.0
        %3620 = vmatpush.msra.mxu0 0.0
        %3621 = vmatpush.msra.mxu0 0.0
        %3622 = vmatpush.msra.mxu0 0.0
        %3623 = vmatpush.msra.mxu0 0.0
        %3624 = vmatpush.msra.mxu0 0.0
        %3625 = vmatpush.msra.mxu0 0.0
        %3626 = vmatpush.msra.mxu0 0.0
        %3627 = vmatpush.msra.mxu0 0.0
        %3628 = vmatpush.msra.mxu0 0.0
        %3629 = vmatpush.msra.mxu0 0.0
        %3630 = vmatpush.msra.mxu0 0.0
        %v3631 = vand.u32 %v437, 4294901760
        %v3632 = vsub.f32 %v437, %v3631
        %3633 = vmatpush.msra.mxu0 %v3632
        %v3634 = vand.u32 %v421, 4294901760
        %v3635 = vsub.f32 %v421, %v3634
        %3636 = vmatpush.msra.mxu0 %v3635
        %v3637 = vand.u32 %v405, 4294901760
        %v3638 = vsub.f32 %v405, %v3637
        %3639 = vmatpush.msra.mxu0 %v3638
        %v3640 = vand.u32 %v389, 4294901760
        %v3641 = vsub.f32 %v389, %v3640
        %3642 = vmatpush.msra.mxu0 %v3641
        %v3643 = vand.u32 %v444, 4294901760
        %v3644 = vsub.f32 %v444, %v3643
        %3645 = vmatmul.f32.gmra.mxu0 %v3644
        %v3646 = vpop.f32.mrf.mxu0
        %v3647 = vadd.f32 %v3605, %v3646
        %v3648 = vand.u32 %v447, 4294901760
        %v3649 = vsub.f32 %v447, %v3648
        %3650 = vmatmul.f32.gmra.mxu0 %v3649
        %v3651 = vpop.f32.mrf.mxu0
        %v3652 = vadd.f32 %v3609, %v3651
        %v3653 = vand.u32 %v450, 4294901760
        %v3654 = vsub.f32 %v450, %v3653
        %3655 = vmatmul.f32.gmra.mxu0 %v3654
        %v3656 = vpop.f32.mrf.mxu0
        %v3657 = vadd.f32 %v3613, %v3656
        %v3658 = vand.u32 %v453, 4294901760
        %v3659 = vsub.f32 %v453, %v3658
        %3660 = vmatmul.f32.gmra.mxu0 %v3659
        %v3661 = vpop.f32.mrf.mxu0
        %v3662 = vadd.f32 %v3617, %v3661
        %3663 = vdwg.mxu0
        %3664 = vmatpush.msra.mxu0 0.0
        %3665 = vmatpush.msra.mxu0 0.0
        %3666 = vmatpush.msra.mxu0 0.0
        %3667 = vmatpush.msra.mxu0 0.0
        %3668 = vmatpush.msra.mxu0 0.0
        %3669 = vmatpush.msra.mxu0 0.0
        %3670 = vmatpush.msra.mxu0 0.0
        %3671 = vmatpush.msra.mxu0 0.0
        %3672 = vmatpush.msra.mxu0 0.0
        %3673 = vmatpush.msra.mxu0 0.0
        %3674 = vmatpush.msra.mxu0 0.0
        %3675 = vmatpush.msra.mxu0 0.0
        %v3676 = vand.u32 %v437, 4294901760
        %3677 = vmatpush.msra.mxu0 %v3676
        %v3678 = vand.u32 %v421, 4294901760
        %3679 = vmatpush.msra.mxu0 %v3678
        %v3680 = vand.u32 %v405, 4294901760
        %3681 = vmatpush.msra.mxu0 %v3680
        %v3682 = vand.u32 %v389, 4294901760
        %3683 = vmatpush.msra.mxu0 %v3682
        %v3684 = vand.u32 %v444, 4294901760
        %v3685 = vsub.f32 %v444, %v3684
        %v3686 = vand.u32 %v3685, 4294901760
        %3687 = vmatmul.f32.gmra.mxu0 %v3686
        %v3688 = vpop.f32.mrf.mxu0
        %v3689 = vadd.f32 %v3647, %v3688
        %v3690 = vand.u32 %v447, 4294901760
        %v3691 = vsub.f32 %v447, %v3690
        %v3692 = vand.u32 %v3691, 4294901760
        %3693 = vmatmul.f32.gmra.mxu0 %v3692
        %v3694 = vpop.f32.mrf.mxu0
        %v3695 = vadd.f32 %v3652, %v3694
        %v3696 = vand.u32 %v450, 4294901760
        %v3697 = vsub.f32 %v450, %v3696
        %v3698 = vand.u32 %v3697, 4294901760
        %3699 = vmatmul.f32.gmra.mxu0 %v3698
        %v3700 = vpop.f32.mrf.mxu0
        %v3701 = vadd.f32 %v3657, %v3700
        %v3702 = vand.u32 %v453, 4294901760
        %v3703 = vsub.f32 %v453, %v3702
        %v3704 = vand.u32 %v3703, 4294901760
        %3705 = vmatmul.f32.gmra.mxu0 %v3704
        %v3706 = vpop.f32.mrf.mxu0
        %v3707 = vadd.f32 %v3662, %v3706
        %3708 = vdwg.mxu0
        %3709 = vmatpush.msra.mxu0 0.0
        %3710 = vmatpush.msra.mxu0 0.0
        %3711 = vmatpush.msra.mxu0 0.0
        %3712 = vmatpush.msra.mxu0 0.0
        %3713 = vmatpush.msra.mxu0 0.0
        %3714 = vmatpush.msra.mxu0 0.0
        %3715 = vmatpush.msra.mxu0 0.0
        %3716 = vmatpush.msra.mxu0 0.0
        %3717 = vmatpush.msra.mxu0 0.0
        %3718 = vmatpush.msra.mxu0 0.0
        %3719 = vmatpush.msra.mxu0 0.0
        %3720 = vmatpush.msra.mxu0 0.0
        %v3721 = vand.u32 %v437, 4294901760
        %v3722 = vsub.f32 %v437, %v3721
        %v3723 = vand.u32 %v3722, 4294901760
        %3724 = vmatpush.msra.mxu0 %v3723
        %v3725 = vand.u32 %v421, 4294901760
        %v3726 = vsub.f32 %v421, %v3725
        %v3727 = vand.u32 %v3726, 4294901760
        %3728 = vmatpush.msra.mxu0 %v3727
        %v3729 = vand.u32 %v405, 4294901760
        %v3730 = vsub.f32 %v405, %v3729
        %v3731 = vand.u32 %v3730, 4294901760
        %3732 = vmatpush.msra.mxu0 %v3731
        %v3733 = vand.u32 %v389, 4294901760
        %v3734 = vsub.f32 %v389, %v3733
        %v3735 = vand.u32 %v3734, 4294901760
        %3736 = vmatpush.msra.mxu0 %v3735
        %v3737 = vand.u32 %v444, 4294901760
        %3738 = vmatmul.f32.gmra.mxu0 %v3737
        %v3739 = vpop.f32.mrf.mxu0
        %v3740 = vadd.f32 %v3689, %v3739
        %v3741 = vand.u32 %v447, 4294901760
        %3742 = vmatmul.f32.gmra.mxu0 %v3741
        %v3743 = vpop.f32.mrf.mxu0
        %v3744 = vadd.f32 %v3695, %v3743
        %v3745 = vand.u32 %v450, 4294901760
        %3746 = vmatmul.f32.gmra.mxu0 %v3745
        %v3747 = vpop.f32.mrf.mxu0
        %v3748 = vadd.f32 %v3701, %v3747
        %v3749 = vand.u32 %v453, 4294901760
        %3750 = vmatmul.f32.gmra.mxu0 %v3749
        %v3751 = vpop.f32.mrf.mxu0
        %v3752 = vadd.f32 %v3707, %v3751
        %3753 = vdwg.mxu0
        %3754 = vmatpush.msra.mxu0 0.0
        %3755 = vmatpush.msra.mxu0 0.0
        %3756 = vmatpush.msra.mxu0 0.0
        %3757 = vmatpush.msra.mxu0 0.0
        %3758 = vmatpush.msra.mxu0 0.0
        %3759 = vmatpush.msra.mxu0 0.0
        %3760 = vmatpush.msra.mxu0 0.0
        %3761 = vmatpush.msra.mxu0 0.0
        %3762 = vmatpush.msra.mxu0 0.0
        %3763 = vmatpush.msra.mxu0 0.0
        %3764 = vmatpush.msra.mxu0 0.0
        %3765 = vmatpush.msra.mxu0 0.0
        %v3766 = vand.u32 %v437, 4294901760
        %3767 = vmatpush.msra.mxu0 %v3766
        %v3768 = vand.u32 %v421, 4294901760
        %3769 = vmatpush.msra.mxu0 %v3768
        %v3770 = vand.u32 %v405, 4294901760
        %3771 = vmatpush.msra.mxu0 %v3770
        %v3772 = vand.u32 %v389, 4294901760
        %3773 = vmatpush.msra.mxu0 %v3772
        %v3774 = vand.u32 %v444, 4294901760
        %3775 = vmatmul.f32.gmra.mxu0 %v3774
        %v3776 = vpop.f32.mrf.mxu0
        %v3777 = vadd.f32 %v3740, %v3776
        %v3778 = vand.u32 %v447, 4294901760
        %3779 = vmatmul.f32.gmra.mxu0 %v3778
        %v3780 = vpop.f32.mrf.mxu0
        %v3781 = vadd.f32 %v3744, %v3780
        %v3782 = vand.u32 %v450, 4294901760
        %3783 = vmatmul.f32.gmra.mxu0 %v3782
        %v3784 = vpop.f32.mrf.mxu0
        %v3785 = vadd.f32 %v3748, %v3784
        %v3786 = vand.u32 %v453, 4294901760
        %3787 = vmatmul.f32.gmra.mxu0 %v3786
        %v3788 = vpop.f32.mrf.mxu0
        %v3789 = vadd.f32 %v3752, %v3788
        %3790 = vdwg.mxu0
        %3791 = vmatpush.msra.mxu0 0.0
        %3792 = vmatpush.msra.mxu0 0.0
        %3793 = vmatpush.msra.mxu0 0.0
        %3794 = vmatpush.msra.mxu0 0.0
        %3795 = vmatpush.msra.mxu0 0.0
        %3796 = vmatpush.msra.mxu0 0.0
        %3797 = vmatpush.msra.mxu0 0.0
        %3798 = vmatpush.msra.mxu0 0.0
        %3799 = vmatpush.msra.mxu0 0.0
        %3800 = vmatpush.msra.mxu0 0.0
        %3801 = vmatpush.msra.mxu0 0.0
        %3802 = vmatpush.msra.mxu0 0.0
        %v3803 = vand.u32 %v438, 4294901760
        %3804 = vmatpush.msra.mxu0 %v3803
        %v3805 = vand.u32 %v422, 4294901760
        %3806 = vmatpush.msra.mxu0 %v3805
        %v3807 = vand.u32 %v406, 4294901760
        %3808 = vmatpush.msra.mxu0 %v3807
        %v3809 = vand.u32 %v390, 4294901760
        %3810 = vmatpush.msra.mxu0 %v3809
        %v3811 = vand.u32 %v444, 4294901760
        %v3812 = vsub.f32 %v444, %v3811
        %v3813 = vand.u32 %v3812, 4294901760
        %v3814 = vsub.f32 %v3812, %v3813
        %v3815 = vand.u32 %v3814, 4294901760
        %3816 = vmatmul.f32.gmra.mxu0 %v3815
        %v3817 = vpop.f32.mrf.mxu0
        %v3818 = vadd.f32 0.0, %v3817
        %v3819 = vand.u32 %v447, 4294901760
        %v3820 = vsub.f32 %v447, %v3819
        %v3821 = vand.u32 %v3820, 4294901760
        %v3822 = vsub.f32 %v3820, %v3821
        %v3823 = vand.u32 %v3822, 4294901760
        %3824 = vmatmul.f32.gmra.mxu0 %v3823
        %v3825 = vpop.f32.mrf.mxu0
        %v3826 = vadd.f32 0.0, %v3825
        %v3827 = vand.u32 %v450, 4294901760
        %v3828 = vsub.f32 %v450, %v3827
        %v3829 = vand.u32 %v3828, 4294901760
        %v3830 = vsub.f32 %v3828, %v3829
        %v3831 = vand.u32 %v3830, 4294901760
        %3832 = vmatmul.f32.gmra.mxu0 %v3831
        %v3833 = vpop.f32.mrf.mxu0
        %v3834 = vadd.f32 0.0, %v3833
        %v3835 = vand.u32 %v453, 4294901760
        %v3836 = vsub.f32 %v453, %v3835
        %v3837 = vand.u32 %v3836, 4294901760
        %v3838 = vsub.f32 %v3836, %v3837
        %v3839 = vand.u32 %v3838, 4294901760
        %3840 = vmatmul.f32.gmra.mxu0 %v3839
        %v3841 = vpop.f32.mrf.mxu0
        %v3842 = vadd.f32 0.0, %v3841
        %3843 = vdwg.mxu0
        %3844 = vmatpush.msra.mxu0 0.0
        %3845 = vmatpush.msra.mxu0 0.0
        %3846 = vmatpush.msra.mxu0 0.0
        %3847 = vmatpush.msra.mxu0 0.0
        %3848 = vmatpush.msra.mxu0 0.0
        %3849 = vmatpush.msra.mxu0 0.0
        %3850 = vmatpush.msra.mxu0 0.0
        %3851 = vmatpush.msra.mxu0 0.0
        %3852 = vmatpush.msra.mxu0 0.0
        %3853 = vmatpush.msra.mxu0 0.0
        %3854 = vmatpush.msra.mxu0 0.0
        %3855 = vmatpush.msra.mxu0 0.0
        %v3856 = vand.u32 %v438, 4294901760
        %v3857 = vsub.f32 %v438, %v3856
        %v3858 = vand.u32 %v3857, 4294901760
        %v3859 = vsub.f32 %v3857, %v3858
        %v3860 = vand.u32 %v3859, 4294901760
        %3861 = vmatpush.msra.mxu0 %v3860
        %v3862 = vand.u32 %v422, 4294901760
        %v3863 = vsub.f32 %v422, %v3862
        %v3864 = vand.u32 %v3863, 4294901760
        %v3865 = vsub.f32 %v3863, %v3864
        %v3866 = vand.u32 %v3865, 4294901760
        %3867 = vmatpush.msra.mxu0 %v3866
        %v3868 = vand.u32 %v406, 4294901760
        %v3869 = vsub.f32 %v406, %v3868
        %v3870 = vand.u32 %v3869, 4294901760
        %v3871 = vsub.f32 %v3869, %v3870
        %v3872 = vand.u32 %v3871, 4294901760
        %3873 = vmatpush.msra.mxu0 %v3872
        %v3874 = vand.u32 %v390, 4294901760
        %v3875 = vsub.f32 %v390, %v3874
        %v3876 = vand.u32 %v3875, 4294901760
        %v3877 = vsub.f32 %v3875, %v3876
        %v3878 = vand.u32 %v3877, 4294901760
        %3879 = vmatpush.msra.mxu0 %v3878
        %v3880 = vand.u32 %v444, 4294901760
        %3881 = vmatmul.f32.gmra.mxu0 %v3880
        %v3882 = vpop.f32.mrf.mxu0
        %v3883 = vadd.f32 %v3818, %v3882
        %v3884 = vand.u32 %v447, 4294901760
        %3885 = vmatmul.f32.gmra.mxu0 %v3884
        %v3886 = vpop.f32.mrf.mxu0
        %v3887 = vadd.f32 %v3826, %v3886
        %v3888 = vand.u32 %v450, 4294901760
        %3889 = vmatmul.f32.gmra.mxu0 %v3888
        %v3890 = vpop.f32.mrf.mxu0
        %v3891 = vadd.f32 %v3834, %v3890
        %v3892 = vand.u32 %v453, 4294901760
        %3893 = vmatmul.f32.gmra.mxu0 %v3892
        %v3894 = vpop.f32.mrf.mxu0
        %v3895 = vadd.f32 %v3842, %v3894
        %3896 = vdwg.mxu0
        %3897 = vmatpush.msra.mxu0 0.0
        %3898 = vmatpush.msra.mxu0 0.0
        %3899 = vmatpush.msra.mxu0 0.0
        %3900 = vmatpush.msra.mxu0 0.0
        %3901 = vmatpush.msra.mxu0 0.0
        %3902 = vmatpush.msra.mxu0 0.0
        %3903 = vmatpush.msra.mxu0 0.0
        %3904 = vmatpush.msra.mxu0 0.0
        %3905 = vmatpush.msra.mxu0 0.0
        %3906 = vmatpush.msra.mxu0 0.0
        %3907 = vmatpush.msra.mxu0 0.0
        %3908 = vmatpush.msra.mxu0 0.0
        %v3909 = vand.u32 %v438, 4294901760
        %v3910 = vsub.f32 %v438, %v3909
        %3911 = vmatpush.msra.mxu0 %v3910
        %v3912 = vand.u32 %v422, 4294901760
        %v3913 = vsub.f32 %v422, %v3912
        %3914 = vmatpush.msra.mxu0 %v3913
        %v3915 = vand.u32 %v406, 4294901760
        %v3916 = vsub.f32 %v406, %v3915
        %3917 = vmatpush.msra.mxu0 %v3916
        %v3918 = vand.u32 %v390, 4294901760
        %v3919 = vsub.f32 %v390, %v3918
        %3920 = vmatpush.msra.mxu0 %v3919
        %v3921 = vand.u32 %v444, 4294901760
        %v3922 = vsub.f32 %v444, %v3921
        %3923 = vmatmul.f32.gmra.mxu0 %v3922
        %v3924 = vpop.f32.mrf.mxu0
        %v3925 = vadd.f32 %v3883, %v3924
        %v3926 = vand.u32 %v447, 4294901760
        %v3927 = vsub.f32 %v447, %v3926
        %3928 = vmatmul.f32.gmra.mxu0 %v3927
        %v3929 = vpop.f32.mrf.mxu0
        %v3930 = vadd.f32 %v3887, %v3929
        %v3931 = vand.u32 %v450, 4294901760
        %v3932 = vsub.f32 %v450, %v3931
        %3933 = vmatmul.f32.gmra.mxu0 %v3932
        %v3934 = vpop.f32.mrf.mxu0
        %v3935 = vadd.f32 %v3891, %v3934
        %v3936 = vand.u32 %v453, 4294901760
        %v3937 = vsub.f32 %v453, %v3936
        %3938 = vmatmul.f32.gmra.mxu0 %v3937
        %v3939 = vpop.f32.mrf.mxu0
        %v3940 = vadd.f32 %v3895, %v3939
        %3941 = vdwg.mxu0
        %3942 = vmatpush.msra.mxu0 0.0
        %3943 = vmatpush.msra.mxu0 0.0
        %3944 = vmatpush.msra.mxu0 0.0
        %3945 = vmatpush.msra.mxu0 0.0
        %3946 = vmatpush.msra.mxu0 0.0
        %3947 = vmatpush.msra.mxu0 0.0
        %3948 = vmatpush.msra.mxu0 0.0
        %3949 = vmatpush.msra.mxu0 0.0
        %3950 = vmatpush.msra.mxu0 0.0
        %3951 = vmatpush.msra.mxu0 0.0
        %3952 = vmatpush.msra.mxu0 0.0
        %3953 = vmatpush.msra.mxu0 0.0
        %v3954 = vand.u32 %v438, 4294901760
        %3955 = vmatpush.msra.mxu0 %v3954
        %v3956 = vand.u32 %v422, 4294901760
        %3957 = vmatpush.msra.mxu0 %v3956
        %v3958 = vand.u32 %v406, 4294901760
        %3959 = vmatpush.msra.mxu0 %v3958
        %v3960 = vand.u32 %v390, 4294901760
        %3961 = vmatpush.msra.mxu0 %v3960
        %v3962 = vand.u32 %v444, 4294901760
        %v3963 = vsub.f32 %v444, %v3962
        %v3964 = vand.u32 %v3963, 4294901760
        %3965 = vmatmul.f32.gmra.mxu0 %v3964
        %v3966 = vpop.f32.mrf.mxu0
        %v3967 = vadd.f32 %v3925, %v3966
        %v3968 = vand.u32 %v447, 4294901760
        %v3969 = vsub.f32 %v447, %v3968
        %v3970 = vand.u32 %v3969, 4294901760
        %3971 = vmatmul.f32.gmra.mxu0 %v3970
        %v3972 = vpop.f32.mrf.mxu0
        %v3973 = vadd.f32 %v3930, %v3972
        %v3974 = vand.u32 %v450, 4294901760
        %v3975 = vsub.f32 %v450, %v3974
        %v3976 = vand.u32 %v3975, 4294901760
        %3977 = vmatmul.f32.gmra.mxu0 %v3976
        %v3978 = vpop.f32.mrf.mxu0
        %v3979 = vadd.f32 %v3935, %v3978
        %v3980 = vand.u32 %v453, 4294901760
        %v3981 = vsub.f32 %v453, %v3980
        %v3982 = vand.u32 %v3981, 4294901760
        %3983 = vmatmul.f32.gmra.mxu0 %v3982
        %v3984 = vpop.f32.mrf.mxu0
        %v3985 = vadd.f32 %v3940, %v3984
        %3986 = vdwg.mxu0
        %3987 = vmatpush.msra.mxu0 0.0
        %3988 = vmatpush.msra.mxu0 0.0
        %3989 = vmatpush.msra.mxu0 0.0
        %3990 = vmatpush.msra.mxu0 0.0
        %3991 = vmatpush.msra.mxu0 0.0
        %3992 = vmatpush.msra.mxu0 0.0
        %3993 = vmatpush.msra.mxu0 0.0
        %3994 = vmatpush.msra.mxu0 0.0
        %3995 = vmatpush.msra.mxu0 0.0
        %3996 = vmatpush.msra.mxu0 0.0
        %3997 = vmatpush.msra.mxu0 0.0
        %3998 = vmatpush.msra.mxu0 0.0
        %v3999 = vand.u32 %v438, 4294901760
        %v4000 = vsub.f32 %v438, %v3999
        %v4001 = vand.u32 %v4000, 4294901760
        %4002 = vmatpush.msra.mxu0 %v4001
        %v4003 = vand.u32 %v422, 4294901760
        %v4004 = vsub.f32 %v422, %v4003
        %v4005 = vand.u32 %v4004, 4294901760
        %4006 = vmatpush.msra.mxu0 %v4005
        %v4007 = vand.u32 %v406, 4294901760
        %v4008 = vsub.f32 %v406, %v4007
        %v4009 = vand.u32 %v4008, 4294901760
        %4010 = vmatpush.msra.mxu0 %v4009
        %v4011 = vand.u32 %v390, 4294901760
        %v4012 = vsub.f32 %v390, %v4011
        %v4013 = vand.u32 %v4012, 4294901760
        %4014 = vmatpush.msra.mxu0 %v4013
        %v4015 = vand.u32 %v444, 4294901760
        %4016 = vmatmul.f32.gmra.mxu0 %v4015
        %v4017 = vpop.f32.mrf.mxu0
        %v4018 = vadd.f32 %v3967, %v4017
        %v4019 = vand.u32 %v447, 4294901760
        %4020 = vmatmul.f32.gmra.mxu0 %v4019
        %v4021 = vpop.f32.mrf.mxu0
        %v4022 = vadd.f32 %v3973, %v4021
        %v4023 = vand.u32 %v450, 4294901760
        %4024 = vmatmul.f32.gmra.mxu0 %v4023
        %v4025 = vpop.f32.mrf.mxu0
        %v4026 = vadd.f32 %v3979, %v4025
        %v4027 = vand.u32 %v453, 4294901760
        %4028 = vmatmul.f32.gmra.mxu0 %v4027
        %v4029 = vpop.f32.mrf.mxu0
        %v4030 = vadd.f32 %v3985, %v4029
        %4031 = vdwg.mxu0
        %4032 = vmatpush.msra.mxu0 0.0
        %4033 = vmatpush.msra.mxu0 0.0
        %4034 = vmatpush.msra.mxu0 0.0
        %4035 = vmatpush.msra.mxu0 0.0
        %4036 = vmatpush.msra.mxu0 0.0
        %4037 = vmatpush.msra.mxu0 0.0
        %4038 = vmatpush.msra.mxu0 0.0
        %4039 = vmatpush.msra.mxu0 0.0
        %4040 = vmatpush.msra.mxu0 0.0
        %4041 = vmatpush.msra.mxu0 0.0
        %4042 = vmatpush.msra.mxu0 0.0
        %4043 = vmatpush.msra.mxu0 0.0
        %v4044 = vand.u32 %v438, 4294901760
        %4045 = vmatpush.msra.mxu0 %v4044
        %v4046 = vand.u32 %v422, 4294901760
        %4047 = vmatpush.msra.mxu0 %v4046
        %v4048 = vand.u32 %v406, 4294901760
        %4049 = vmatpush.msra.mxu0 %v4048
        %v4050 = vand.u32 %v390, 4294901760
        %4051 = vmatpush.msra.mxu0 %v4050
        %v4052 = vand.u32 %v444, 4294901760
        %4053 = vmatmul.f32.gmra.mxu0 %v4052
        %v4054 = vpop.f32.mrf.mxu0
        %v4055 = vadd.f32 %v4018, %v4054
        %v4056 = vand.u32 %v447, 4294901760
        %4057 = vmatmul.f32.gmra.mxu0 %v4056
        %v4058 = vpop.f32.mrf.mxu0
        %v4059 = vadd.f32 %v4022, %v4058
        %v4060 = vand.u32 %v450, 4294901760
        %4061 = vmatmul.f32.gmra.mxu0 %v4060
        %v4062 = vpop.f32.mrf.mxu0
        %v4063 = vadd.f32 %v4026, %v4062
        %v4064 = vand.u32 %v453, 4294901760
        %4065 = vmatmul.f32.gmra.mxu0 %v4064
        %v4066 = vpop.f32.mrf.mxu0
        %v4067 = vadd.f32 %v4030, %v4066
        %4068 = vdwg.mxu0
        %4069 = vmatpush.msra.mxu0 0.0
        %4070 = vmatpush.msra.mxu0 0.0
        %4071 = vmatpush.msra.mxu0 0.0
        %4072 = vmatpush.msra.mxu0 0.0
        %4073 = vmatpush.msra.mxu0 0.0
        %4074 = vmatpush.msra.mxu0 0.0
        %4075 = vmatpush.msra.mxu0 0.0
        %4076 = vmatpush.msra.mxu0 0.0
        %4077 = vmatpush.msra.mxu0 0.0
        %4078 = vmatpush.msra.mxu0 0.0
        %4079 = vmatpush.msra.mxu0 0.0
        %4080 = vmatpush.msra.mxu0 0.0
        %v4081 = vand.u32 %v439, 4294901760
        %4082 = vmatpush.msra.mxu0 %v4081
        %v4083 = vand.u32 %v423, 4294901760
        %4084 = vmatpush.msra.mxu0 %v4083
        %v4085 = vand.u32 %v407, 4294901760
        %4086 = vmatpush.msra.mxu0 %v4085
        %v4087 = vand.u32 %v391, 4294901760
        %4088 = vmatpush.msra.mxu0 %v4087
        %v4089 = vand.u32 %v444, 4294901760
        %v4090 = vsub.f32 %v444, %v4089
        %v4091 = vand.u32 %v4090, 4294901760
        %v4092 = vsub.f32 %v4090, %v4091
        %v4093 = vand.u32 %v4092, 4294901760
        %4094 = vmatmul.f32.gmra.mxu0 %v4093
        %v4095 = vpop.f32.mrf.mxu0
        %v4096 = vadd.f32 0.0, %v4095
        %v4097 = vand.u32 %v447, 4294901760
        %v4098 = vsub.f32 %v447, %v4097
        %v4099 = vand.u32 %v4098, 4294901760
        %v4100 = vsub.f32 %v4098, %v4099
        %v4101 = vand.u32 %v4100, 4294901760
        %4102 = vmatmul.f32.gmra.mxu0 %v4101
        %v4103 = vpop.f32.mrf.mxu0
        %v4104 = vadd.f32 0.0, %v4103
        %v4105 = vand.u32 %v450, 4294901760
        %v4106 = vsub.f32 %v450, %v4105
        %v4107 = vand.u32 %v4106, 4294901760
        %v4108 = vsub.f32 %v4106, %v4107
        %v4109 = vand.u32 %v4108, 4294901760
        %4110 = vmatmul.f32.gmra.mxu0 %v4109
        %v4111 = vpop.f32.mrf.mxu0
        %v4112 = vadd.f32 0.0, %v4111
        %v4113 = vand.u32 %v453, 4294901760
        %v4114 = vsub.f32 %v453, %v4113
        %v4115 = vand.u32 %v4114, 4294901760
        %v4116 = vsub.f32 %v4114, %v4115
        %v4117 = vand.u32 %v4116, 4294901760
        %4118 = vmatmul.f32.gmra.mxu0 %v4117
        %v4119 = vpop.f32.mrf.mxu0
        %v4120 = vadd.f32 0.0, %v4119
        %4121 = vdwg.mxu0
        %4122 = vmatpush.msra.mxu0 0.0
        %4123 = vmatpush.msra.mxu0 0.0
        %4124 = vmatpush.msra.mxu0 0.0
        %4125 = vmatpush.msra.mxu0 0.0
        %4126 = vmatpush.msra.mxu0 0.0
        %4127 = vmatpush.msra.mxu0 0.0
        %4128 = vmatpush.msra.mxu0 0.0
        %4129 = vmatpush.msra.mxu0 0.0
        %4130 = vmatpush.msra.mxu0 0.0
        %4131 = vmatpush.msra.mxu0 0.0
        %4132 = vmatpush.msra.mxu0 0.0
        %4133 = vmatpush.msra.mxu0 0.0
        %v4134 = vand.u32 %v439, 4294901760
        %v4135 = vsub.f32 %v439, %v4134
        %v4136 = vand.u32 %v4135, 4294901760
        %v4137 = vsub.f32 %v4135, %v4136
        %v4138 = vand.u32 %v4137, 4294901760
        %4139 = vmatpush.msra.mxu0 %v4138
        %v4140 = vand.u32 %v423, 4294901760
        %v4141 = vsub.f32 %v423, %v4140
        %v4142 = vand.u32 %v4141, 4294901760
        %v4143 = vsub.f32 %v4141, %v4142
        %v4144 = vand.u32 %v4143, 4294901760
        %4145 = vmatpush.msra.mxu0 %v4144
        %v4146 = vand.u32 %v407, 4294901760
        %v4147 = vsub.f32 %v407, %v4146
        %v4148 = vand.u32 %v4147, 4294901760
        %v4149 = vsub.f32 %v4147, %v4148
        %v4150 = vand.u32 %v4149, 4294901760
        %4151 = vmatpush.msra.mxu0 %v4150
        %v4152 = vand.u32 %v391, 4294901760
        %v4153 = vsub.f32 %v391, %v4152
        %v4154 = vand.u32 %v4153, 4294901760
        %v4155 = vsub.f32 %v4153, %v4154
        %v4156 = vand.u32 %v4155, 4294901760
        %4157 = vmatpush.msra.mxu0 %v4156
        %v4158 = vand.u32 %v444, 4294901760
        %4159 = vmatmul.f32.gmra.mxu0 %v4158
        %v4160 = vpop.f32.mrf.mxu0
        %v4161 = vadd.f32 %v4096, %v4160
        %v4162 = vand.u32 %v447, 4294901760
        %4163 = vmatmul.f32.gmra.mxu0 %v4162
        %v4164 = vpop.f32.mrf.mxu0
        %v4165 = vadd.f32 %v4104, %v4164
        %v4166 = vand.u32 %v450, 4294901760
        %4167 = vmatmul.f32.gmra.mxu0 %v4166
        %v4168 = vpop.f32.mrf.mxu0
        %v4169 = vadd.f32 %v4112, %v4168
        %v4170 = vand.u32 %v453, 4294901760
        %4171 = vmatmul.f32.gmra.mxu0 %v4170
        %v4172 = vpop.f32.mrf.mxu0
        %v4173 = vadd.f32 %v4120, %v4172
        %4174 = vdwg.mxu0
        %4175 = vmatpush.msra.mxu0 0.0
        %4176 = vmatpush.msra.mxu0 0.0
        %4177 = vmatpush.msra.mxu0 0.0
        %4178 = vmatpush.msra.mxu0 0.0
        %4179 = vmatpush.msra.mxu0 0.0
        %4180 = vmatpush.msra.mxu0 0.0
        %4181 = vmatpush.msra.mxu0 0.0
        %4182 = vmatpush.msra.mxu0 0.0
        %4183 = vmatpush.msra.mxu0 0.0
        %4184 = vmatpush.msra.mxu0 0.0
        %4185 = vmatpush.msra.mxu0 0.0
        %4186 = vmatpush.msra.mxu0 0.0
        %v4187 = vand.u32 %v439, 4294901760
        %v4188 = vsub.f32 %v439, %v4187
        %4189 = vmatpush.msra.mxu0 %v4188
        %v4190 = vand.u32 %v423, 4294901760
        %v4191 = vsub.f32 %v423, %v4190
        %4192 = vmatpush.msra.mxu0 %v4191
        %v4193 = vand.u32 %v407, 4294901760
        %v4194 = vsub.f32 %v407, %v4193
        %4195 = vmatpush.msra.mxu0 %v4194
        %v4196 = vand.u32 %v391, 4294901760
        %v4197 = vsub.f32 %v391, %v4196
        %4198 = vmatpush.msra.mxu0 %v4197
        %v4199 = vand.u32 %v444, 4294901760
        %v4200 = vsub.f32 %v444, %v4199
        %4201 = vmatmul.f32.gmra.mxu0 %v4200
        %v4202 = vpop.f32.mrf.mxu0
        %v4203 = vadd.f32 %v4161, %v4202
        %v4204 = vand.u32 %v447, 4294901760
        %v4205 = vsub.f32 %v447, %v4204
        %4206 = vmatmul.f32.gmra.mxu0 %v4205
        %v4207 = vpop.f32.mrf.mxu0
        %v4208 = vadd.f32 %v4165, %v4207
        %v4209 = vand.u32 %v450, 4294901760
        %v4210 = vsub.f32 %v450, %v4209
        %4211 = vmatmul.f32.gmra.mxu0 %v4210
        %v4212 = vpop.f32.mrf.mxu0
        %v4213 = vadd.f32 %v4169, %v4212
        %v4214 = vand.u32 %v453, 4294901760
        %v4215 = vsub.f32 %v453, %v4214
        %4216 = vmatmul.f32.gmra.mxu0 %v4215
        %v4217 = vpop.f32.mrf.mxu0
        %v4218 = vadd.f32 %v4173, %v4217
        %4219 = vdwg.mxu0
        %4220 = vmatpush.msra.mxu0 0.0
        %4221 = vmatpush.msra.mxu0 0.0
        %4222 = vmatpush.msra.mxu0 0.0
        %4223 = vmatpush.msra.mxu0 0.0
        %4224 = vmatpush.msra.mxu0 0.0
        %4225 = vmatpush.msra.mxu0 0.0
        %4226 = vmatpush.msra.mxu0 0.0
        %4227 = vmatpush.msra.mxu0 0.0
        %4228 = vmatpush.msra.mxu0 0.0
        %4229 = vmatpush.msra.mxu0 0.0
        %4230 = vmatpush.msra.mxu0 0.0
        %4231 = vmatpush.msra.mxu0 0.0
        %v4232 = vand.u32 %v439, 4294901760
        %4233 = vmatpush.msra.mxu0 %v4232
        %v4234 = vand.u32 %v423, 4294901760
        %4235 = vmatpush.msra.mxu0 %v4234
        %v4236 = vand.u32 %v407, 4294901760
        %4237 = vmatpush.msra.mxu0 %v4236
        %v4238 = vand.u32 %v391, 4294901760
        %4239 = vmatpush.msra.mxu0 %v4238
        %v4240 = vand.u32 %v444, 4294901760
        %v4241 = vsub.f32 %v444, %v4240
        %v4242 = vand.u32 %v4241, 4294901760
        %4243 = vmatmul.f32.gmra.mxu0 %v4242
        %v4244 = vpop.f32.mrf.mxu0
        %v4245 = vadd.f32 %v4203, %v4244
        %v4246 = vand.u32 %v447, 4294901760
        %v4247 = vsub.f32 %v447, %v4246
        %v4248 = vand.u32 %v4247, 4294901760
        %4249 = vmatmul.f32.gmra.mxu0 %v4248
        %v4250 = vpop.f32.mrf.mxu0
        %v4251 = vadd.f32 %v4208, %v4250
        %v4252 = vand.u32 %v450, 4294901760
        %v4253 = vsub.f32 %v450, %v4252
        %v4254 = vand.u32 %v4253, 4294901760
        %4255 = vmatmul.f32.gmra.mxu0 %v4254
        %v4256 = vpop.f32.mrf.mxu0
        %v4257 = vadd.f32 %v4213, %v4256
        %v4258 = vand.u32 %v453, 4294901760
        %v4259 = vsub.f32 %v453, %v4258
        %v4260 = vand.u32 %v4259, 4294901760
        %4261 = vmatmul.f32.gmra.mxu0 %v4260
        %v4262 = vpop.f32.mrf.mxu0
        %v4263 = vadd.f32 %v4218, %v4262
        %4264 = vdwg.mxu0
        %4265 = vmatpush.msra.mxu0 0.0
        %4266 = vmatpush.msra.mxu0 0.0
        %4267 = vmatpush.msra.mxu0 0.0
        %4268 = vmatpush.msra.mxu0 0.0
        %4269 = vmatpush.msra.mxu0 0.0
        %4270 = vmatpush.msra.mxu0 0.0
        %4271 = vmatpush.msra.mxu0 0.0
        %4272 = vmatpush.msra.mxu0 0.0
        %4273 = vmatpush.msra.mxu0 0.0
        %4274 = vmatpush.msra.mxu0 0.0
        %4275 = vmatpush.msra.mxu0 0.0
        %4276 = vmatpush.msra.mxu0 0.0
        %v4277 = vand.u32 %v439, 4294901760
        %v4278 = vsub.f32 %v439, %v4277
        %v4279 = vand.u32 %v4278, 4294901760
        %4280 = vmatpush.msra.mxu0 %v4279
        %v4281 = vand.u32 %v423, 4294901760
        %v4282 = vsub.f32 %v423, %v4281
        %v4283 = vand.u32 %v4282, 4294901760
        %4284 = vmatpush.msra.mxu0 %v4283
        %v4285 = vand.u32 %v407, 4294901760
        %v4286 = vsub.f32 %v407, %v4285
        %v4287 = vand.u32 %v4286, 4294901760
        %4288 = vmatpush.msra.mxu0 %v4287
        %v4289 = vand.u32 %v391, 4294901760
        %v4290 = vsub.f32 %v391, %v4289
        %v4291 = vand.u32 %v4290, 4294901760
        %4292 = vmatpush.msra.mxu0 %v4291
        %v4293 = vand.u32 %v444, 4294901760
        %4294 = vmatmul.f32.gmra.mxu0 %v4293
        %v4295 = vpop.f32.mrf.mxu0
        %v4296 = vadd.f32 %v4245, %v4295
        %v4297 = vand.u32 %v447, 4294901760
        %4298 = vmatmul.f32.gmra.mxu0 %v4297
        %v4299 = vpop.f32.mrf.mxu0
        %v4300 = vadd.f32 %v4251, %v4299
        %v4301 = vand.u32 %v450, 4294901760
        %4302 = vmatmul.f32.gmra.mxu0 %v4301
        %v4303 = vpop.f32.mrf.mxu0
        %v4304 = vadd.f32 %v4257, %v4303
        %v4305 = vand.u32 %v453, 4294901760
        %4306 = vmatmul.f32.gmra.mxu0 %v4305
        %v4307 = vpop.f32.mrf.mxu0
        %v4308 = vadd.f32 %v4263, %v4307
        %4309 = vdwg.mxu0
        %4310 = vmatpush.msra.mxu0 0.0
        %4311 = vmatpush.msra.mxu0 0.0
        %4312 = vmatpush.msra.mxu0 0.0
        %4313 = vmatpush.msra.mxu0 0.0
        %4314 = vmatpush.msra.mxu0 0.0
        %4315 = vmatpush.msra.mxu0 0.0
        %4316 = vmatpush.msra.mxu0 0.0
        %4317 = vmatpush.msra.mxu0 0.0
        %4318 = vmatpush.msra.mxu0 0.0
        %4319 = vmatpush.msra.mxu0 0.0
        %4320 = vmatpush.msra.mxu0 0.0
        %4321 = vmatpush.msra.mxu0 0.0
        %v4322 = vand.u32 %v439, 4294901760
        %4323 = vmatpush.msra.mxu0 %v4322
        %v4324 = vand.u32 %v423, 4294901760
        %4325 = vmatpush.msra.mxu0 %v4324
        %v4326 = vand.u32 %v407, 4294901760
        %4327 = vmatpush.msra.mxu0 %v4326
        %v4328 = vand.u32 %v391, 4294901760
        %4329 = vmatpush.msra.mxu0 %v4328
        %v4330 = vand.u32 %v444, 4294901760
        %4331 = vmatmul.f32.gmra.mxu0 %v4330
        %v4332 = vpop.f32.mrf.mxu0
        %v4333 = vadd.f32 %v4296, %v4332
        %v4334 = vand.u32 %v447, 4294901760
        %4335 = vmatmul.f32.gmra.mxu0 %v4334
        %v4336 = vpop.f32.mrf.mxu0
        %v4337 = vadd.f32 %v4300, %v4336
        %v4338 = vand.u32 %v450, 4294901760
        %4339 = vmatmul.f32.gmra.mxu0 %v4338
        %v4340 = vpop.f32.mrf.mxu0
        %v4341 = vadd.f32 %v4304, %v4340
        %v4342 = vand.u32 %v453, 4294901760
        %4343 = vmatmul.f32.gmra.mxu0 %v4342
        %v4344 = vpop.f32.mrf.mxu0
        %v4345 = vadd.f32 %v4308, %v4344
        %4346 = vdwg.mxu0
        %4347 = vmatpush.msra.mxu0 0.0
        %4348 = vmatpush.msra.mxu0 0.0
        %4349 = vmatpush.msra.mxu0 0.0
        %4350 = vmatpush.msra.mxu0 0.0
        %4351 = vmatpush.msra.mxu0 0.0
        %4352 = vmatpush.msra.mxu0 0.0
        %4353 = vmatpush.msra.mxu0 0.0
        %4354 = vmatpush.msra.mxu0 0.0
        %4355 = vmatpush.msra.mxu0 0.0
        %4356 = vmatpush.msra.mxu0 0.0
        %4357 = vmatpush.msra.mxu0 0.0
        %4358 = vmatpush.msra.mxu0 0.0
        %v4359 = vand.u32 %v440, 4294901760
        %4360 = vmatpush.msra.mxu0 %v4359
        %v4361 = vand.u32 %v424, 4294901760
        %4362 = vmatpush.msra.mxu0 %v4361
        %v4363 = vand.u32 %v408, 4294901760
        %4364 = vmatpush.msra.mxu0 %v4363
        %v4365 = vand.u32 %v392, 4294901760
        %4366 = vmatpush.msra.mxu0 %v4365
        %v4367 = vand.u32 %v444, 4294901760
        %v4368 = vsub.f32 %v444, %v4367
        %v4369 = vand.u32 %v4368, 4294901760
        %v4370 = vsub.f32 %v4368, %v4369
        %v4371 = vand.u32 %v4370, 4294901760
        %4372 = vmatmul.f32.gmra.mxu0 %v4371
        %v4373 = vpop.f32.mrf.mxu0
        %v4374 = vadd.f32 0.0, %v4373
        %v4375 = vand.u32 %v447, 4294901760
        %v4376 = vsub.f32 %v447, %v4375
        %v4377 = vand.u32 %v4376, 4294901760
        %v4378 = vsub.f32 %v4376, %v4377
        %v4379 = vand.u32 %v4378, 4294901760
        %4380 = vmatmul.f32.gmra.mxu0 %v4379
        %v4381 = vpop.f32.mrf.mxu0
        %v4382 = vadd.f32 0.0, %v4381
        %v4383 = vand.u32 %v450, 4294901760
        %v4384 = vsub.f32 %v450, %v4383
        %v4385 = vand.u32 %v4384, 4294901760
        %v4386 = vsub.f32 %v4384, %v4385
        %v4387 = vand.u32 %v4386, 4294901760
        %4388 = vmatmul.f32.gmra.mxu0 %v4387
        %v4389 = vpop.f32.mrf.mxu0
        %v4390 = vadd.f32 0.0, %v4389
        %v4391 = vand.u32 %v453, 4294901760
        %v4392 = vsub.f32 %v453, %v4391
        %v4393 = vand.u32 %v4392, 4294901760
        %v4394 = vsub.f32 %v4392, %v4393
        %v4395 = vand.u32 %v4394, 4294901760
        %4396 = vmatmul.f32.gmra.mxu0 %v4395
        %v4397 = vpop.f32.mrf.mxu0
        %v4398 = vadd.f32 0.0, %v4397
        %4399 = vdwg.mxu0
        %4400 = vmatpush.msra.mxu0 0.0
        %4401 = vmatpush.msra.mxu0 0.0
        %4402 = vmatpush.msra.mxu0 0.0
        %4403 = vmatpush.msra.mxu0 0.0
        %4404 = vmatpush.msra.mxu0 0.0
        %4405 = vmatpush.msra.mxu0 0.0
        %4406 = vmatpush.msra.mxu0 0.0
        %4407 = vmatpush.msra.mxu0 0.0
        %4408 = vmatpush.msra.mxu0 0.0
        %4409 = vmatpush.msra.mxu0 0.0
        %4410 = vmatpush.msra.mxu0 0.0
        %4411 = vmatpush.msra.mxu0 0.0
        %v4412 = vand.u32 %v440, 4294901760
        %v4413 = vsub.f32 %v440, %v4412
        %v4414 = vand.u32 %v4413, 4294901760
        %v4415 = vsub.f32 %v4413, %v4414
        %v4416 = vand.u32 %v4415, 4294901760
        %4417 = vmatpush.msra.mxu0 %v4416
        %v4418 = vand.u32 %v424, 4294901760
        %v4419 = vsub.f32 %v424, %v4418
        %v4420 = vand.u32 %v4419, 4294901760
        %v4421 = vsub.f32 %v4419, %v4420
        %v4422 = vand.u32 %v4421, 4294901760
        %4423 = vmatpush.msra.mxu0 %v4422
        %v4424 = vand.u32 %v408, 4294901760
        %v4425 = vsub.f32 %v408, %v4424
        %v4426 = vand.u32 %v4425, 4294901760
        %v4427 = vsub.f32 %v4425, %v4426
        %v4428 = vand.u32 %v4427, 4294901760
        %4429 = vmatpush.msra.mxu0 %v4428
        %v4430 = vand.u32 %v392, 4294901760
        %v4431 = vsub.f32 %v392, %v4430
        %v4432 = vand.u32 %v4431, 4294901760
        %v4433 = vsub.f32 %v4431, %v4432
        %v4434 = vand.u32 %v4433, 4294901760
        %4435 = vmatpush.msra.mxu0 %v4434
        %v4436 = vand.u32 %v444, 4294901760
        %4437 = vmatmul.f32.gmra.mxu0 %v4436
        %v4438 = vpop.f32.mrf.mxu0
        %v4439 = vadd.f32 %v4374, %v4438
        %v4440 = vand.u32 %v447, 4294901760
        %4441 = vmatmul.f32.gmra.mxu0 %v4440
        %v4442 = vpop.f32.mrf.mxu0
        %v4443 = vadd.f32 %v4382, %v4442
        %v4444 = vand.u32 %v450, 4294901760
        %4445 = vmatmul.f32.gmra.mxu0 %v4444
        %v4446 = vpop.f32.mrf.mxu0
        %v4447 = vadd.f32 %v4390, %v4446
        %v4448 = vand.u32 %v453, 4294901760
        %4449 = vmatmul.f32.gmra.mxu0 %v4448
        %v4450 = vpop.f32.mrf.mxu0
        %v4451 = vadd.f32 %v4398, %v4450
        %4452 = vdwg.mxu0
        %4453 = vmatpush.msra.mxu0 0.0
        %4454 = vmatpush.msra.mxu0 0.0
        %4455 = vmatpush.msra.mxu0 0.0
        %4456 = vmatpush.msra.mxu0 0.0
        %4457 = vmatpush.msra.mxu0 0.0
        %4458 = vmatpush.msra.mxu0 0.0
        %4459 = vmatpush.msra.mxu0 0.0
        %4460 = vmatpush.msra.mxu0 0.0
        %4461 = vmatpush.msra.mxu0 0.0
        %4462 = vmatpush.msra.mxu0 0.0
        %4463 = vmatpush.msra.mxu0 0.0
        %4464 = vmatpush.msra.mxu0 0.0
        %v4465 = vand.u32 %v440, 4294901760
        %v4466 = vsub.f32 %v440, %v4465
        %4467 = vmatpush.msra.mxu0 %v4466
        %v4468 = vand.u32 %v424, 4294901760
        %v4469 = vsub.f32 %v424, %v4468
        %4470 = vmatpush.msra.mxu0 %v4469
        %v4471 = vand.u32 %v408, 4294901760
        %v4472 = vsub.f32 %v408, %v4471
        %4473 = vmatpush.msra.mxu0 %v4472
        %v4474 = vand.u32 %v392, 4294901760
        %v4475 = vsub.f32 %v392, %v4474
        %4476 = vmatpush.msra.mxu0 %v4475
        %v4477 = vand.u32 %v444, 4294901760
        %v4478 = vsub.f32 %v444, %v4477
        %4479 = vmatmul.f32.gmra.mxu0 %v4478
        %v4480 = vpop.f32.mrf.mxu0
        %v4481 = vadd.f32 %v4439, %v4480
        %v4482 = vand.u32 %v447, 4294901760
        %v4483 = vsub.f32 %v447, %v4482
        %4484 = vmatmul.f32.gmra.mxu0 %v4483
        %v4485 = vpop.f32.mrf.mxu0
        %v4486 = vadd.f32 %v4443, %v4485
        %v4487 = vand.u32 %v450, 4294901760
        %v4488 = vsub.f32 %v450, %v4487
        %4489 = vmatmul.f32.gmra.mxu0 %v4488
        %v4490 = vpop.f32.mrf.mxu0
        %v4491 = vadd.f32 %v4447, %v4490
        %v4492 = vand.u32 %v453, 4294901760
        %v4493 = vsub.f32 %v453, %v4492
        %4494 = vmatmul.f32.gmra.mxu0 %v4493
        %v4495 = vpop.f32.mrf.mxu0
        %v4496 = vadd.f32 %v4451, %v4495
        %4497 = vdwg.mxu0
        %4498 = vmatpush.msra.mxu0 0.0
        %4499 = vmatpush.msra.mxu0 0.0
        %4500 = vmatpush.msra.mxu0 0.0
        %4501 = vmatpush.msra.mxu0 0.0
        %4502 = vmatpush.msra.mxu0 0.0
        %4503 = vmatpush.msra.mxu0 0.0
        %4504 = vmatpush.msra.mxu0 0.0
        %4505 = vmatpush.msra.mxu0 0.0
        %4506 = vmatpush.msra.mxu0 0.0
        %4507 = vmatpush.msra.mxu0 0.0
        %4508 = vmatpush.msra.mxu0 0.0
        %4509 = vmatpush.msra.mxu0 0.0
        %v4510 = vand.u32 %v440, 4294901760
        %4511 = vmatpush.msra.mxu0 %v4510
        %v4512 = vand.u32 %v424, 4294901760
        %4513 = vmatpush.msra.mxu0 %v4512
        %v4514 = vand.u32 %v408, 4294901760
        %4515 = vmatpush.msra.mxu0 %v4514
        %v4516 = vand.u32 %v392, 4294901760
        %4517 = vmatpush.msra.mxu0 %v4516
        %v4518 = vand.u32 %v444, 4294901760
        %v4519 = vsub.f32 %v444, %v4518
        %v4520 = vand.u32 %v4519, 4294901760
        %4521 = vmatmul.f32.gmra.mxu0 %v4520
        %v4522 = vpop.f32.mrf.mxu0
        %v4523 = vadd.f32 %v4481, %v4522
        %v4524 = vand.u32 %v447, 4294901760
        %v4525 = vsub.f32 %v447, %v4524
        %v4526 = vand.u32 %v4525, 4294901760
        %4527 = vmatmul.f32.gmra.mxu0 %v4526
        %v4528 = vpop.f32.mrf.mxu0
        %v4529 = vadd.f32 %v4486, %v4528
        %v4530 = vand.u32 %v450, 4294901760
        %v4531 = vsub.f32 %v450, %v4530
        %v4532 = vand.u32 %v4531, 4294901760
        %4533 = vmatmul.f32.gmra.mxu0 %v4532
        %v4534 = vpop.f32.mrf.mxu0
        %v4535 = vadd.f32 %v4491, %v4534
        %v4536 = vand.u32 %v453, 4294901760
        %v4537 = vsub.f32 %v453, %v4536
        %v4538 = vand.u32 %v4537, 4294901760
        %4539 = vmatmul.f32.gmra.mxu0 %v4538
        %v4540 = vpop.f32.mrf.mxu0
        %v4541 = vadd.f32 %v4496, %v4540
        %4542 = vdwg.mxu0
        %4543 = vmatpush.msra.mxu0 0.0
        %4544 = vmatpush.msra.mxu0 0.0
        %4545 = vmatpush.msra.mxu0 0.0
        %4546 = vmatpush.msra.mxu0 0.0
        %4547 = vmatpush.msra.mxu0 0.0
        %4548 = vmatpush.msra.mxu0 0.0
        %4549 = vmatpush.msra.mxu0 0.0
        %4550 = vmatpush.msra.mxu0 0.0
        %4551 = vmatpush.msra.mxu0 0.0
        %4552 = vmatpush.msra.mxu0 0.0
        %4553 = vmatpush.msra.mxu0 0.0
        %4554 = vmatpush.msra.mxu0 0.0
        %v4555 = vand.u32 %v440, 4294901760
        %v4556 = vsub.f32 %v440, %v4555
        %v4557 = vand.u32 %v4556, 4294901760
        %4558 = vmatpush.msra.mxu0 %v4557
        %v4559 = vand.u32 %v424, 4294901760
        %v4560 = vsub.f32 %v424, %v4559
        %v4561 = vand.u32 %v4560, 4294901760
        %4562 = vmatpush.msra.mxu0 %v4561
        %v4563 = vand.u32 %v408, 4294901760
        %v4564 = vsub.f32 %v408, %v4563
        %v4565 = vand.u32 %v4564, 4294901760
        %4566 = vmatpush.msra.mxu0 %v4565
        %v4567 = vand.u32 %v392, 4294901760
        %v4568 = vsub.f32 %v392, %v4567
        %v4569 = vand.u32 %v4568, 4294901760
        %4570 = vmatpush.msra.mxu0 %v4569
        %v4571 = vand.u32 %v444, 4294901760
        %4572 = vmatmul.f32.gmra.mxu0 %v4571
        %v4573 = vpop.f32.mrf.mxu0
        %v4574 = vadd.f32 %v4523, %v4573
        %v4575 = vand.u32 %v447, 4294901760
        %4576 = vmatmul.f32.gmra.mxu0 %v4575
        %v4577 = vpop.f32.mrf.mxu0
        %v4578 = vadd.f32 %v4529, %v4577
        %v4579 = vand.u32 %v450, 4294901760
        %4580 = vmatmul.f32.gmra.mxu0 %v4579
        %v4581 = vpop.f32.mrf.mxu0
        %v4582 = vadd.f32 %v4535, %v4581
        %v4583 = vand.u32 %v453, 4294901760
        %4584 = vmatmul.f32.gmra.mxu0 %v4583
        %v4585 = vpop.f32.mrf.mxu0
        %v4586 = vadd.f32 %v4541, %v4585
        %4587 = vdwg.mxu0
        %4588 = vmatpush.msra.mxu0 0.0
        %4589 = vmatpush.msra.mxu0 0.0
        %4590 = vmatpush.msra.mxu0 0.0
        %4591 = vmatpush.msra.mxu0 0.0
        %4592 = vmatpush.msra.mxu0 0.0
        %4593 = vmatpush.msra.mxu0 0.0
        %4594 = vmatpush.msra.mxu0 0.0
        %4595 = vmatpush.msra.mxu0 0.0
        %4596 = vmatpush.msra.mxu0 0.0
        %4597 = vmatpush.msra.mxu0 0.0
        %4598 = vmatpush.msra.mxu0 0.0
        %4599 = vmatpush.msra.mxu0 0.0
        %v4600 = vand.u32 %v440, 4294901760
        %4601 = vmatpush.msra.mxu0 %v4600
        %v4602 = vand.u32 %v424, 4294901760
        %4603 = vmatpush.msra.mxu0 %v4602
        %v4604 = vand.u32 %v408, 4294901760
        %4605 = vmatpush.msra.mxu0 %v4604
        %v4606 = vand.u32 %v392, 4294901760
        %4607 = vmatpush.msra.mxu0 %v4606
        %v4608 = vand.u32 %v444, 4294901760
        %4609 = vmatmul.f32.gmra.mxu0 %v4608
        %v4610 = vpop.f32.mrf.mxu0
        %v4611 = vadd.f32 %v4574, %v4610
        %v4612 = vand.u32 %v447, 4294901760
        %4613 = vmatmul.f32.gmra.mxu0 %v4612
        %v4614 = vpop.f32.mrf.mxu0
        %v4615 = vadd.f32 %v4578, %v4614
        %v4616 = vand.u32 %v450, 4294901760
        %4617 = vmatmul.f32.gmra.mxu0 %v4616
        %v4618 = vpop.f32.mrf.mxu0
        %v4619 = vadd.f32 %v4582, %v4618
        %v4620 = vand.u32 %v453, 4294901760
        %4621 = vmatmul.f32.gmra.mxu0 %v4620
        %v4622 = vpop.f32.mrf.mxu0
        %v4623 = vadd.f32 %v4586, %v4622
        %4624 = vdwg.mxu0
        %4625 = vmatpush.msra.mxu0 0.0
        %4626 = vmatpush.msra.mxu0 0.0
        %4627 = vmatpush.msra.mxu0 0.0
        %4628 = vmatpush.msra.mxu0 0.0
        %4629 = vmatpush.msra.mxu0 0.0
        %4630 = vmatpush.msra.mxu0 0.0
        %4631 = vmatpush.msra.mxu0 0.0
        %4632 = vmatpush.msra.mxu0 0.0
        %4633 = vmatpush.msra.mxu0 0.0
        %4634 = vmatpush.msra.mxu0 0.0
        %4635 = vmatpush.msra.mxu0 0.0
        %4636 = vmatpush.msra.mxu0 0.0
        %v4637 = vand.u32 %v441, 4294901760
        %4638 = vmatpush.msra.mxu0 %v4637
        %v4639 = vand.u32 %v425, 4294901760
        %4640 = vmatpush.msra.mxu0 %v4639
        %v4641 = vand.u32 %v409, 4294901760
        %4642 = vmatpush.msra.mxu0 %v4641
        %v4643 = vand.u32 %v393, 4294901760
        %4644 = vmatpush.msra.mxu0 %v4643
        %v4645 = vand.u32 %v444, 4294901760
        %v4646 = vsub.f32 %v444, %v4645
        %v4647 = vand.u32 %v4646, 4294901760
        %v4648 = vsub.f32 %v4646, %v4647
        %v4649 = vand.u32 %v4648, 4294901760
        %4650 = vmatmul.f32.gmra.mxu0 %v4649
        %v4651 = vpop.f32.mrf.mxu0
        %v4652 = vadd.f32 0.0, %v4651
        %v4653 = vand.u32 %v447, 4294901760
        %v4654 = vsub.f32 %v447, %v4653
        %v4655 = vand.u32 %v4654, 4294901760
        %v4656 = vsub.f32 %v4654, %v4655
        %v4657 = vand.u32 %v4656, 4294901760
        %4658 = vmatmul.f32.gmra.mxu0 %v4657
        %v4659 = vpop.f32.mrf.mxu0
        %v4660 = vadd.f32 0.0, %v4659
        %v4661 = vand.u32 %v450, 4294901760
        %v4662 = vsub.f32 %v450, %v4661
        %v4663 = vand.u32 %v4662, 4294901760
        %v4664 = vsub.f32 %v4662, %v4663
        %v4665 = vand.u32 %v4664, 4294901760
        %4666 = vmatmul.f32.gmra.mxu0 %v4665
        %v4667 = vpop.f32.mrf.mxu0
        %v4668 = vadd.f32 0.0, %v4667
        %v4669 = vand.u32 %v453, 4294901760
        %v4670 = vsub.f32 %v453, %v4669
        %v4671 = vand.u32 %v4670, 4294901760
        %v4672 = vsub.f32 %v4670, %v4671
        %v4673 = vand.u32 %v4672, 4294901760
        %4674 = vmatmul.f32.gmra.mxu0 %v4673
        %v4675 = vpop.f32.mrf.mxu0
        %v4676 = vadd.f32 0.0, %v4675
        %4677 = vdwg.mxu0
        %4678 = vmatpush.msra.mxu0 0.0
        %4679 = vmatpush.msra.mxu0 0.0
        %4680 = vmatpush.msra.mxu0 0.0
        %4681 = vmatpush.msra.mxu0 0.0
        %4682 = vmatpush.msra.mxu0 0.0
        %4683 = vmatpush.msra.mxu0 0.0
        %4684 = vmatpush.msra.mxu0 0.0
        %4685 = vmatpush.msra.mxu0 0.0
        %4686 = vmatpush.msra.mxu0 0.0
        %4687 = vmatpush.msra.mxu0 0.0
        %4688 = vmatpush.msra.mxu0 0.0
        %4689 = vmatpush.msra.mxu0 0.0
        %v4690 = vand.u32 %v441, 4294901760
        %v4691 = vsub.f32 %v441, %v4690
        %v4692 = vand.u32 %v4691, 4294901760
        %v4693 = vsub.f32 %v4691, %v4692
        %v4694 = vand.u32 %v4693, 4294901760
        %4695 = vmatpush.msra.mxu0 %v4694
        %v4696 = vand.u32 %v425, 4294901760
        %v4697 = vsub.f32 %v425, %v4696
        %v4698 = vand.u32 %v4697, 4294901760
        %v4699 = vsub.f32 %v4697, %v4698
        %v4700 = vand.u32 %v4699, 4294901760
        %4701 = vmatpush.msra.mxu0 %v4700
        %v4702 = vand.u32 %v409, 4294901760
        %v4703 = vsub.f32 %v409, %v4702
        %v4704 = vand.u32 %v4703, 4294901760
        %v4705 = vsub.f32 %v4703, %v4704
        %v4706 = vand.u32 %v4705, 4294901760
        %4707 = vmatpush.msra.mxu0 %v4706
        %v4708 = vand.u32 %v393, 4294901760
        %v4709 = vsub.f32 %v393, %v4708
        %v4710 = vand.u32 %v4709, 4294901760
        %v4711 = vsub.f32 %v4709, %v4710
        %v4712 = vand.u32 %v4711, 4294901760
        %4713 = vmatpush.msra.mxu0 %v4712
        %v4714 = vand.u32 %v444, 4294901760
        %4715 = vmatmul.f32.gmra.mxu0 %v4714
        %v4716 = vpop.f32.mrf.mxu0
        %v4717 = vadd.f32 %v4652, %v4716
        %v4718 = vand.u32 %v447, 4294901760
        %4719 = vmatmul.f32.gmra.mxu0 %v4718
        %v4720 = vpop.f32.mrf.mxu0
        %v4721 = vadd.f32 %v4660, %v4720
        %v4722 = vand.u32 %v450, 4294901760
        %4723 = vmatmul.f32.gmra.mxu0 %v4722
        %v4724 = vpop.f32.mrf.mxu0
        %v4725 = vadd.f32 %v4668, %v4724
        %v4726 = vand.u32 %v453, 4294901760
        %4727 = vmatmul.f32.gmra.mxu0 %v4726
        %v4728 = vpop.f32.mrf.mxu0
        %v4729 = vadd.f32 %v4676, %v4728
        %4730 = vdwg.mxu0
        %4731 = vmatpush.msra.mxu0 0.0
        %4732 = vmatpush.msra.mxu0 0.0
        %4733 = vmatpush.msra.mxu0 0.0
        %4734 = vmatpush.msra.mxu0 0.0
        %4735 = vmatpush.msra.mxu0 0.0
        %4736 = vmatpush.msra.mxu0 0.0
        %4737 = vmatpush.msra.mxu0 0.0
        %4738 = vmatpush.msra.mxu0 0.0
        %4739 = vmatpush.msra.mxu0 0.0
        %4740 = vmatpush.msra.mxu0 0.0
        %4741 = vmatpush.msra.mxu0 0.0
        %4742 = vmatpush.msra.mxu0 0.0
        %v4743 = vand.u32 %v441, 4294901760
        %v4744 = vsub.f32 %v441, %v4743
        %4745 = vmatpush.msra.mxu0 %v4744
        %v4746 = vand.u32 %v425, 4294901760
        %v4747 = vsub.f32 %v425, %v4746
        %4748 = vmatpush.msra.mxu0 %v4747
        %v4749 = vand.u32 %v409, 4294901760
        %v4750 = vsub.f32 %v409, %v4749
        %4751 = vmatpush.msra.mxu0 %v4750
        %v4752 = vand.u32 %v393, 4294901760
        %v4753 = vsub.f32 %v393, %v4752
        %4754 = vmatpush.msra.mxu0 %v4753
        %v4755 = vand.u32 %v444, 4294901760
        %v4756 = vsub.f32 %v444, %v4755
        %4757 = vmatmul.f32.gmra.mxu0 %v4756
        %v4758 = vpop.f32.mrf.mxu0
        %v4759 = vadd.f32 %v4717, %v4758
        %v4760 = vand.u32 %v447, 4294901760
        %v4761 = vsub.f32 %v447, %v4760
        %4762 = vmatmul.f32.gmra.mxu0 %v4761
        %v4763 = vpop.f32.mrf.mxu0
        %v4764 = vadd.f32 %v4721, %v4763
        %v4765 = vand.u32 %v450, 4294901760
        %v4766 = vsub.f32 %v450, %v4765
        %4767 = vmatmul.f32.gmra.mxu0 %v4766
        %v4768 = vpop.f32.mrf.mxu0
        %v4769 = vadd.f32 %v4725, %v4768
        %v4770 = vand.u32 %v453, 4294901760
        %v4771 = vsub.f32 %v453, %v4770
        %4772 = vmatmul.f32.gmra.mxu0 %v4771
        %v4773 = vpop.f32.mrf.mxu0
        %v4774 = vadd.f32 %v4729, %v4773
        %4775 = vdwg.mxu0
        %4776 = vmatpush.msra.mxu0 0.0
        %4777 = vmatpush.msra.mxu0 0.0
        %4778 = vmatpush.msra.mxu0 0.0
        %4779 = vmatpush.msra.mxu0 0.0
        %4780 = vmatpush.msra.mxu0 0.0
        %4781 = vmatpush.msra.mxu0 0.0
        %4782 = vmatpush.msra.mxu0 0.0
        %4783 = vmatpush.msra.mxu0 0.0
        %4784 = vmatpush.msra.mxu0 0.0
        %4785 = vmatpush.msra.mxu0 0.0
        %4786 = vmatpush.msra.mxu0 0.0
        %4787 = vmatpush.msra.mxu0 0.0
        %v4788 = vand.u32 %v441, 4294901760
        %4789 = vmatpush.msra.mxu0 %v4788
        %v4790 = vand.u32 %v425, 4294901760
        %4791 = vmatpush.msra.mxu0 %v4790
        %v4792 = vand.u32 %v409, 4294901760
        %4793 = vmatpush.msra.mxu0 %v4792
        %v4794 = vand.u32 %v393, 4294901760
        %4795 = vmatpush.msra.mxu0 %v4794
        %v4796 = vand.u32 %v444, 4294901760
        %v4797 = vsub.f32 %v444, %v4796
        %v4798 = vand.u32 %v4797, 4294901760
        %4799 = vmatmul.f32.gmra.mxu0 %v4798
        %v4800 = vpop.f32.mrf.mxu0
        %v4801 = vadd.f32 %v4759, %v4800
        %v4802 = vand.u32 %v447, 4294901760
        %v4803 = vsub.f32 %v447, %v4802
        %v4804 = vand.u32 %v4803, 4294901760
        %4805 = vmatmul.f32.gmra.mxu0 %v4804
        %v4806 = vpop.f32.mrf.mxu0
        %v4807 = vadd.f32 %v4764, %v4806
        %v4808 = vand.u32 %v450, 4294901760
        %v4809 = vsub.f32 %v450, %v4808
        %v4810 = vand.u32 %v4809, 4294901760
        %4811 = vmatmul.f32.gmra.mxu0 %v4810
        %v4812 = vpop.f32.mrf.mxu0
        %v4813 = vadd.f32 %v4769, %v4812
        %v4814 = vand.u32 %v453, 4294901760
        %v4815 = vsub.f32 %v453, %v4814
        %v4816 = vand.u32 %v4815, 4294901760
        %4817 = vmatmul.f32.gmra.mxu0 %v4816
        %v4818 = vpop.f32.mrf.mxu0
        %v4819 = vadd.f32 %v4774, %v4818
        %4820 = vdwg.mxu0
        %4821 = vmatpush.msra.mxu0 0.0
        %4822 = vmatpush.msra.mxu0 0.0
        %4823 = vmatpush.msra.mxu0 0.0
        %4824 = vmatpush.msra.mxu0 0.0
        %4825 = vmatpush.msra.mxu0 0.0
        %4826 = vmatpush.msra.mxu0 0.0
        %4827 = vmatpush.msra.mxu0 0.0
        %4828 = vmatpush.msra.mxu0 0.0
        %4829 = vmatpush.msra.mxu0 0.0
        %4830 = vmatpush.msra.mxu0 0.0
        %4831 = vmatpush.msra.mxu0 0.0
        %4832 = vmatpush.msra.mxu0 0.0
        %v4833 = vand.u32 %v441, 4294901760
        %v4834 = vsub.f32 %v441, %v4833
        %v4835 = vand.u32 %v4834, 4294901760
        %4836 = vmatpush.msra.mxu0 %v4835
        %v4837 = vand.u32 %v425, 4294901760
        %v4838 = vsub.f32 %v425, %v4837
        %v4839 = vand.u32 %v4838, 4294901760
        %4840 = vmatpush.msra.mxu0 %v4839
        %v4841 = vand.u32 %v409, 4294901760
        %v4842 = vsub.f32 %v409, %v4841
        %v4843 = vand.u32 %v4842, 4294901760
        %4844 = vmatpush.msra.mxu0 %v4843
        %v4845 = vand.u32 %v393, 4294901760
        %v4846 = vsub.f32 %v393, %v4845
        %v4847 = vand.u32 %v4846, 4294901760
        %4848 = vmatpush.msra.mxu0 %v4847
        %v4849 = vand.u32 %v444, 4294901760
        %4850 = vmatmul.f32.gmra.mxu0 %v4849
        %v4851 = vpop.f32.mrf.mxu0
        %v4852 = vadd.f32 %v4801, %v4851
        %v4853 = vand.u32 %v447, 4294901760
        %4854 = vmatmul.f32.gmra.mxu0 %v4853
        %v4855 = vpop.f32.mrf.mxu0
        %v4856 = vadd.f32 %v4807, %v4855
        %v4857 = vand.u32 %v450, 4294901760
        %4858 = vmatmul.f32.gmra.mxu0 %v4857
        %v4859 = vpop.f32.mrf.mxu0
        %v4860 = vadd.f32 %v4813, %v4859
        %v4861 = vand.u32 %v453, 4294901760
        %4862 = vmatmul.f32.gmra.mxu0 %v4861
        %v4863 = vpop.f32.mrf.mxu0
        %v4864 = vadd.f32 %v4819, %v4863
        %4865 = vdwg.mxu0
        %4866 = vmatpush.msra.mxu0 0.0
        %4867 = vmatpush.msra.mxu0 0.0
        %4868 = vmatpush.msra.mxu0 0.0
        %4869 = vmatpush.msra.mxu0 0.0
        %4870 = vmatpush.msra.mxu0 0.0
        %4871 = vmatpush.msra.mxu0 0.0
        %4872 = vmatpush.msra.mxu0 0.0
        %4873 = vmatpush.msra.mxu0 0.0
        %4874 = vmatpush.msra.mxu0 0.0
        %4875 = vmatpush.msra.mxu0 0.0
        %4876 = vmatpush.msra.mxu0 0.0
        %4877 = vmatpush.msra.mxu0 0.0
        %v4878 = vand.u32 %v441, 4294901760
        %4879 = vmatpush.msra.mxu0 %v4878
        %v4880 = vand.u32 %v425, 4294901760
        %4881 = vmatpush.msra.mxu0 %v4880
        %v4882 = vand.u32 %v409, 4294901760
        %4883 = vmatpush.msra.mxu0 %v4882
        %v4884 = vand.u32 %v393, 4294901760
        %4885 = vmatpush.msra.mxu0 %v4884
        %v4886 = vand.u32 %v444, 4294901760
        %4887 = vmatmul.f32.gmra.mxu0 %v4886
        %v4888 = vpop.f32.mrf.mxu0
        %v4889 = vadd.f32 %v4852, %v4888
        %v4890 = vand.u32 %v447, 4294901760
        %4891 = vmatmul.f32.gmra.mxu0 %v4890
        %v4892 = vpop.f32.mrf.mxu0
        %v4893 = vadd.f32 %v4856, %v4892
        %v4894 = vand.u32 %v450, 4294901760
        %4895 = vmatmul.f32.gmra.mxu0 %v4894
        %v4896 = vpop.f32.mrf.mxu0
        %v4897 = vadd.f32 %v4860, %v4896
        %v4898 = vand.u32 %v453, 4294901760
        %4899 = vmatmul.f32.gmra.mxu0 %v4898
        %v4900 = vpop.f32.mrf.mxu0
        %v4901 = vadd.f32 %v4864, %v4900
        %4902 = vdwg.mxu0
        %v4903 = vld [vmem:[%s369] sm:$0xff]
        %v4904 = vld [vmem:[%s369 + $0x8] sm:$0xff]
        %vm4905 = vnez %v4903
        %vm4906 = vnez %v4904
        %v4907 = vld [vmem:[%s317] sm:$0xff]
        %v4908 = vld [vmem:[%s317 + $0x8] sm:$0xff]
        %v4909 = vld [vmem:[%s317 + $0x10] sm:$0xff]
        %v4910 = vld [vmem:[%s317 + $0x18] sm:$0xff]
        %v4911 = vld [vmem:[%s317 + $0x20] sm:$0xff]
        %v4912 = vld [vmem:[%s317 + $0x28] sm:$0xff]
        %v4913 = vld [vmem:[%s317 + $0x30] sm:$0xff]
        %v4914 = vld [vmem:[%s317 + $0x38] sm:$0xff]
        %v4915 = vld [vmem:[%s317 + $0x40] sm:$0xff]
        %v4916 = vld [vmem:[%s317 + $0x48] sm:$0xff]
        %v4917 = vld [vmem:[%s317 + $0x50] sm:$0xff]
        %v4918 = vld [vmem:[%s317 + $0x58] sm:$0xff]
        %v4919 = vld [vmem:[%s317 + $0x60] sm:$0xff]
        %v4920 = vld [vmem:[%s317 + $0x68] sm:$0xff]
        %v4921 = vld [vmem:[%s317 + $0x70] sm:$0xff]
        %v4922 = vld [vmem:[%s317 + $0x78] sm:$0xff]
        %v4923 = vld [vmem:[%s317 + $0x80] sm:$0xff]
        %v4924 = vld [vmem:[%s317 + $0x88] sm:$0xff]
        %v4925 = vld [vmem:[%s317 + $0x90] sm:$0xff]
        %v4926 = vld [vmem:[%s317 + $0x98] sm:$0xff]
        %v4927 = vld [vmem:[%s317 + $0xa0] sm:$0xff]
        %v4928 = vld [vmem:[%s317 + $0xa8] sm:$0xff]
        %v4929 = vld [vmem:[%s317 + $0xb0] sm:$0xff]
        %v4930 = vld [vmem:[%s317 + $0xb8] sm:$0xff]
        %v4931 = vld [vmem:[%s317 + $0xc0] sm:$0xff]
        %v4932 = vld [vmem:[%s317 + $0xc8] sm:$0xff]
        %v4933 = vld [vmem:[%s317 + $0xd0] sm:$0xff]
        %v4934 = vld [vmem:[%s317 + $0xd8] sm:$0xff]
        %v4935 = vld [vmem:[%s317 + $0xe0] sm:$0xff]
        %v4936 = vld [vmem:[%s317 + $0xe8] sm:$0xff]
        %v4937 = vld [vmem:[%s317 + $0xf0] sm:$0xff]
        %v4938 = vld [vmem:[%s317 + $0xf8] sm:$0xff]
        %v4939 = vld [vmem:[%s317 + $0x100] sm:$0xff]
        %v4940 = vld [vmem:[%s317 + $0x108] sm:$0xff]
        %v4941 = vld [vmem:[%s317 + $0x110] sm:$0xff]
        %v4942 = vld [vmem:[%s317 + $0x118] sm:$0xff]
        %v4943 = vld [vmem:[%s317 + $0x120] sm:$0xff]
        %v4944 = vld [vmem:[%s317 + $0x128] sm:$0xff]
        %v4945 = vld [vmem:[%s317 + $0x130] sm:$0xff]
        %v4946 = vld [vmem:[%s317 + $0x138] sm:$0xff]
        %v4947 = vld [vmem:[%s317 + $0x140] sm:$0xff]
        %v4948 = vld [vmem:[%s317 + $0x148] sm:$0xff]
        %v4949 = vld [vmem:[%s317 + $0x150] sm:$0xff]
        %v4950 = vld [vmem:[%s317 + $0x158] sm:$0xff]
        %v4951 = vld [vmem:[%s317 + $0x160] sm:$0xff]
        %v4952 = vld [vmem:[%s317 + $0x168] sm:$0xff]
        %v4953 = vld [vmem:[%s317 + $0x170] sm:$0xff]
        %v4954 = vld [vmem:[%s317 + $0x178] sm:$0xff]
        %v4955 = vld [vmem:[%s317 + $0x180] sm:$0xff]
        %v4956 = vld [vmem:[%s317 + $0x188] sm:$0xff]
        %v4957 = vld [vmem:[%s317 + $0x190] sm:$0xff]
        %v4958 = vld [vmem:[%s317 + $0x198] sm:$0xff]
        %v4959 = vld [vmem:[%s317 + $0x1a0] sm:$0xff]
        %v4960 = vld [vmem:[%s317 + $0x1a8] sm:$0xff]
        %v4961 = vld [vmem:[%s317 + $0x1b0] sm:$0xff]
        %v4962 = vld [vmem:[%s317 + $0x1b8] sm:$0xff]
        %v4963 = vld [vmem:[%s317 + $0x1c0] sm:$0xff]
        %v4964 = vld [vmem:[%s317 + $0x1c8] sm:$0xff]
        %v4965 = vld [vmem:[%s317 + $0x1d0] sm:$0xff]
        %v4966 = vld [vmem:[%s317 + $0x1d8] sm:$0xff]
        %v4967 = vld [vmem:[%s317 + $0x1e0] sm:$0xff]
        %v4968 = vld [vmem:[%s317 + $0x1e8] sm:$0xff]
        %v4969 = vld [vmem:[%s317 + $0x1f0] sm:$0xff]
        %v4970 = vld [vmem:[%s317 + $0x1f8] sm:$0xff]
        %v4971 = vsel %vm4905, 16843009, 0
        %v4972 = vsel %vm4906, 16843009, 0
        %v4973 = vunpack.c.0.s8 %v4971
        %v4974 = vunpack.c.1.s8 %v4971
        %v4975 = vunpack.c.2.s8 %v4971
        %v4976 = vunpack.c.3.s8 %v4971
        %v4977 = vunpack.c.0.s8 %v4972
        %v4978 = vunpack.c.1.s8 %v4972
        %v4979 = vunpack.c.2.s8 %v4972
        %v4980 = vunpack.c.3.s8 %v4972
        %vm4981 = vcmp.ne.s32.totalorder %v4973, 0
        %vm4982 = vcmp.ne.s32.totalorder %v4974, 0
        %vm4983 = vcmp.ne.s32.totalorder %v4975, 0
        %vm4984 = vcmp.ne.s32.totalorder %v4976, 0
        %vm4985 = vcmp.ne.s32.totalorder %v4977, 0
        %vm4986 = vcmp.ne.s32.totalorder %v4978, 0
        %vm4987 = vcmp.ne.s32.totalorder %v4979, 0
        %vm4988 = vcmp.ne.s32.totalorder %v4980, 0
        %v4989 = vsel %vm4981, 1, 0
        %v4990 = vsel %vm4982, 1, 0
        %v4991 = vsel %vm4983, 1, 0
        %v4992 = vsel %vm4984, 1, 0
        %v4993 = vsel %vm4985, 1, 0
        %v4994 = vsel %vm4986, 1, 0
        %v4995 = vsel %vm4987, 1, 0
        %v4996 = vsel %vm4988, 1, 0
        %v4997 = vperm.slane %v4989, 0
        %v4998 = vperm.slane %v4989, 4
        %v4999 = vperm.slane %v4990, 0
        %v5000 = vperm.slane %v4990, 4
        %v5001 = vperm.slane %v4991, 0
        %v5002 = vperm.slane %v4991, 4
        %v5003 = vperm.slane %v4992, 0
        %v5004 = vperm.slane %v4992, 4
        %v5005 = vperm.slane %v4993, 0
        %v5006 = vperm.slane %v4993, 4
        %v5007 = vperm.slane %v4994, 0
        %v5008 = vperm.slane %v4994, 4
        %v5009 = vperm.slane %v4995, 0
        %v5010 = vperm.slane %v4995, 4
        %v5011 = vperm.slane %v4996, 0
        %v5012 = vperm.slane %v4996, 4
        %vm5013 = vcmp.ne.s32.totalorder %v4997, 0
        %vm5014 = vcmp.ne.s32.totalorder %v4998, 0
        %vm5015 = vcmp.ne.s32.totalorder %v4999, 0
        %vm5016 = vcmp.ne.s32.totalorder %v5000, 0
        %vm5017 = vcmp.ne.s32.totalorder %v5001, 0
        %vm5018 = vcmp.ne.s32.totalorder %v5002, 0
        %vm5019 = vcmp.ne.s32.totalorder %v5003, 0
        %vm5020 = vcmp.ne.s32.totalorder %v5004, 0
        %vm5021 = vcmp.ne.s32.totalorder %v5005, 0
        %vm5022 = vcmp.ne.s32.totalorder %v5006, 0
        %vm5023 = vcmp.ne.s32.totalorder %v5007, 0
        %vm5024 = vcmp.ne.s32.totalorder %v5008, 0
        %vm5025 = vcmp.ne.s32.totalorder %v5009, 0
        %vm5026 = vcmp.ne.s32.totalorder %v5010, 0
        %vm5027 = vcmp.ne.s32.totalorder %v5011, 0
        %vm5028 = vcmp.ne.s32.totalorder %v5012, 0
        %v5029 = vsel %vm5013, 1, 0
        %v5030 = vsel %vm5014, 1, 0
        %v5031 = vsel %vm5015, 1, 0
        %v5032 = vsel %vm5016, 1, 0
        %v5033 = vsel %vm5017, 1, 0
        %v5034 = vsel %vm5018, 1, 0
        %v5035 = vsel %vm5019, 1, 0
        %v5036 = vsel %vm5020, 1, 0
        %v5037 = vsel %vm5021, 1, 0
        %v5038 = vsel %vm5022, 1, 0
        %v5039 = vsel %vm5023, 1, 0
        %v5040 = vsel %vm5024, 1, 0
        %v5041 = vsel %vm5025, 1, 0
        %v5042 = vsel %vm5026, 1, 0
        %v5043 = vsel %vm5027, 1, 0
        %v5044 = vsel %vm5028, 1, 0
        %v5045 = vperm.slane %v5029, 0
        %v5046 = vperm.slane %v5030, 0
        %v5047 = vperm.slane %v5031, 0
        %v5048 = vperm.slane %v5032, 0
        %v5049 = vperm.slane %v5033, 0
        %v5050 = vperm.slane %v5034, 0
        %v5051 = vperm.slane %v5035, 0
        %v5052 = vperm.slane %v5036, 0
        %v5053 = vperm.slane %v5037, 0
        %v5054 = vperm.slane %v5038, 0
        %v5055 = vperm.slane %v5039, 0
        %v5056 = vperm.slane %v5040, 0
        %v5057 = vperm.slane %v5041, 0
        %v5058 = vperm.slane %v5042, 0
        %v5059 = vperm.slane %v5043, 0
        %v5060 = vperm.slane %v5044, 0
        %vm5061 = vcmp.eq.s32.totalorder %v5045, 1
        %vm5062 = vcmp.eq.s32.totalorder %v5046, 1
        %vm5063 = vcmp.eq.s32.totalorder %v5047, 1
        %vm5064 = vcmp.eq.s32.totalorder %v5048, 1
        %vm5065 = vcmp.eq.s32.totalorder %v5049, 1
        %vm5066 = vcmp.eq.s32.totalorder %v5050, 1
        %vm5067 = vcmp.eq.s32.totalorder %v5051, 1
        %vm5068 = vcmp.eq.s32.totalorder %v5052, 1
        %vm5069 = vcmp.eq.s32.totalorder %v5053, 1
        %vm5070 = vcmp.eq.s32.totalorder %v5054, 1
        %vm5071 = vcmp.eq.s32.totalorder %v5055, 1
        %vm5072 = vcmp.eq.s32.totalorder %v5056, 1
        %vm5073 = vcmp.eq.s32.totalorder %v5057, 1
        %vm5074 = vcmp.eq.s32.totalorder %v5058, 1
        %vm5075 = vcmp.eq.s32.totalorder %v5059, 1
        %vm5076 = vcmp.eq.s32.totalorder %v5060, 1
        %v5077 = vsel %vm5061, %v719, %v4907
        %v5078 = vsel %vm5062, %v997, %v4908
        %v5079 = vsel %vm5063, %v1275, %v4909
        %v5080 = vsel %vm5064, %v1553, %v4910
        %v5081 = vsel %vm5065, %v1831, %v4911
        %v5082 = vsel %vm5066, %v2109, %v4912
        %v5083 = vsel %vm5067, %v2387, %v4913
        %v5084 = vsel %vm5068, %v2665, %v4914
        %v5085 = vsel %vm5069, %v2943, %v4915
        %v5086 = vsel %vm5070, %v3221, %v4916
        %v5087 = vsel %vm5071, %v3499, %v4917
        %v5088 = vsel %vm5072, %v3777, %v4918
        %v5089 = vsel %vm5073, %v4055, %v4919
        %v5090 = vsel %vm5074, %v4333, %v4920
        %v5091 = vsel %vm5075, %v4611, %v4921
        %v5092 = vsel %vm5076, %v4889, %v4922
        %v5093 = vsel %vm5061, %v723, %v4923
        %v5094 = vsel %vm5062, %v1001, %v4924
        %v5095 = vsel %vm5063, %v1279, %v4925
        %v5096 = vsel %vm5064, %v1557, %v4926
        %v5097 = vsel %vm5065, %v1835, %v4927
        %v5098 = vsel %vm5066, %v2113, %v4928
        %v5099 = vsel %vm5067, %v2391, %v4929
        %v5100 = vsel %vm5068, %v2669, %v4930
        %v5101 = vsel %vm5069, %v2947, %v4931
        %v5102 = vsel %vm5070, %v3225, %v4932
        %v5103 = vsel %vm5071, %v3503, %v4933
        %v5104 = vsel %vm5072, %v3781, %v4934
        %v5105 = vsel %vm5073, %v4059, %v4935
        %v5106 = vsel %vm5074, %v4337, %v4936
        %v5107 = vsel %vm5075, %v4615, %v4937
        %v5108 = vsel %vm5076, %v4893, %v4938
        %v5109 = vsel %vm5061, %v727, %v4939
        %v5110 = vsel %vm5062, %v1005, %v4940
        %v5111 = vsel %vm5063, %v1283, %v4941
        %v5112 = vsel %vm5064, %v1561, %v4942
        %v5113 = vsel %vm5065, %v1839, %v4943
        %v5114 = vsel %vm5066, %v2117, %v4944
        %v5115 = vsel %vm5067, %v2395, %v4945
        %v5116 = vsel %vm5068, %v2673, %v4946
        %v5117 = vsel %vm5069, %v2951, %v4947
        %v5118 = vsel %vm5070, %v3229, %v4948
        %v5119 = vsel %vm5071, %v3507, %v4949
        %v5120 = vsel %vm5072, %v3785, %v4950
        %v5121 = vsel %vm5073, %v4063, %v4951
        %v5122 = vsel %vm5074, %v4341, %v4952
        %v5123 = vsel %vm5075, %v4619, %v4953
        %v5124 = vsel %vm5076, %v4897, %v4954
        %v5125 = vsel %vm5061, %v731, %v4955
        %v5126 = vsel %vm5062, %v1009, %v4956
        %v5127 = vsel %vm5063, %v1287, %v4957
        %v5128 = vsel %vm5064, %v1565, %v4958
        %v5129 = vsel %vm5065, %v1843, %v4959
        %v5130 = vsel %vm5066, %v2121, %v4960
        %v5131 = vsel %vm5067, %v2399, %v4961
        %v5132 = vsel %vm5068, %v2677, %v4962
        %v5133 = vsel %vm5069, %v2955, %v4963
        %v5134 = vsel %vm5070, %v3233, %v4964
        %v5135 = vsel %vm5071, %v3511, %v4965
        %v5136 = vsel %vm5072, %v3789, %v4966
        %v5137 = vsel %vm5073, %v4067, %v4967
        %v5138 = vsel %vm5074, %v4345, %v4968
        %v5139 = vsel %vm5075, %v4623, %v4969
        %v5140 = vsel %vm5076, %v4901, %v4970
        %v5141 = vld [vmem:[%s4] sm:$0xff]
        %v5142 = vld [vmem:[%s4 + $0x8] sm:$0xff]
        %v5143 = vld [vmem:[%s4 + $0x10] sm:$0xff]
        %v5144 = vld [vmem:[%s4 + $0x18] sm:$0xff]
        %5146 = vset.pattern.permute.xlu0 0
        %5147 = vperm.xlu0 %5146, %v5141
        %v5148 = vpop.permute.xlu0 %5147
        %5151 = vset.pattern.permute.xlu0 0
        %5152 = vperm.xlu0 %5151, %v5142
        %v5153 = vpop.permute.xlu0 %5152
        %5156 = vset.pattern.permute.xlu0 0
        %5157 = vperm.xlu0 %5156, %v5143
        %v5158 = vpop.permute.xlu0 %5157
        %5161 = vset.pattern.permute.xlu0 0
        %5162 = vperm.xlu0 %5161, %v5144
        %v5163 = vpop.permute.xlu0 %5162
        %v5165 = vmul.f32 %v5077, %v5148
        %v5166 = vmul.f32 %v5078, %v5148
        %v5167 = vmul.f32 %v5079, %v5148
        %v5168 = vmul.f32 %v5080, %v5148
        %v5169 = vmul.f32 %v5081, %v5148
        %v5170 = vmul.f32 %v5082, %v5148
        %v5171 = vmul.f32 %v5083, %v5148
        %v5172 = vmul.f32 %v5084, %v5148
        %v5173 = vmul.f32 %v5085, %v5148
        %v5174 = vmul.f32 %v5086, %v5148
        %v5175 = vmul.f32 %v5087, %v5148
        %v5176 = vmul.f32 %v5088, %v5148
        %v5177 = vmul.f32 %v5089, %v5148
        %v5178 = vmul.f32 %v5090, %v5148
        %v5179 = vmul.f32 %v5091, %v5148
        %v5180 = vmul.f32 %v5092, %v5148
        %v5181 = vmul.f32 %v5093, %v5153
        %v5182 = vmul.f32 %v5094, %v5153
        %v5183 = vmul.f32 %v5095, %v5153
        %v5184 = vmul.f32 %v5096, %v5153
        %v5185 = vmul.f32 %v5097, %v5153
        %v5186 = vmul.f32 %v5098, %v5153
        %v5187 = vmul.f32 %v5099, %v5153
        %v5188 = vmul.f32 %v5100, %v5153
        %v5189 = vmul.f32 %v5101, %v5153
        %v5190 = vmul.f32 %v5102, %v5153
        %v5191 = vmul.f32 %v5103, %v5153
        %v5192 = vmul.f32 %v5104, %v5153
        %v5193 = vmul.f32 %v5105, %v5153
        %v5194 = vmul.f32 %v5106, %v5153
        %v5195 = vmul.f32 %v5107, %v5153
        %v5196 = vmul.f32 %v5108, %v5153
        %v5197 = vmul.f32 %v5109, %v5158
        %v5198 = vmul.f32 %v5110, %v5158
        %v5199 = vmul.f32 %v5111, %v5158
        %v5200 = vmul.f32 %v5112, %v5158
        %v5201 = vmul.f32 %v5113, %v5158
        %v5202 = vmul.f32 %v5114, %v5158
        %v5203 = vmul.f32 %v5115, %v5158
        %v5204 = vmul.f32 %v5116, %v5158
        %v5205 = vmul.f32 %v5117, %v5158
        %v5206 = vmul.f32 %v5118, %v5158
        %v5207 = vmul.f32 %v5119, %v5158
        %v5208 = vmul.f32 %v5120, %v5158
        %v5209 = vmul.f32 %v5121, %v5158
        %v5210 = vmul.f32 %v5122, %v5158
        %v5211 = vmul.f32 %v5123, %v5158
        %v5212 = vmul.f32 %v5124, %v5158
        %v5213 = vmul.f32 %v5125, %v5163
        %v5214 = vmul.f32 %v5126, %v5163
        %v5215 = vmul.f32 %v5127, %v5163
        %v5216 = vmul.f32 %v5128, %v5163
        %v5217 = vmul.f32 %v5129, %v5163
        %v5218 = vmul.f32 %v5130, %v5163
        %v5219 = vmul.f32 %v5131, %v5163
        %v5220 = vmul.f32 %v5132, %v5163
        %v5221 = vmul.f32 %v5133, %v5163
        %v5222 = vmul.f32 %v5134, %v5163
        %v5223 = vmul.f32 %v5135, %v5163
        %v5224 = vmul.f32 %v5136, %v5163
        %v5225 = vmul.f32 %v5137, %v5163
        %v5226 = vmul.f32 %v5138, %v5163
        %v5227 = vmul.f32 %v5139, %v5163
        %v5228 = vmul.f32 %v5140, %v5163
        %v5229 = vld [vmem:[%s5] sm:$0xff]
        %v5230 = vld [vmem:[%s5 + $0x8] sm:$0xff]
        %v5231 = vld [vmem:[%s5 + $0x10] sm:$0xff]
        %v5232 = vld [vmem:[%s5 + $0x18] sm:$0xff]
        %5234 = vset.pattern.permute.xlu0 0
        %5235 = vperm.xlu0 %5234, %v5229
        %v5236 = vpop.permute.xlu0 %5235
        %5239 = vset.pattern.permute.xlu0 0
        %5240 = vperm.xlu0 %5239, %v5230
        %v5241 = vpop.permute.xlu0 %5240
        %5244 = vset.pattern.permute.xlu0 0
        %5245 = vperm.xlu0 %5244, %v5231
        %v5246 = vpop.permute.xlu0 %5245
        %5249 = vset.pattern.permute.xlu0 0
        %5250 = vperm.xlu0 %5249, %v5232
        %v5251 = vpop.permute.xlu0 %5250
        %v5253 = vadd.f32 %v5165, %v5236
        %v5254 = vadd.f32 %v5166, %v5236
        %v5255 = vadd.f32 %v5167, %v5236
        %v5256 = vadd.f32 %v5168, %v5236
        %v5257 = vadd.f32 %v5169, %v5236
        %v5258 = vadd.f32 %v5170, %v5236
        %v5259 = vadd.f32 %v5171, %v5236
        %v5260 = vadd.f32 %v5172, %v5236
        %v5261 = vadd.f32 %v5173, %v5236
        %v5262 = vadd.f32 %v5174, %v5236
        %v5263 = vadd.f32 %v5175, %v5236
        %v5264 = vadd.f32 %v5176, %v5236
        %v5265 = vadd.f32 %v5177, %v5236
        %v5266 = vadd.f32 %v5178, %v5236
        %v5267 = vadd.f32 %v5179, %v5236
        %v5268 = vadd.f32 %v5180, %v5236
        %v5269 = vadd.f32 %v5181, %v5241
        %v5270 = vadd.f32 %v5182, %v5241
        %v5271 = vadd.f32 %v5183, %v5241
        %v5272 = vadd.f32 %v5184, %v5241
        %v5273 = vadd.f32 %v5185, %v5241
        %v5274 = vadd.f32 %v5186, %v5241
        %v5275 = vadd.f32 %v5187, %v5241
        %v5276 = vadd.f32 %v5188, %v5241
        %v5277 = vadd.f32 %v5189, %v5241
        %v5278 = vadd.f32 %v5190, %v5241
        %v5279 = vadd.f32 %v5191, %v5241
        %v5280 = vadd.f32 %v5192, %v5241
        %v5281 = vadd.f32 %v5193, %v5241
        %v5282 = vadd.f32 %v5194, %v5241
        %v5283 = vadd.f32 %v5195, %v5241
        %v5284 = vadd.f32 %v5196, %v5241
        %v5285 = vadd.f32 %v5197, %v5246
        %v5286 = vadd.f32 %v5198, %v5246
        %v5287 = vadd.f32 %v5199, %v5246
        %v5288 = vadd.f32 %v5200, %v5246
        %v5289 = vadd.f32 %v5201, %v5246
        %v5290 = vadd.f32 %v5202, %v5246
        %v5291 = vadd.f32 %v5203, %v5246
        %v5292 = vadd.f32 %v5204, %v5246
        %v5293 = vadd.f32 %v5205, %v5246
        %v5294 = vadd.f32 %v5206, %v5246
        %v5295 = vadd.f32 %v5207, %v5246
        %v5296 = vadd.f32 %v5208, %v5246
        %v5297 = vadd.f32 %v5209, %v5246
        %v5298 = vadd.f32 %v5210, %v5246
        %v5299 = vadd.f32 %v5211, %v5246
        %v5300 = vadd.f32 %v5212, %v5246
        %v5301 = vadd.f32 %v5213, %v5251
        %v5302 = vadd.f32 %v5214, %v5251
        %v5303 = vadd.f32 %v5215, %v5251
        %v5304 = vadd.f32 %v5216, %v5251
        %v5305 = vadd.f32 %v5217, %v5251
        %v5306 = vadd.f32 %v5218, %v5251
        %v5307 = vadd.f32 %v5219, %v5251
        %v5308 = vadd.f32 %v5220, %v5251
        %v5309 = vadd.f32 %v5221, %v5251
        %v5310 = vadd.f32 %v5222, %v5251
        %v5311 = vadd.f32 %v5223, %v5251
        %v5312 = vadd.f32 %v5224, %v5251
        %v5313 = vadd.f32 %v5225, %v5251
        %v5314 = vadd.f32 %v5226, %v5251
        %v5315 = vadd.f32 %v5227, %v5251
        %v5316 = vadd.f32 %v5228, %v5251
        %v5317 = vmax.f32 %v5253, 0.0
        %v5318 = vmax.f32 %v5254, 0.0
        %v5319 = vmax.f32 %v5255, 0.0
        %v5320 = vmax.f32 %v5256, 0.0
        %v5321 = vmax.f32 %v5257, 0.0
        %v5322 = vmax.f32 %v5258, 0.0
        %v5323 = vmax.f32 %v5259, 0.0
        %v5324 = vmax.f32 %v5260, 0.0
        %v5325 = vmax.f32 %v5261, 0.0
        %v5326 = vmax.f32 %v5262, 0.0
        %v5327 = vmax.f32 %v5263, 0.0
        %v5328 = vmax.f32 %v5264, 0.0
        %v5329 = vmax.f32 %v5265, 0.0
        %v5330 = vmax.f32 %v5266, 0.0
        %v5331 = vmax.f32 %v5267, 0.0
        %v5332 = vmax.f32 %v5268, 0.0
        %v5333 = vmax.f32 %v5269, 0.0
        %v5334 = vmax.f32 %v5270, 0.0
        %v5335 = vmax.f32 %v5271, 0.0
        %v5336 = vmax.f32 %v5272, 0.0
        %v5337 = vmax.f32 %v5273, 0.0
        %v5338 = vmax.f32 %v5274, 0.0
        %v5339 = vmax.f32 %v5275, 0.0
        %v5340 = vmax.f32 %v5276, 0.0
        %v5341 = vmax.f32 %v5277, 0.0
        %v5342 = vmax.f32 %v5278, 0.0
        %v5343 = vmax.f32 %v5279, 0.0
        %v5344 = vmax.f32 %v5280, 0.0
        %v5345 = vmax.f32 %v5281, 0.0
        %v5346 = vmax.f32 %v5282, 0.0
        %v5347 = vmax.f32 %v5283, 0.0
        %v5348 = vmax.f32 %v5284, 0.0
        %v5349 = vmax.f32 %v5285, 0.0
        %v5350 = vmax.f32 %v5286, 0.0
        %v5351 = vmax.f32 %v5287, 0.0
        %v5352 = vmax.f32 %v5288, 0.0
        %v5353 = vmax.f32 %v5289, 0.0
        %v5354 = vmax.f32 %v5290, 0.0
        %v5355 = vmax.f32 %v5291, 0.0
        %v5356 = vmax.f32 %v5292, 0.0
        %v5357 = vmax.f32 %v5293, 0.0
        %v5358 = vmax.f32 %v5294, 0.0
        %v5359 = vmax.f32 %v5295, 0.0
        %v5360 = vmax.f32 %v5296, 0.0
        %v5361 = vmax.f32 %v5297, 0.0
        %v5362 = vmax.f32 %v5298, 0.0
        %v5363 = vmax.f32 %v5299, 0.0
        %v5364 = vmax.f32 %v5300, 0.0
        %v5365 = vmax.f32 %v5301, 0.0
        %v5366 = vmax.f32 %v5302, 0.0
        %v5367 = vmax.f32 %v5303, 0.0
        %v5368 = vmax.f32 %v5304, 0.0
        %v5369 = vmax.f32 %v5305, 0.0
        %v5370 = vmax.f32 %v5306, 0.0
        %v5371 = vmax.f32 %v5307, 0.0
        %v5372 = vmax.f32 %v5308, 0.0
        %v5373 = vmax.f32 %v5309, 0.0
        %v5374 = vmax.f32 %v5310, 0.0
        %v5375 = vmax.f32 %v5311, 0.0
        %v5376 = vmax.f32 %v5312, 0.0
        %v5377 = vmax.f32 %v5313, 0.0
        %v5378 = vmax.f32 %v5314, 0.0
        %v5379 = vmax.f32 %v5315, 0.0
        %v5380 = vmax.f32 %v5316, 0.0
        %5381 = vst [vmem:[%s359] sm:$0xff] %v5317
        %5382 = vst [vmem:[%s359 + $0x8] sm:$0xff] %v5318
        %5383 = vst [vmem:[%s359 + $0x10] sm:$0xff] %v5319
        %5384 = vst [vmem:[%s359 + $0x18] sm:$0xff] %v5320
        %5385 = vst [vmem:[%s359 + $0x20] sm:$0xff] %v5321
        %5386 = vst [vmem:[%s359 + $0x28] sm:$0xff] %v5322
        %5387 = vst [vmem:[%s359 + $0x30] sm:$0xff] %v5323
        %5388 = vst [vmem:[%s359 + $0x38] sm:$0xff] %v5324
        %5389 = vst [vmem:[%s359 + $0x40] sm:$0xff] %v5325
        %5390 = vst [vmem:[%s359 + $0x48] sm:$0xff] %v5326
        %5391 = vst [vmem:[%s359 + $0x50] sm:$0xff] %v5327
        %5392 = vst [vmem:[%s359 + $0x58] sm:$0xff] %v5328
        %5393 = vst [vmem:[%s359 + $0x60] sm:$0xff] %v5329
        %5394 = vst [vmem:[%s359 + $0x68] sm:$0xff] %v5330
        %5395 = vst [vmem:[%s359 + $0x70] sm:$0xff] %v5331
        %5396 = vst [vmem:[%s359 + $0x78] sm:$0xff] %v5332
        %5397 = vst [vmem:[%s359 + $0x80] sm:$0xff] %v5333
        %5398 = vst [vmem:[%s359 + $0x88] sm:$0xff] %v5334
        %5399 = vst [vmem:[%s359 + $0x90] sm:$0xff] %v5335
        %5400 = vst [vmem:[%s359 + $0x98] sm:$0xff] %v5336
        %5401 = vst [vmem:[%s359 + $0xa0] sm:$0xff] %v5337
        %5402 = vst [vmem:[%s359 + $0xa8] sm:$0xff] %v5338
        %5403 = vst [vmem:[%s359 + $0xb0] sm:$0xff] %v5339
        %5404 = vst [vmem:[%s359 + $0xb8] sm:$0xff] %v5340
        %5405 = vst [vmem:[%s359 + $0xc0] sm:$0xff] %v5341
        %5406 = vst [vmem:[%s359 + $0xc8] sm:$0xff] %v5342
        %5407 = vst [vmem:[%s359 + $0xd0] sm:$0xff] %v5343
        %5408 = vst [vmem:[%s359 + $0xd8] sm:$0xff] %v5344
        %5409 = vst [vmem:[%s359 + $0xe0] sm:$0xff] %v5345
        %5410 = vst [vmem:[%s359 + $0xe8] sm:$0xff] %v5346
        %5411 = vst [vmem:[%s359 + $0xf0] sm:$0xff] %v5347
        %5412 = vst [vmem:[%s359 + $0xf8] sm:$0xff] %v5348
        %5413 = vst [vmem:[%s359 + $0x100] sm:$0xff] %v5349
        %5414 = vst [vmem:[%s359 + $0x108] sm:$0xff] %v5350
        %5415 = vst [vmem:[%s359 + $0x110] sm:$0xff] %v5351
        %5416 = vst [vmem:[%s359 + $0x118] sm:$0xff] %v5352
        %5417 = vst [vmem:[%s359 + $0x120] sm:$0xff] %v5353
        %5418 = vst [vmem:[%s359 + $0x128] sm:$0xff] %v5354
        %5419 = vst [vmem:[%s359 + $0x130] sm:$0xff] %v5355
        %5420 = vst [vmem:[%s359 + $0x138] sm:$0xff] %v5356
        %5421 = vst [vmem:[%s359 + $0x140] sm:$0xff] %v5357
        %5422 = vst [vmem:[%s359 + $0x148] sm:$0xff] %v5358
        %5423 = vst [vmem:[%s359 + $0x150] sm:$0xff] %v5359
        %5424 = vst [vmem:[%s359 + $0x158] sm:$0xff] %v5360
        %5425 = vst [vmem:[%s359 + $0x160] sm:$0xff] %v5361
        %5426 = vst [vmem:[%s359 + $0x168] sm:$0xff] %v5362
        %5427 = vst [vmem:[%s359 + $0x170] sm:$0xff] %v5363
        %5428 = vst [vmem:[%s359 + $0x178] sm:$0xff] %v5364
        %5429 = vst [vmem:[%s359 + $0x180] sm:$0xff] %v5365
        %5430 = vst [vmem:[%s359 + $0x188] sm:$0xff] %v5366
        %5431 = vst [vmem:[%s359 + $0x190] sm:$0xff] %v5367
        %5432 = vst [vmem:[%s359 + $0x198] sm:$0xff] %v5368
        %5433 = vst [vmem:[%s359 + $0x1a0] sm:$0xff] %v5369
        %5434 = vst [vmem:[%s359 + $0x1a8] sm:$0xff] %v5370
        %5435 = vst [vmem:[%s359 + $0x1b0] sm:$0xff] %v5371
        %5436 = vst [vmem:[%s359 + $0x1b8] sm:$0xff] %v5372
        %5437 = vst [vmem:[%s359 + $0x1c0] sm:$0xff] %v5373
        %5438 = vst [vmem:[%s359 + $0x1c8] sm:$0xff] %v5374
        %5439 = vst [vmem:[%s359 + $0x1d0] sm:$0xff] %v5375
        %5440 = vst [vmem:[%s359 + $0x1d8] sm:$0xff] %v5376
        %5441 = vst [vmem:[%s359 + $0x1e0] sm:$0xff] %v5377
        %5442 = vst [vmem:[%s359 + $0x1e8] sm:$0xff] %v5378
        %5443 = vst [vmem:[%s359 + $0x1f0] sm:$0xff] %v5379
        %5444 = vst [vmem:[%s359 + $0x1f8] sm:$0xff] %v5380
        %s5445 = sand.u32 %s195, 1
        %s5446 = scalar_lea.sflag [#allocation4], %s5445
        %s5447 = sand.u32 %s195, 1
        %s5448 = smul.addr %s5447, 512
        %s5449 = scalar_lea.vmem [#allocation7], %s5448
        // Predicated region
        $region53: #{tpu_custom_call.1} parent=43 // pred_check
          %p5450 = pneg %p205
        $region54: #{tpu_custom_call.1} parent=43 // pred_check_branch
          %5452 = sbr.rel (%p5450) target = $region56
        $region55: #{tpu_custom_call.1} parent=43 // pred_region
          %s5453 = smul.u32 16, %s31
          %5455 = vsyncadd %s5446, 0
          %s5456 = smul.addr %s30, 64
          %s5457 = sadd.s32 %s5453, %s5456
          %s5458 = smul.addr %s5457, 8
          %s5459 = scalar_lea.hbm %s6, %s5458
          %s5460 = sshll.u32 %s5449, 4
          %s5461 = int_to_ptr.vmem [resolvable:$true] %s5460
          %s5462 = sshll.u32 %s5459, 4
          %s5463 = int_to_ptr.hbm [resolvable:$true] %s5462
          %5468 = dma.vmem_to_hbm [thread:$0]  %s5461, 8192, %s5463, %s5446, 2048, 2048, 128
        $region56: #{tpu_custom_call.1} parent=43 // pred_fallthru
          _
      $region44: #{tpu_custom_call.1} parent=5 // pred_fallthru
        _
      %p5469 = scmp.le.s32.totalorder 2, %s21
      // Predicated region
      $region57: #{tpu_custom_call.1} parent=5 // pred_check
        %p5470 = pneg %p5469
      $region58: #{tpu_custom_call.1} parent=5 // pred_check_branch
        %5472 = sbr.rel (%p5470) target = $region60
      $region59: #{tpu_custom_call.1} parent=5 // pred_region
        %s5473 = ssub.s32 %s21, 2
        // Predicated region
        $region61: #{tpu_custom_call.1} parent=59 // pred_check
          %p5474 = pneg %p211
        $region62: #{tpu_custom_call.1} parent=59 // pred_check_branch
          %5476 = sbr.rel (%p5474) target = $region64
        $region63: #{tpu_custom_call.1} parent=59 // pred_region
          %s5477 = sand.u32 %s196, 1
          %s5478 = scalar_lea.sflag [#allocation4], %s5477
          %s5479 = sand.u32 %s196, 1
          %s5480 = smul.addr %s5479, 512
          %s5481 = scalar_lea.vmem [#allocation7], %s5480
          %5483 = dma.done %s5478, 8192
        $region64: #{tpu_custom_call.1} parent=59 // pred_fallthru
          _
      $region60: #{tpu_custom_call.1} parent=5 // pred_fallthru
        _
    $region6: #{tpu_custom_call.1} parent=1 // loop_footer
      %s25 = sadd.s32 1, %s21
    $region7: #{tpu_custom_call.1} parent=1 // loop_footer_branch
      %20 = sbr.rel target = $region3
    $region8: #{tpu_custom_call.1} parent=1 // loop_exit
      _
    %5484 = vsyncpa [#allocation3], 1
    %s5485 = scalar_lea.sflag [#allocation3], 1
    %5486 = vsyncpa %s5485, 1
    %5487 = vsyncpa [#allocation6], 1
    %s5488 = scalar_lea.sflag [#allocation6], 1
    %5489 = vsyncpa %s5488, 1
    %5490 = vsyncpa [#allocation4], 1
    %s5491 = scalar_lea.sflag [#allocation4], 1
    %5492 = vsyncpa %s5491, 1

</llo_original>
